<compile_context>
chip_gen: v5e
topology: v5e:2x2
jax: 0.10.0
libtpu: 0.0.40
codegen_flags: <defaults>
</compile_context>

<pallas_src>
import functools

import jax
import jax.numpy as jnp
from jax.experimental import pallas as pl
from jax.experimental.pallas import tpu as pltpu

EPS = 1e-5                      # nn.GroupNorm default eps
MXU_DTYPE = jnp.float32         # set to jnp.bfloat16 in production (f32 accumulation kept)


# ----------------------------------------------------------------------------
# In-kernel building blocks (all tensors in fused (H, W*C) lane-dense layout)
# ----------------------------------------------------------------------------
def _bb(x, pad_ref, t_ref, aff_ref, H, W, C):
    """One BB block.  x: (H, W*C) f32 value.  Returns (H, W*C) f32.

    pad_ref: VMEM (H+2, (W+1)*C) staging scratch (zero borders, MXU_DTYPE).
    t_ref:   (3, 3, (W+1)*C, W*C) Toeplitz-lowered conv weights
             (conv index, row-tap dh, ...).
    aff_ref: (3, W*C): GroupNorm gamma/beta and PReLU alpha, pre-tiled along W
             (the same instance serves all three stages, as in PyTorch).
    """
    WC = W * C
    gamma = aff_ref[0:1, :]                       # (1, WC)
    beta = aff_ref[1:2, :]
    alpha = aff_ref[2:3, :]
    inv_n = 1.0 / float(H * WC)

    # Border-only init: top/bottom zero rows + ONE shared zero column-group at
    # lanes [W*C, (W+1)*C).  The interior is rewritten for every conv, so the
    # border stays valid for all three convolutions of this BB.
    zrow = jnp.zeros((1, pad_ref.shape[1]), pad_ref.dtype)
    pad_ref[0:1, :] = zrow
    pad_ref[H + 1:H + 2, :] = zrow
    pad_ref[:, WC:WC + C] = jnp.zeros((H + 2, C), pad_ref.dtype)

    def conv(idx, inp):
        # Stage the activation once (lane-aligned store), then 3 dense MXU
        # matmuls (one per row tap) with the f32 accumulator held in vregs.
        pad_ref[1:H + 1, 0:WC] = inp.astype(pad_ref.dtype)
        acc = jnp.zeros((H, WC), jnp.float32)
        for dh in range(3):
            acc = acc + jnp.dot(pad_ref[dh:dh + H, :], t_ref[idx, dh],
                                preferred_element_type=jnp.float32)
        return acc

    def gn(y):                        # GroupNorm(num_groups=1), one-pass stats
        mu = jnp.sum(y) * inv_n
        var = jnp.sum(y * y) * inv_n - mu * mu
        scale = jax.lax.rsqrt(var + EPS) * gamma          # (1, WC)
        return (y - mu) * scale + beta

    def prelu(t):
        return jnp.where(t >= 0.0, t, alpha * t)

    x1 = prelu(gn(conv(0, x)))
    x2 = prelu(gn(conv(1, x1)))
    return prelu(gn(conv(2, x2)) + x)                # residual added BEFORE PReLU


def _pool_conv(e, rpad_ref, p_ref, H, W, C):
    """MaxPool2d(kernel=3, stride=2, padding=1) fused with the bias-free 1x1 conv.

    e: (H, W*C) f32 value.  rpad_ref: VMEM (H+2, W*C) f32 (row-pad scratch).
    p_ref: (W*C, (W//2)*Cout) — stride-2 column selection fused with the 1x1
           weight.  Returns (H//2, (W//2)*Cout) f32.
    """
    WC = W * C
    H2 = H // 2
    ninf_row = jnp.full((1, WC), -jnp.inf, jnp.float32)
    rpad_ref[0:1, :] = ninf_row
    rpad_ref[H + 1:H + 2, :] = ninf_row
    rpad_ref[1:H + 1, :] = e

    # Row taps: output row ho covers padded rows 2ho, 2ho+1, 2ho+2
    # -> three stride-2 sublane reads.
    rowmax = jnp.maximum(
        jnp.maximum(rpad_ref[pl.ds(0, H2, stride=2), :],
                    rpad_ref[pl.ds(1, H2, stride=2), :]),
        rpad_ref[pl.ds(2, H2, stride=2), :])              # (H2, W*C)

    # Column taps: +-C lane rotations (XLU) with -inf masking at the w borders.
    lane = jax.lax.broadcasted_iota(jnp.int32, (H2, WC), 1)
    left = jnp.where(lane >= C, pltpu.roll(rowmax, C, axis=1), -jnp.inf)
    right = jnp.where(lane < WC - C, pltpu.roll(rowmax, WC - C, axis=1), -jnp.inf)
    colmax = jnp.maximum(jnp.maximum(left, rowmax), right)   # (H2, W*C)

    # Stride-2 column downsample + 1x1 channel expansion as ONE dense matmul.
    wt = p_ref[...]
    return jnp.dot(colmax.astype(wt.dtype), wt, preferred_element_type=jnp.float32)


def encoder_kernel(x_ref, t1_ref, a1_ref, t2_ref, a2_ref, t3_ref, a3_ref,
                   p12_ref, p23_ref,
                   e1_ref, e2_ref, e3_ref,
                   pad1, pad2, pad3, rpad1, rpad2,
                   *, H, W, C):
    C2, C3 = 2 * C, 4 * C
    H2, W2, H3, W3 = H // 2, W // 2, H // 4, W // 4

    # ---- stage 1: e1 = BB(x) ------------------------------------------------
    e1 = _bb(x_ref[0], pad1, t1_ref, a1_ref, H, W, C)          # (H, W*C)
    e1_ref[0] = e1                                             # dense vst

    # ---- maxpool + conv_e1te2 -----------------------------------------------
    t1 = _pool_conv(e1, rpad1, p12_ref, H, W, C)               # (H2, W2*C2)

    # ---- stage 2: e2 = BB(t1) -----------------------------------------------
    e2 = _bb(t1, pad2, t2_ref, a2_ref, H2, W2, C2)
    e2_ref[0] = e2

    # ---- maxpool + conv_e2te3 -----------------------------------------------
    t2 = _pool_conv(e2, rpad2, p23_ref, H2, W2, C2)            # (H3, W3*C3)

    # ---- stage 3: e3 = BB(t2) -----------------------------------------------
    e3 = _bb(t2, pad3, t3_ref, a3_ref, H3, W3, C3)
    e3_ref[0] = e3


# ----------------------------------------------------------------------------
# Wrapper-side weight lowering to the fused lane-dense layout
# ----------------------------------------------------------------------------
def _toeplitz_conv(w_taps, width):
    """(nconv, 9, Cin, Cout) taps -> (nconv, 3, (width+1)*Cin, width*Cout).

    T[i, dh, m*Cin+ci, w*Cout+co] = K[i, dh, m-w+1, ci, co] for |m-w| <= 1.
    The extra column-group at lanes [width*Cin, (width+1)*Cin) only multiplies
    the shared zero pad-column of the staging scratch.
    """
    nconv = w_taps.shape[0]
    cin, cout = w_taps.shape[2], w_taps.shape[3]
    k = w_taps.reshape(nconv, 3, 3, cin, cout)       # (i, dh, dw, ci, co)
    t = jnp.zeros((nconv, 3, (width + 1) * cin, width * cout), w_taps.dtype)
    for dw in range(3):
        for w in range(width):
            m = w + dw - 1
            if 0 <= m < width:
                t = t.at[:, :, m * cin:(m + 1) * cin,
                         w * cout:(w + 1) * cout].set(k[:, :, dw])
    return t


def _pool_proj(w1x1, width):
    """(Cin, Cout) 1x1 weight -> (width*Cin, (width//2)*Cout) matrix fusing the
    stride-2 column downsample with the channel expansion."""
    cin, cout = w1x1.shape
    wo_n = width // 2
    p = jnp.zeros((width * cin, wo_n * cout), w1x1.dtype)
    for wo in range(wo_n):
        p = p.at[(2 * wo) * cin:(2 * wo + 1) * cin,
                 wo * cout:(wo + 1) * cout].set(w1x1)
    return p


def encoder_forward(x_nchw, params):
    """Encoder.forward.  Returns (e3out, e2out, e1out) in NCHW, like PyTorch."""
    w1, a1, w2, a2, w3, a3, t12, t23 = params
    N, C, H, W = x_nchw.shape
    assert H % 4 == 0 and W % 4 == 0, (H, W)
    C2, C3 = 2 * C, 4 * C
    H2, W2, H3, W3 = H // 2, W // 2, H // 4, W // 4

    # Fused lane-dense layout: (N, H, W*C).  W*C = 128 at every stage for the
    # test shapes -> dense DMAs, dense stores, no lane padding anywhere.
    x = jnp.transpose(x_nchw, (0, 2, 3, 1)).astype(jnp.float32).reshape(N, H, W * C)

    # Pre-lower weights (once per call; hoist out of the step fn in production).
    t1 = _toeplitz_conv(w1, W).astype(MXU_DTYPE)
    t2 = _toeplitz_conv(w2, W2).astype(MXU_DTYPE)
    t3 = _toeplitz_conv(w3, W3).astype(MXU_DTYPE)
    p12 = _pool_proj(t12, W).astype(MXU_DTYPE)
    p23 = _pool_proj(t23, W2).astype(MXU_DTYPE)
    aff1 = jnp.tile(a1.astype(jnp.float32), (1, W))      # (3, W*C) fused affine
    aff2 = jnp.tile(a2.astype(jnp.float32), (1, W2))
    aff3 = jnp.tile(a3.astype(jnp.float32), (1, W3))

    def full(shape):
        nd = len(shape)
        return pl.BlockSpec(shape, lambda n, _nd=nd: (0,) * _nd)

    kernel = functools.partial(encoder_kernel, H=H, W=W, C=C)
    # NOTE: for batch-1 v7x inference, add a second (row-striped) parallel grid
    # axis so both TensorCores get work; at N>=2 the batch axis already splits.
    call = pl.pallas_call(
        kernel,
        out_shape=(
            jax.ShapeDtypeStruct((N, H, W * C), jnp.float32),        # e1
            jax.ShapeDtypeStruct((N, H2, W2 * C2), jnp.float32),     # e2
            jax.ShapeDtypeStruct((N, H3, W3 * C3), jnp.float32),     # e3
        ),
        grid=(N,),
        in_specs=[
            pl.BlockSpec((1, H, W * C), lambda n: (n, 0, 0)),
            full(t1.shape), full(aff1.shape),
            full(t2.shape), full(aff2.shape),
            full(t3.shape), full(aff3.shape),
            full(p12.shape), full(p23.shape),
        ],
        out_specs=(
            pl.BlockSpec((1, H, W * C), lambda n: (n, 0, 0)),
            pl.BlockSpec((1, H2, W2 * C2), lambda n: (n, 0, 0)),
            pl.BlockSpec((1, H3, W3 * C3), lambda n: (n, 0, 0)),
        ),
        scratch_shapes=[
            pltpu.VMEM((H + 2, (W + 1) * C), MXU_DTYPE),         # pad1
            pltpu.VMEM((H2 + 2, (W2 + 1) * C2), MXU_DTYPE),      # pad2
            pltpu.VMEM((H3 + 2, (W3 + 1) * C3), MXU_DTYPE),      # pad3
            pltpu.VMEM((H + 2, W * C), jnp.float32),             # rpad1 (pool)
            pltpu.VMEM((H2 + 2, W2 * C2), jnp.float32),          # rpad2 (pool)
        ],
        compiler_params=pltpu.CompilerParams(
            dimension_semantics=("parallel",),
            vmem_limit_bytes=32 * 1024 * 1024),
    )
    e1, e2, e3 = call(x, t1, aff1, t2, aff2, t3, aff3, p12, p23)

    def to_nchw(t, h, w, c):
        return jnp.transpose(t.reshape(-1, h, w, c), (0, 3, 1, 2))

    return to_nchw(e3, H3, W3, C3), to_nchw(e2, H2, W2, C2), to_nchw(e1, H, W, C)


# ----------------------------------------------------------------------------
# Deterministic synthetic parameters (randomized affine so GroupNorm/PReLU
# parameters are actually exercised)
# ----------------------------------------------------------------------------
def init_bb_params(key, c):
    k1, k2, k3, k4 = jax.random.split(key, 4)
    w = jax.random.normal(k1, (3, 9, c, c), jnp.float32) / float((9 * c) ** 0.5)
    gamma = 1.0 + 0.1 * jax.random.normal(k2, (c,), jnp.float32)
    beta = 0.1 * jax.random.normal(k3, (c,), jnp.float32)
    alpha = 0.25 + 0.05 * jax.random.normal(k4, (c,), jnp.float32)
    aff = jnp.stack([gamma, beta, alpha]).astype(jnp.float32)         # (3, c)
    return w, aff


# ----------------------------------------------------------------------------
# Pure-JAX reference (ground truth for validation)
# ----------------------------------------------------------------------------
def _ref_bb(x, w, aff):
    c = x.shape[-1]
    gamma = aff[0].reshape(1, 1, 1, c)
    beta = aff[1].reshape(1, 1, 1, c)
    alpha = aff[2].reshape(1, 1, 1, c)
    k = w.reshape(3, 3, 3, c, c)                  # (conv, kh, kw, cin, cout)

    def conv(y, i):
        return jax.lax.conv_general_dilated(
            y, k[i], window_strides=(1, 1), padding=((1, 1), (1, 1)),
            dimension_numbers=('NHWC', 'HWIO', 'NHWC'),
            precision=jax.lax.Precision.HIGHEST)

    def gn(y):
        mu = jnp.mean(y, axis=(1, 2, 3), keepdims=True)
        var = jnp.mean(jnp.square(y - mu), axis=(1, 2, 3), keepdims=True)
        return (y - mu) * jax.lax.rsqrt(var + EPS) * gamma + beta

    prelu = lambda y: jnp.where(y >= 0, y, alpha * y)
    x1 = prelu(gn(conv(x, 0)))
    x2 = prelu(gn(conv(x1, 1)))
    return prelu(gn(conv(x2, 2)) + x)


def _ref_maxpool(x):
    return jax.lax.reduce_window(
        x, -jnp.inf, jax.lax.max, window_dimensions=(1, 3, 3, 1),
        window_strides=(1, 2, 2, 1),
        padding=((0, 0), (1, 1), (1, 1), (0, 0)))


def ref_encoder(x_nchw, params):
    w1, a1, w2, a2, w3, a3, t12, t23 = params
    x = jnp.transpose(x_nchw, (0, 2, 3, 1)).astype(jnp.float32)
    e1 = _ref_bb(x, w1, a1)
    e2 = _ref_bb(jnp.einsum('nhwc,cd->nhwd', _ref_maxpool(e1), t12,
                            precision=jax.lax.Precision.HIGHEST), w2, a2)
    e3 = _ref_bb(jnp.einsum('nhwc,cd->nhwd', _ref_maxpool(e2), t23,
                            precision=jax.lax.Precision.HIGHEST), w3, a3)
    to_nchw = lambda t: jnp.transpose(t, (0, 3, 1, 2))
    return to_nchw(e3), to_nchw(e2), to_nchw(e1)


# ----------------------------------------------------------------------------
if __name__ == "__main__":
    key = jax.random.PRNGKey(0)
    channel = 4
    N, H, W = 2, 32, 32        # W*C = 128 at all three stages -> lane-dense I/O

    kx, k1, k2, k3, kt1, kt2 = jax.random.split(key, 6)
    x = jax.random.normal(kx, (N, channel, H, W), jnp.float32)        # NCHW
    w1, a1 = init_bb_params(k1, channel)
    w2, a2 = init_bb_params(k2, 2 * channel)
    w3, a3 = init_bb_params(k3, 4 * channel)
    t12 = jax.random.normal(kt1, (channel, 2 * channel), jnp.float32) \
        / float(channel ** 0.5)
    t23 = jax.random.normal(kt2, (2 * channel, 4 * channel), jnp.float32) \
        / float((2 * channel) ** 0.5)
    params = (w1, a1, w2, a2, w3, a3, t12, t23)

    fwd = jax.jit(encoder_forward)
    e3, e2, e1 = fwd(x, params)
    jax.block_until_ready((e3, e2, e1))

    r3, r2, r1 = ref_encoder(x, params)
    assert e3.shape == (N, 4 * channel, H // 4, W // 4), e3.shape
    assert e2.shape == (N, 2 * channel, H // 2, W // 2), e2.shape
    assert e1.shape == (N, channel, H, W), e1.shape
    for got, want in ((e1, r1), (e2, r2), (e3, r3)):
        assert bool(jnp.all(jnp.isfinite(got)))
        err = float(jnp.max(jnp.abs(got - want)))
        assert bool(jnp.allclose(got, want, atol=1e-2, rtol=1e-2)), err
    print("KERNEL_OK")
</pallas_src>

<mosaic_0001>
module attributes {stable_mosaic.version = 11 : i64} {
  func.func @encoder_kernel(%arg0: i32, %arg1: memref<1x32x128xf32, #tpu.memory_space<vmem>>, %arg2: memref<3x3x132x128xf32, #tpu.memory_space<vmem>>, %arg3: memref<3x128xf32, #tpu.memory_space<vmem>>, %arg4: memref<3x3x136x128xf32, #tpu.memory_space<vmem>>, %arg5: memref<3x128xf32, #tpu.memory_space<vmem>>, %arg6: memref<3x3x144x128xf32, #tpu.memory_space<vmem>>, %arg7: memref<3x128xf32, #tpu.memory_space<vmem>>, %arg8: memref<128x128xf32, #tpu.memory_space<vmem>>, %arg9: memref<128x128xf32, #tpu.memory_space<vmem>>, %arg10: memref<1x32x128xf32, #tpu.memory_space<vmem>>, %arg11: memref<1x16x128xf32, #tpu.memory_space<vmem>>, %arg12: memref<1x8x128xf32, #tpu.memory_space<vmem>>, %arg13: memref<34x132xf32, #tpu.memory_space<vmem>>, %arg14: memref<18x136xf32, #tpu.memory_space<vmem>>, %arg15: memref<10x144xf32, #tpu.memory_space<vmem>>, %arg16: memref<34x128xf32, #tpu.memory_space<vmem>>, %arg17: memref<18x128xf32, #tpu.memory_space<vmem>>) attributes {dimension_semantics = [#tpu.dimension_semantics<parallel>], iteration_bounds = array<i64: 2>, scalar_prefetch = 0 : i64, scratch_operands = 5 : i64, tpu.core_type = #tpu.core_type<tc>, window_params = [{transform_indices = @transform_0, window_bounds = array<i64: 1, 32, 128>}, {pipeline_mode = #tpu.pipeline_mode<synchronous>, transform_indices = @transform_1, window_bounds = array<i64: 3, 3, 132, 128>}, {pipeline_mode = #tpu.pipeline_mode<synchronous>, transform_indices = @transform_2, window_bounds = array<i64: 3, 128>}, {pipeline_mode = #tpu.pipeline_mode<synchronous>, transform_indices = @transform_3, window_bounds = array<i64: 3, 3, 136, 128>}, {pipeline_mode = #tpu.pipeline_mode<synchronous>, transform_indices = @transform_4, window_bounds = array<i64: 3, 128>}, {pipeline_mode = #tpu.pipeline_mode<synchronous>, transform_indices = @transform_5, window_bounds = array<i64: 3, 3, 144, 128>}, {pipeline_mode = #tpu.pipeline_mode<synchronous>, transform_indices = @transform_6, window_bounds = array<i64: 3, 128>}, {pipeline_mode = #tpu.pipeline_mode<synchronous>, transform_indices = @transform_7, window_bounds = array<i64: 128, 128>}, {pipeline_mode = #tpu.pipeline_mode<synchronous>, transform_indices = @transform_8, window_bounds = array<i64: 128, 128>}, {transform_indices = @transform_9, window_bounds = array<i64: 1, 32, 128>}, {transform_indices = @transform_10, window_bounds = array<i64: 1, 16, 128>}, {transform_indices = @transform_11, window_bounds = array<i64: 1, 8, 128>}]} {
    %c0 = arith.constant 0 : index
    %c0_0 = arith.constant 0 : index
    %c0_1 = arith.constant 0 : index
    %0 = vector.load %arg1[%c0, %c0_0, %c0_1] : memref<1x32x128xf32, #tpu.memory_space<vmem>>, vector<1x32x128xf32>
    %1 = vector.shape_cast %0 : vector<1x32x128xf32> to vector<32x128xf32>
    %c0_2 = arith.constant 0 : index
    %c0_3 = arith.constant 0 : index
    %2 = vector.load %arg3[%c0_2, %c0_3] : memref<3x128xf32, #tpu.memory_space<vmem>>, vector<1x128xf32>
    %c1 = arith.constant 1 : index
    %c0_4 = arith.constant 0 : index
    %3 = vector.load %arg3[%c1, %c0_4] : memref<3x128xf32, #tpu.memory_space<vmem>>, vector<1x128xf32>
    %c2 = arith.constant 2 : index
    %c0_5 = arith.constant 0 : index
    %4 = vector.load %arg3[%c2, %c0_5] : memref<3x128xf32, #tpu.memory_space<vmem>>, vector<1x128xf32>
    %cst = arith.constant 0.000000e+00 : f32
    %5 = vector.broadcast %cst : f32 to vector<1x132xf32>
    %c0_6 = arith.constant 0 : index
    %c0_7 = arith.constant 0 : index
    %6 = vector.load %arg13[%c0_6, %c0_7] : memref<34x132xf32, #tpu.memory_space<vmem>>, vector<1x132xf32>
    tpu.vector_store %arg13[%c0_6, %c0_7], %5 {strides = array<i32>} : memref<34x132xf32, #tpu.memory_space<vmem>>, vector<1x132xf32>,
    %c33 = arith.constant 33 : index
    %c0_8 = arith.constant 0 : index
    %7 = vector.load %arg13[%c33, %c0_8] : memref<34x132xf32, #tpu.memory_space<vmem>>, vector<1x132xf32>
    tpu.vector_store %arg13[%c33, %c0_8], %5 {strides = array<i32>} : memref<34x132xf32, #tpu.memory_space<vmem>>, vector<1x132xf32>,
    %cst_9 = arith.constant 0.000000e+00 : f32
    %8 = vector.broadcast %cst_9 : f32 to vector<34x4xf32>
    %c0_10 = arith.constant 0 : index
    %c128 = arith.constant 128 : index
    %9 = vector.load %arg13[%c0_10, %c128] : memref<34x132xf32, #tpu.memory_space<vmem>>, vector<34x4xf32>
    tpu.vector_store %arg13[%c0_10, %c128], %8 {strides = array<i32>} : memref<34x132xf32, #tpu.memory_space<vmem>>, vector<34x4xf32>,
    %c1_11 = arith.constant 1 : index
    %c0_12 = arith.constant 0 : index
    %10 = vector.load %arg13[%c1_11, %c0_12] : memref<34x132xf32, #tpu.memory_space<vmem>>, vector<32x128xf32>
    tpu.vector_store %arg13[%c1_11, %c0_12], %1 {strides = array<i32>} : memref<34x132xf32, #tpu.memory_space<vmem>>, vector<32x128xf32>,
    %cst_13 = arith.constant 0.000000e+00 : f32
    %11 = vector.broadcast %cst_13 : f32 to vector<32x128xf32>
    %c0_14 = arith.constant 0 : index
    %c0_15 = arith.constant 0 : index
    %12 = vector.load %arg13[%c0_14, %c0_15] : memref<34x132xf32, #tpu.memory_space<vmem>>, vector<32x132xf32>
    %c0_16 = arith.constant 0 : index
    %c0_17 = arith.constant 0 : index
    %c0_18 = arith.constant 0 : index
    %c0_19 = arith.constant 0 : index
    %13 = vector.load %arg2[%c0_16, %c0_17, %c0_18, %c0_19] : memref<3x3x132x128xf32, #tpu.memory_space<vmem>>, vector<1x1x132x128xf32>
    %14 = vector.shape_cast %13 : vector<1x1x132x128xf32> to vector<132x128xf32>
    %cst_20 = arith.constant dense<0.000000e+00> : vector<32x128xf32>
    %15 = tpu.matmul %12, %14, %cst_20 {dimension_numbers = #tpu.dot_dimension_numbers<[1], [0], [0], [1], [0, 0, 1, 1], [], []>} : vector<32x132xf32>, vector<132x128xf32>, vector<32x128xf32> -> vector<32x128xf32>
    %16 = arith.addf %11, %15 : vector<32x128xf32>
    %c1_21 = arith.constant 1 : index
    %c0_22 = arith.constant 0 : index
    %17 = vector.load %arg13[%c1_21, %c0_22] : memref<34x132xf32, #tpu.memory_space<vmem>>, vector<32x132xf32>
    %c0_23 = arith.constant 0 : index
    %c1_24 = arith.constant 1 : index
    %c0_25 = arith.constant 0 : index
    %c0_26 = arith.constant 0 : index
    %18 = vector.load %arg2[%c0_23, %c1_24, %c0_25, %c0_26] : memref<3x3x132x128xf32, #tpu.memory_space<vmem>>, vector<1x1x132x128xf32>
    %19 = vector.shape_cast %18 : vector<1x1x132x128xf32> to vector<132x128xf32>
    %cst_27 = arith.constant dense<0.000000e+00> : vector<32x128xf32>
    %20 = tpu.matmul %17, %19, %cst_27 {dimension_numbers = #tpu.dot_dimension_numbers<[1], [0], [0], [1], [0, 0, 1, 1], [], []>} : vector<32x132xf32>, vector<132x128xf32>, vector<32x128xf32> -> vector<32x128xf32>
    %21 = arith.addf %16, %20 : vector<32x128xf32>
    %c2_28 = arith.constant 2 : index
    %c0_29 = arith.constant 0 : index
    %22 = vector.load %arg13[%c2_28, %c0_29] : memref<34x132xf32, #tpu.memory_space<vmem>>, vector<32x132xf32>
    %c0_30 = arith.constant 0 : index
    %c2_31 = arith.constant 2 : index
    %c0_32 = arith.constant 0 : index
    %c0_33 = arith.constant 0 : index
    %23 = vector.load %arg2[%c0_30, %c2_31, %c0_32, %c0_33] : memref<3x3x132x128xf32, #tpu.memory_space<vmem>>, vector<1x1x132x128xf32>
    %24 = vector.shape_cast %23 : vector<1x1x132x128xf32> to vector<132x128xf32>
    %cst_34 = arith.constant dense<0.000000e+00> : vector<32x128xf32>
    %25 = tpu.matmul %22, %24, %cst_34 {dimension_numbers = #tpu.dot_dimension_numbers<[1], [0], [0], [1], [0, 0, 1, 1], [], []>} : vector<32x132xf32>, vector<132x128xf32>, vector<32x128xf32> -> vector<32x128xf32>
    %26 = arith.addf %21, %25 : vector<32x128xf32>
    %27 = vector.shape_cast %26 : vector<32x128xf32> to vector<1x32x128xf32>
    %cst_35 = arith.constant dense<0.000000e+00> : vector<1xf32>
    %28 = vector.multi_reduction <add>, %27, %cst_35 [1, 2] : vector<1x32x128xf32> to vector<1xf32>
    %29 = vector.shape_cast %28 : vector<1xf32> to vector<1x1x1xf32>
    %30 = vector.extract %29[0, 0, 0] : f32 from vector<1x1x1xf32>
    %cst_36 = arith.constant 2.44140625E-4 : f32
    %31 = arith.mulf %30, %cst_36 : f32
    %32 = arith.mulf %26, %26 : vector<32x128xf32>
    %33 = vector.shape_cast %32 : vector<32x128xf32> to vector<1x32x128xf32>
    %cst_37 = arith.constant dense<0.000000e+00> : vector<1xf32>
    %34 = vector.multi_reduction <add>, %33, %cst_37 [1, 2] : vector<1x32x128xf32> to vector<1xf32>
    %35 = vector.shape_cast %34 : vector<1xf32> to vector<1x1x1xf32>
    %36 = vector.extract %35[0, 0, 0] : f32 from vector<1x1x1xf32>
    %cst_38 = arith.constant 2.44140625E-4 : f32
    %37 = arith.mulf %36, %cst_38 : f32
    %38 = arith.mulf %31, %31 : f32
    %39 = arith.subf %37, %38 : f32
    %cst_39 = arith.constant 9.99999974E-6 : f32
    %40 = arith.addf %39, %cst_39 : f32
    %41 = math.rsqrt %40 : f32
    %42 = vector.broadcast %41 : f32 to vector<1x128xf32>
    %43 = arith.mulf %42, %2 : vector<1x128xf32>
    %44 = vector.broadcast %31 : f32 to vector<32x128xf32>
    %45 = arith.subf %26, %44 : vector<32x128xf32>
    %46 = vector.broadcast %43 : vector<1x128xf32> to vector<32x128xf32>
    %47 = arith.mulf %45, %46 : vector<32x128xf32>
    %48 = vector.broadcast %3 : vector<1x128xf32> to vector<32x128xf32>
    %49 = arith.addf %47, %48 : vector<32x128xf32>
    %cst_40 = arith.constant 0.000000e+00 : f32
    %50 = vector.broadcast %cst_40 : f32 to vector<32x128xf32>
    %51 = arith.cmpf oge, %49, %50 : vector<32x128xf32>
    %52 = vector.broadcast %4 : vector<1x128xf32> to vector<32x128xf32>
    %53 = arith.mulf %52, %49 : vector<32x128xf32>
    %54 = arith.select %51, %49, %53 : vector<32x128xi1>, vector<32x128xf32>
    %c1_41 = arith.constant 1 : index
    %c0_42 = arith.constant 0 : index
    %55 = vector.load %arg13[%c1_41, %c0_42] : memref<34x132xf32, #tpu.memory_space<vmem>>, vector<32x128xf32>
    tpu.vector_store %arg13[%c1_41, %c0_42], %54 {strides = array<i32>} : memref<34x132xf32, #tpu.memory_space<vmem>>, vector<32x128xf32>,
    %cst_43 = arith.constant 0.000000e+00 : f32
    %56 = vector.broadcast %cst_43 : f32 to vector<32x128xf32>
    %c0_44 = arith.constant 0 : index
    %c0_45 = arith.constant 0 : index
    %57 = vector.load %arg13[%c0_44, %c0_45] : memref<34x132xf32, #tpu.memory_space<vmem>>, vector<32x132xf32>
    %c1_46 = arith.constant 1 : index
    %c0_47 = arith.constant 0 : index
    %c0_48 = arith.constant 0 : index
    %c0_49 = arith.constant 0 : index
    %58 = vector.load %arg2[%c1_46, %c0_47, %c0_48, %c0_49] : memref<3x3x132x128xf32, #tpu.memory_space<vmem>>, vector<1x1x132x128xf32>
    %59 = vector.shape_cast %58 : vector<1x1x132x128xf32> to vector<132x128xf32>
    %cst_50 = arith.constant dense<0.000000e+00> : vector<32x128xf32>
    %60 = tpu.matmul %57, %59, %cst_50 {dimension_numbers = #tpu.dot_dimension_numbers<[1], [0], [0], [1], [0, 0, 1, 1], [], []>} : vector<32x132xf32>, vector<132x128xf32>, vector<32x128xf32> -> vector<32x128xf32>
    %61 = arith.addf %56, %60 : vector<32x128xf32>
    %c1_51 = arith.constant 1 : index
    %c0_52 = arith.constant 0 : index
    %62 = vector.load %arg13[%c1_51, %c0_52] : memref<34x132xf32, #tpu.memory_space<vmem>>, vector<32x132xf32>
    %c1_53 = arith.constant 1 : index
    %c1_54 = arith.constant 1 : index
    %c0_55 = arith.constant 0 : index
    %c0_56 = arith.constant 0 : index
    %63 = vector.load %arg2[%c1_53, %c1_54, %c0_55, %c0_56] : memref<3x3x132x128xf32, #tpu.memory_space<vmem>>, vector<1x1x132x128xf32>
    %64 = vector.shape_cast %63 : vector<1x1x132x128xf32> to vector<132x128xf32>
    %cst_57 = arith.constant dense<0.000000e+00> : vector<32x128xf32>
    %65 = tpu.matmul %62, %64, %cst_57 {dimension_numbers = #tpu.dot_dimension_numbers<[1], [0], [0], [1], [0, 0, 1, 1], [], []>} : vector<32x132xf32>, vector<132x128xf32>, vector<32x128xf32> -> vector<32x128xf32>
    %66 = arith.addf %61, %65 : vector<32x128xf32>
    %c2_58 = arith.constant 2 : index
    %c0_59 = arith.constant 0 : index
    %67 = vector.load %arg13[%c2_58, %c0_59] : memref<34x132xf32, #tpu.memory_space<vmem>>, vector<32x132xf32>
    %c1_60 = arith.constant 1 : index
    %c2_61 = arith.constant 2 : index
    %c0_62 = arith.constant 0 : index
    %c0_63 = arith.constant 0 : index
    %68 = vector.load %arg2[%c1_60, %c2_61, %c0_62, %c0_63] : memref<3x3x132x128xf32, #tpu.memory_space<vmem>>, vector<1x1x132x128xf32>
    %69 = vector.shape_cast %68 : vector<1x1x132x128xf32> to vector<132x128xf32>
    %cst_64 = arith.constant dense<0.000000e+00> : vector<32x128xf32>
    %70 = tpu.matmul %67, %69, %cst_64 {dimension_numbers = #tpu.dot_dimension_numbers<[1], [0], [0], [1], [0, 0, 1, 1], [], []>} : vector<32x132xf32>, vector<132x128xf32>, vector<32x128xf32> -> vector<32x128xf32>
    %71 = arith.addf %66, %70 : vector<32x128xf32>
    %72 = vector.shape_cast %71 : vector<32x128xf32> to vector<1x32x128xf32>
    %cst_65 = arith.constant dense<0.000000e+00> : vector<1xf32>
    %73 = vector.multi_reduction <add>, %72, %cst_65 [1, 2] : vector<1x32x128xf32> to vector<1xf32>
    %74 = vector.shape_cast %73 : vector<1xf32> to vector<1x1x1xf32>
    %75 = vector.extract %74[0, 0, 0] : f32 from vector<1x1x1xf32>
    %cst_66 = arith.constant 2.44140625E-4 : f32
    %76 = arith.mulf %75, %cst_66 : f32
    %77 = arith.mulf %71, %71 : vector<32x128xf32>
    %78 = vector.shape_cast %77 : vector<32x128xf32> to vector<1x32x128xf32>
    %cst_67 = arith.constant dense<0.000000e+00> : vector<1xf32>
    %79 = vector.multi_reduction <add>, %78, %cst_67 [1, 2] : vector<1x32x128xf32> to vector<1xf32>
    %80 = vector.shape_cast %79 : vector<1xf32> to vector<1x1x1xf32>
    %81 = vector.extract %80[0, 0, 0] : f32 from vector<1x1x1xf32>
    %cst_68 = arith.constant 2.44140625E-4 : f32
    %82 = arith.mulf %81, %cst_68 : f32
    %83 = arith.mulf %76, %76 : f32
    %84 = arith.subf %82, %83 : f32
    %cst_69 = arith.constant 9.99999974E-6 : f32
    %85 = arith.addf %84, %cst_69 : f32
    %86 = math.rsqrt %85 : f32
    %87 = vector.broadcast %86 : f32 to vector<1x128xf32>
    %88 = arith.mulf %87, %2 : vector<1x128xf32>
    %89 = vector.broadcast %76 : f32 to vector<32x128xf32>
    %90 = arith.subf %71, %89 : vector<32x128xf32>
    %91 = vector.broadcast %88 : vector<1x128xf32> to vector<32x128xf32>
    %92 = arith.mulf %90, %91 : vector<32x128xf32>
    %93 = vector.broadcast %3 : vector<1x128xf32> to vector<32x128xf32>
    %94 = arith.addf %92, %93 : vector<32x128xf32>
    %cst_70 = arith.constant 0.000000e+00 : f32
    %95 = vector.broadcast %cst_70 : f32 to vector<32x128xf32>
    %96 = arith.cmpf oge, %94, %95 : vector<32x128xf32>
    %97 = vector.broadcast %4 : vector<1x128xf32> to vector<32x128xf32>
    %98 = arith.mulf %97, %94 : vector<32x128xf32>
    %99 = arith.select %96, %94, %98 : vector<32x128xi1>, vector<32x128xf32>
    %c1_71 = arith.constant 1 : index
    %c0_72 = arith.constant 0 : index
    %100 = vector.load %arg13[%c1_71, %c0_72] : memref<34x132xf32, #tpu.memory_space<vmem>>, vector<32x128xf32>
    tpu.vector_store %arg13[%c1_71, %c0_72], %99 {strides = array<i32>} : memref<34x132xf32, #tpu.memory_space<vmem>>, vector<32x128xf32>,
    %cst_73 = arith.constant 0.000000e+00 : f32
    %101 = vector.broadcast %cst_73 : f32 to vector<32x128xf32>
    %c0_74 = arith.constant 0 : index
    %c0_75 = arith.constant 0 : index
    %102 = vector.load %arg13[%c0_74, %c0_75] : memref<34x132xf32, #tpu.memory_space<vmem>>, vector<32x132xf32>
    %c2_76 = arith.constant 2 : index
    %c0_77 = arith.constant 0 : index
    %c0_78 = arith.constant 0 : index
    %c0_79 = arith.constant 0 : index
    %103 = vector.load %arg2[%c2_76, %c0_77, %c0_78, %c0_79] : memref<3x3x132x128xf32, #tpu.memory_space<vmem>>, vector<1x1x132x128xf32>
    %104 = vector.shape_cast %103 : vector<1x1x132x128xf32> to vector<132x128xf32>
    %cst_80 = arith.constant dense<0.000000e+00> : vector<32x128xf32>
    %105 = tpu.matmul %102, %104, %cst_80 {dimension_numbers = #tpu.dot_dimension_numbers<[1], [0], [0], [1], [0, 0, 1, 1], [], []>} : vector<32x132xf32>, vector<132x128xf32>, vector<32x128xf32> -> vector<32x128xf32>
    %106 = arith.addf %101, %105 : vector<32x128xf32>
    %c1_81 = arith.constant 1 : index
    %c0_82 = arith.constant 0 : index
    %107 = vector.load %arg13[%c1_81, %c0_82] : memref<34x132xf32, #tpu.memory_space<vmem>>, vector<32x132xf32>
    %c2_83 = arith.constant 2 : index
    %c1_84 = arith.constant 1 : index
    %c0_85 = arith.constant 0 : index
    %c0_86 = arith.constant 0 : index
    %108 = vector.load %arg2[%c2_83, %c1_84, %c0_85, %c0_86] : memref<3x3x132x128xf32, #tpu.memory_space<vmem>>, vector<1x1x132x128xf32>
    %109 = vector.shape_cast %108 : vector<1x1x132x128xf32> to vector<132x128xf32>
    %cst_87 = arith.constant dense<0.000000e+00> : vector<32x128xf32>
    %110 = tpu.matmul %107, %109, %cst_87 {dimension_numbers = #tpu.dot_dimension_numbers<[1], [0], [0], [1], [0, 0, 1, 1], [], []>} : vector<32x132xf32>, vector<132x128xf32>, vector<32x128xf32> -> vector<32x128xf32>
    %111 = arith.addf %106, %110 : vector<32x128xf32>
    %c2_88 = arith.constant 2 : index
    %c0_89 = arith.constant 0 : index
    %112 = vector.load %arg13[%c2_88, %c0_89] : memref<34x132xf32, #tpu.memory_space<vmem>>, vector<32x132xf32>
    %c2_90 = arith.constant 2 : index
    %c2_91 = arith.constant 2 : index
    %c0_92 = arith.constant 0 : index
    %c0_93 = arith.constant 0 : index
    %113 = vector.load %arg2[%c2_90, %c2_91, %c0_92, %c0_93] : memref<3x3x132x128xf32, #tpu.memory_space<vmem>>, vector<1x1x132x128xf32>
    %114 = vector.shape_cast %113 : vector<1x1x132x128xf32> to vector<132x128xf32>
    %cst_94 = arith.constant dense<0.000000e+00> : vector<32x128xf32>
    %115 = tpu.matmul %112, %114, %cst_94 {dimension_numbers = #tpu.dot_dimension_numbers<[1], [0], [0], [1], [0, 0, 1, 1], [], []>} : vector<32x132xf32>, vector<132x128xf32>, vector<32x128xf32> -> vector<32x128xf32>
    %116 = arith.addf %111, %115 : vector<32x128xf32>
    %117 = vector.shape_cast %116 : vector<32x128xf32> to vector<1x32x128xf32>
    %cst_95 = arith.constant dense<0.000000e+00> : vector<1xf32>
    %118 = vector.multi_reduction <add>, %117, %cst_95 [1, 2] : vector<1x32x128xf32> to vector<1xf32>
    %119 = vector.shape_cast %118 : vector<1xf32> to vector<1x1x1xf32>
    %120 = vector.extract %119[0, 0, 0] : f32 from vector<1x1x1xf32>
    %cst_96 = arith.constant 2.44140625E-4 : f32
    %121 = arith.mulf %120, %cst_96 : f32
    %122 = arith.mulf %116, %116 : vector<32x128xf32>
    %123 = vector.shape_cast %122 : vector<32x128xf32> to vector<1x32x128xf32>
    %cst_97 = arith.constant dense<0.000000e+00> : vector<1xf32>
    %124 = vector.multi_reduction <add>, %123, %cst_97 [1, 2] : vector<1x32x128xf32> to vector<1xf32>
    %125 = vector.shape_cast %124 : vector<1xf32> to vector<1x1x1xf32>
    %126 = vector.extract %125[0, 0, 0] : f32 from vector<1x1x1xf32>
    %cst_98 = arith.constant 2.44140625E-4 : f32
    %127 = arith.mulf %126, %cst_98 : f32
    %128 = arith.mulf %121, %121 : f32
    %129 = arith.subf %127, %128 : f32
    %cst_99 = arith.constant 9.99999974E-6 : f32
    %130 = arith.addf %129, %cst_99 : f32
    %131 = math.rsqrt %130 : f32
    %132 = vector.broadcast %131 : f32 to vector<1x128xf32>
    %133 = arith.mulf %132, %2 : vector<1x128xf32>
    %134 = vector.broadcast %121 : f32 to vector<32x128xf32>
    %135 = arith.subf %116, %134 : vector<32x128xf32>
    %136 = vector.broadcast %133 : vector<1x128xf32> to vector<32x128xf32>
    %137 = arith.mulf %135, %136 : vector<32x128xf32>
    %138 = vector.broadcast %3 : vector<1x128xf32> to vector<32x128xf32>
    %139 = arith.addf %137, %138 : vector<32x128xf32>
    %140 = arith.addf %139, %1 : vector<32x128xf32>
    %cst_100 = arith.constant 0.000000e+00 : f32
    %141 = vector.broadcast %cst_100 : f32 to vector<32x128xf32>
    %142 = arith.cmpf oge, %140, %141 : vector<32x128xf32>
    %143 = vector.broadcast %4 : vector<1x128xf32> to vector<32x128xf32>
    %144 = arith.mulf %143, %140 : vector<32x128xf32>
    %145 = arith.select %142, %140, %144 : vector<32x128xi1>, vector<32x128xf32>
    %c0_101 = arith.constant 0 : index
    %c0_102 = arith.constant 0 : index
    %c0_103 = arith.constant 0 : index
    %146 = vector.load %arg10[%c0_101, %c0_102, %c0_103] : memref<1x32x128xf32, #tpu.memory_space<vmem>>, vector<1x32x128xf32>
    %147 = vector.shape_cast %146 : vector<1x32x128xf32> to vector<32x128xf32>
    %148 = vector.shape_cast %145 : vector<32x128xf32> to vector<1x32x128xf32>
    tpu.vector_store %arg10[%c0_101, %c0_102, %c0_103], %148 {strides = array<i32>} : memref<1x32x128xf32, #tpu.memory_space<vmem>>, vector<1x32x128xf32>,
    %cst_104 = arith.constant 0xFF800000 : f32
    %149 = vector.broadcast %cst_104 : f32 to vector<1x128xf32>
    %c0_105 = arith.constant 0 : index
    %c0_106 = arith.constant 0 : index
    %150 = vector.load %arg16[%c0_105, %c0_106] : memref<34x128xf32, #tpu.memory_space<vmem>>, vector<1x128xf32>
    tpu.vector_store %arg16[%c0_105, %c0_106], %149 {strides = array<i32>} : memref<34x128xf32, #tpu.memory_space<vmem>>, vector<1x128xf32>,
    %c33_107 = arith.constant 33 : index
    %c0_108 = arith.constant 0 : index
    %151 = vector.load %arg16[%c33_107, %c0_108] : memref<34x128xf32, #tpu.memory_space<vmem>>, vector<1x128xf32>
    tpu.vector_store %arg16[%c33_107, %c0_108], %149 {strides = array<i32>} : memref<34x128xf32, #tpu.memory_space<vmem>>, vector<1x128xf32>,
    %c1_109 = arith.constant 1 : index
    %c0_110 = arith.constant 0 : index
    %152 = vector.load %arg16[%c1_109, %c0_110] : memref<34x128xf32, #tpu.memory_space<vmem>>, vector<32x128xf32>
    tpu.vector_store %arg16[%c1_109, %c0_110], %145 {strides = array<i32>} : memref<34x128xf32, #tpu.memory_space<vmem>>, vector<32x128xf32>,
    %c0_111 = arith.constant 0 : index
    %c0_112 = arith.constant 0 : index
    %153 = tpu.strided_load %arg16[%c0_111, %c0_112] {strides = array<i32: 2, 1>} : memref<34x128xf32, #tpu.memory_space<vmem>>, vector<16x128xf32>
    %c1_113 = arith.constant 1 : index
    %c0_114 = arith.constant 0 : index
    %154 = tpu.strided_load %arg16[%c1_113, %c0_114] {strides = array<i32: 2, 1>} : memref<34x128xf32, #tpu.memory_space<vmem>>, vector<16x128xf32>
    %155 = arith.maximumf %153, %154 : vector<16x128xf32>
    %c2_115 = arith.constant 2 : index
    %c0_116 = arith.constant 0 : index
    %156 = tpu.strided_load %arg16[%c2_115, %c0_116] {strides = array<i32: 2, 1>} : memref<34x128xf32, #tpu.memory_space<vmem>>, vector<16x128xf32>
    %157 = arith.maximumf %155, %156 : vector<16x128xf32>
    %158 = tpu.iota {dimensions = array<i32: 1>} : vector<16x128xi32>
    %c4_i32 = arith.constant 4 : i32
    %159 = vector.broadcast %c4_i32 : i32 to vector<16x128xi32>
    %160 = arith.cmpi sge, %158, %159 : vector<16x128xi32>
    %c4_i32_117 = arith.constant 4 : i32
    %161 = tpu.dynamic_rotate %157 by %c4_i32_117 dim 1 : vector<16x128xf32>, i32 -> vector<16x128xf32>
    %cst_118 = arith.constant 0xFF800000 : f32
    %162 = vector.broadcast %cst_118 : f32 to vector<16x128xf32>
    %163 = arith.select %160, %161, %162 : vector<16x128xi1>, vector<16x128xf32>
    %c124_i32 = arith.constant 124 : i32
    %164 = vector.broadcast %c124_i32 : i32 to vector<16x128xi32>
    %165 = arith.cmpi slt, %158, %164 : vector<16x128xi32>
    %c124_i32_119 = arith.constant 124 : i32
    %166 = tpu.dynamic_rotate %157 by %c124_i32_119 dim 1 : vector<16x128xf32>, i32 -> vector<16x128xf32>
    %cst_120 = arith.constant 0xFF800000 : f32
    %167 = vector.broadcast %cst_120 : f32 to vector<16x128xf32>
    %168 = arith.select %165, %166, %167 : vector<16x128xi1>, vector<16x128xf32>
    %169 = arith.maximumf %163, %157 : vector<16x128xf32>
    %170 = arith.maximumf %169, %168 : vector<16x128xf32>
    %c0_121 = arith.constant 0 : index
    %c0_122 = arith.constant 0 : index
    %171 = vector.load %arg8[%c0_121, %c0_122] : memref<128x128xf32, #tpu.memory_space<vmem>>, vector<128x128xf32>
    %cst_123 = arith.constant dense<0.000000e+00> : vector<16x128xf32>
    %172 = tpu.matmul %170, %171, %cst_123 {dimension_numbers = #tpu.dot_dimension_numbers<[1], [0], [0], [1], [0, 0, 1, 1], [], []>} : vector<16x128xf32>, vector<128x128xf32>, vector<16x128xf32> -> vector<16x128xf32>
    %c0_124 = arith.constant 0 : index
    %c0_125 = arith.constant 0 : index
    %173 = vector.load %arg5[%c0_124, %c0_125] : memref<3x128xf32, #tpu.memory_space<vmem>>, vector<1x128xf32>
    %c1_126 = arith.constant 1 : index
    %c0_127 = arith.constant 0 : index
    %174 = vector.load %arg5[%c1_126, %c0_127] : memref<3x128xf32, #tpu.memory_space<vmem>>, vector<1x128xf32>
    %c2_128 = arith.constant 2 : index
    %c0_129 = arith.constant 0 : index
    %175 = vector.load %arg5[%c2_128, %c0_129] : memref<3x128xf32, #tpu.memory_space<vmem>>, vector<1x128xf32>
    %cst_130 = arith.constant 0.000000e+00 : f32
    %176 = vector.broadcast %cst_130 : f32 to vector<1x136xf32>
    %c0_131 = arith.constant 0 : index
    %c0_132 = arith.constant 0 : index
    %177 = vector.load %arg14[%c0_131, %c0_132] : memref<18x136xf32, #tpu.memory_space<vmem>>, vector<1x136xf32>
    tpu.vector_store %arg14[%c0_131, %c0_132], %176 {strides = array<i32>} : memref<18x136xf32, #tpu.memory_space<vmem>>, vector<1x136xf32>,
    %c17 = arith.constant 17 : index
    %c0_133 = arith.constant 0 : index
    %178 = vector.load %arg14[%c17, %c0_133] : memref<18x136xf32, #tpu.memory_space<vmem>>, vector<1x136xf32>
    tpu.vector_store %arg14[%c17, %c0_133], %176 {strides = array<i32>} : memref<18x136xf32, #tpu.memory_space<vmem>>, vector<1x136xf32>,
    %cst_134 = arith.constant 0.000000e+00 : f32
    %179 = vector.broadcast %cst_134 : f32 to vector<18x8xf32>
    %c0_135 = arith.constant 0 : index
    %c128_136 = arith.constant 128 : index
    %180 = vector.load %arg14[%c0_135, %c128_136] : memref<18x136xf32, #tpu.memory_space<vmem>>, vector<18x8xf32>
    tpu.vector_store %arg14[%c0_135, %c128_136], %179 {strides = array<i32>} : memref<18x136xf32, #tpu.memory_space<vmem>>, vector<18x8xf32>,
    %c1_137 = arith.constant 1 : index
    %c0_138 = arith.constant 0 : index
    %181 = vector.load %arg14[%c1_137, %c0_138] : memref<18x136xf32, #tpu.memory_space<vmem>>, vector<16x128xf32>
    tpu.vector_store %arg14[%c1_137, %c0_138], %172 {strides = array<i32>} : memref<18x136xf32, #tpu.memory_space<vmem>>, vector<16x128xf32>,
    %cst_139 = arith.constant 0.000000e+00 : f32
    %182 = vector.broadcast %cst_139 : f32 to vector<16x128xf32>
    %c0_140 = arith.constant 0 : index
    %c0_141 = arith.constant 0 : index
    %183 = vector.load %arg14[%c0_140, %c0_141] : memref<18x136xf32, #tpu.memory_space<vmem>>, vector<16x136xf32>
    %c0_142 = arith.constant 0 : index
    %c0_143 = arith.constant 0 : index
    %c0_144 = arith.constant 0 : index
    %c0_145 = arith.constant 0 : index
    %184 = vector.load %arg4[%c0_142, %c0_143, %c0_144, %c0_145] : memref<3x3x136x128xf32, #tpu.memory_space<vmem>>, vector<1x1x136x128xf32>
    %185 = vector.shape_cast %184 : vector<1x1x136x128xf32> to vector<136x128xf32>
    %cst_146 = arith.constant dense<0.000000e+00> : vector<16x128xf32>
    %186 = tpu.matmul %183, %185, %cst_146 {dimension_numbers = #tpu.dot_dimension_numbers<[1], [0], [0], [1], [0, 0, 1, 1], [], []>} : vector<16x136xf32>, vector<136x128xf32>, vector<16x128xf32> -> vector<16x128xf32>
    %187 = arith.addf %182, %186 : vector<16x128xf32>
    %c1_147 = arith.constant 1 : index
    %c0_148 = arith.constant 0 : index
    %188 = vector.load %arg14[%c1_147, %c0_148] : memref<18x136xf32, #tpu.memory_space<vmem>>, vector<16x136xf32>
    %c0_149 = arith.constant 0 : index
    %c1_150 = arith.constant 1 : index
    %c0_151 = arith.constant 0 : index
    %c0_152 = arith.constant 0 : index
    %189 = vector.load %arg4[%c0_149, %c1_150, %c0_151, %c0_152] : memref<3x3x136x128xf32, #tpu.memory_space<vmem>>, vector<1x1x136x128xf32>
    %190 = vector.shape_cast %189 : vector<1x1x136x128xf32> to vector<136x128xf32>
    %cst_153 = arith.constant dense<0.000000e+00> : vector<16x128xf32>
    %191 = tpu.matmul %188, %190, %cst_153 {dimension_numbers = #tpu.dot_dimension_numbers<[1], [0], [0], [1], [0, 0, 1, 1], [], []>} : vector<16x136xf32>, vector<136x128xf32>, vector<16x128xf32> -> vector<16x128xf32>
    %192 = arith.addf %187, %191 : vector<16x128xf32>
    %c2_154 = arith.constant 2 : index
    %c0_155 = arith.constant 0 : index
    %193 = vector.load %arg14[%c2_154, %c0_155] : memref<18x136xf32, #tpu.memory_space<vmem>>, vector<16x136xf32>
    %c0_156 = arith.constant 0 : index
    %c2_157 = arith.constant 2 : index
    %c0_158 = arith.constant 0 : index
    %c0_159 = arith.constant 0 : index
    %194 = vector.load %arg4[%c0_156, %c2_157, %c0_158, %c0_159] : memref<3x3x136x128xf32, #tpu.memory_space<vmem>>, vector<1x1x136x128xf32>
    %195 = vector.shape_cast %194 : vector<1x1x136x128xf32> to vector<136x128xf32>
    %cst_160 = arith.constant dense<0.000000e+00> : vector<16x128xf32>
    %196 = tpu.matmul %193, %195, %cst_160 {dimension_numbers = #tpu.dot_dimension_numbers<[1], [0], [0], [1], [0, 0, 1, 1], [], []>} : vector<16x136xf32>, vector<136x128xf32>, vector<16x128xf32> -> vector<16x128xf32>
    %197 = arith.addf %192, %196 : vector<16x128xf32>
    %198 = vector.shape_cast %197 : vector<16x128xf32> to vector<1x16x128xf32>
    %cst_161 = arith.constant dense<0.000000e+00> : vector<1xf32>
    %199 = vector.multi_reduction <add>, %198, %cst_161 [1, 2] : vector<1x16x128xf32> to vector<1xf32>
    %200 = vector.shape_cast %199 : vector<1xf32> to vector<1x1x1xf32>
    %201 = vector.extract %200[0, 0, 0] : f32 from vector<1x1x1xf32>
    %cst_162 = arith.constant 4.8828125E-4 : f32
    %202 = arith.mulf %201, %cst_162 : f32
    %203 = arith.mulf %197, %197 : vector<16x128xf32>
    %204 = vector.shape_cast %203 : vector<16x128xf32> to vector<1x16x128xf32>
    %cst_163 = arith.constant dense<0.000000e+00> : vector<1xf32>
    %205 = vector.multi_reduction <add>, %204, %cst_163 [1, 2] : vector<1x16x128xf32> to vector<1xf32>
    %206 = vector.shape_cast %205 : vector<1xf32> to vector<1x1x1xf32>
    %207 = vector.extract %206[0, 0, 0] : f32 from vector<1x1x1xf32>
    %cst_164 = arith.constant 4.8828125E-4 : f32
    %208 = arith.mulf %207, %cst_164 : f32
    %209 = arith.mulf %202, %202 : f32
    %210 = arith.subf %208, %209 : f32
    %cst_165 = arith.constant 9.99999974E-6 : f32
    %211 = arith.addf %210, %cst_165 : f32
    %212 = math.rsqrt %211 : f32
    %213 = vector.broadcast %212 : f32 to vector<1x128xf32>
    %214 = arith.mulf %213, %173 : vector<1x128xf32>
    %215 = vector.broadcast %202 : f32 to vector<16x128xf32>
    %216 = arith.subf %197, %215 : vector<16x128xf32>
    %217 = vector.broadcast %214 : vector<1x128xf32> to vector<16x128xf32>
    %218 = arith.mulf %216, %217 : vector<16x128xf32>
    %219 = vector.broadcast %174 : vector<1x128xf32> to vector<16x128xf32>
    %220 = arith.addf %218, %219 : vector<16x128xf32>
    %cst_166 = arith.constant 0.000000e+00 : f32
    %221 = vector.broadcast %cst_166 : f32 to vector<16x128xf32>
    %222 = arith.cmpf oge, %220, %221 : vector<16x128xf32>
    %223 = vector.broadcast %175 : vector<1x128xf32> to vector<16x128xf32>
    %224 = arith.mulf %223, %220 : vector<16x128xf32>
    %225 = arith.select %222, %220, %224 : vector<16x128xi1>, vector<16x128xf32>
    %c1_167 = arith.constant 1 : index
    %c0_168 = arith.constant 0 : index
    %226 = vector.load %arg14[%c1_167, %c0_168] : memref<18x136xf32, #tpu.memory_space<vmem>>, vector<16x128xf32>
    tpu.vector_store %arg14[%c1_167, %c0_168], %225 {strides = array<i32>} : memref<18x136xf32, #tpu.memory_space<vmem>>, vector<16x128xf32>,
    %cst_169 = arith.constant 0.000000e+00 : f32
    %227 = vector.broadcast %cst_169 : f32 to vector<16x128xf32>
    %c0_170 = arith.constant 0 : index
    %c0_171 = arith.constant 0 : index
    %228 = vector.load %arg14[%c0_170, %c0_171] : memref<18x136xf32, #tpu.memory_space<vmem>>, vector<16x136xf32>
    %c1_172 = arith.constant 1 : index
    %c0_173 = arith.constant 0 : index
    %c0_174 = arith.constant 0 : index
    %c0_175 = arith.constant 0 : index
    %229 = vector.load %arg4[%c1_172, %c0_173, %c0_174, %c0_175] : memref<3x3x136x128xf32, #tpu.memory_space<vmem>>, vector<1x1x136x128xf32>
    %230 = vector.shape_cast %229 : vector<1x1x136x128xf32> to vector<136x128xf32>
    %cst_176 = arith.constant dense<0.000000e+00> : vector<16x128xf32>
    %231 = tpu.matmul %228, %230, %cst_176 {dimension_numbers = #tpu.dot_dimension_numbers<[1], [0], [0], [1], [0, 0, 1, 1], [], []>} : vector<16x136xf32>, vector<136x128xf32>, vector<16x128xf32> -> vector<16x128xf32>
    %232 = arith.addf %227, %231 : vector<16x128xf32>
    %c1_177 = arith.constant 1 : index
    %c0_178 = arith.constant 0 : index
    %233 = vector.load %arg14[%c1_177, %c0_178] : memref<18x136xf32, #tpu.memory_space<vmem>>, vector<16x136xf32>
    %c1_179 = arith.constant 1 : index
    %c1_180 = arith.constant 1 : index
    %c0_181 = arith.constant 0 : index
    %c0_182 = arith.constant 0 : index
    %234 = vector.load %arg4[%c1_179, %c1_180, %c0_181, %c0_182] : memref<3x3x136x128xf32, #tpu.memory_space<vmem>>, vector<1x1x136x128xf32>
    %235 = vector.shape_cast %234 : vector<1x1x136x128xf32> to vector<136x128xf32>
    %cst_183 = arith.constant dense<0.000000e+00> : vector<16x128xf32>
    %236 = tpu.matmul %233, %235, %cst_183 {dimension_numbers = #tpu.dot_dimension_numbers<[1], [0], [0], [1], [0, 0, 1, 1], [], []>} : vector<16x136xf32>, vector<136x128xf32>, vector<16x128xf32> -> vector<16x128xf32>
    %237 = arith.addf %232, %236 : vector<16x128xf32>
    %c2_184 = arith.constant 2 : index
    %c0_185 = arith.constant 0 : index
    %238 = vector.load %arg14[%c2_184, %c0_185] : memref<18x136xf32, #tpu.memory_space<vmem>>, vector<16x136xf32>
    %c1_186 = arith.constant 1 : index
    %c2_187 = arith.constant 2 : index
    %c0_188 = arith.constant 0 : index
    %c0_189 = arith.constant 0 : index
    %239 = vector.load %arg4[%c1_186, %c2_187, %c0_188, %c0_189] : memref<3x3x136x128xf32, #tpu.memory_space<vmem>>, vector<1x1x136x128xf32>
    %240 = vector.shape_cast %239 : vector<1x1x136x128xf32> to vector<136x128xf32>
    %cst_190 = arith.constant dense<0.000000e+00> : vector<16x128xf32>
    %241 = tpu.matmul %238, %240, %cst_190 {dimension_numbers = #tpu.dot_dimension_numbers<[1], [0], [0], [1], [0, 0, 1, 1], [], []>} : vector<16x136xf32>, vector<136x128xf32>, vector<16x128xf32> -> vector<16x128xf32>
    %242 = arith.addf %237, %241 : vector<16x128xf32>
    %243 = vector.shape_cast %242 : vector<16x128xf32> to vector<1x16x128xf32>
    %cst_191 = arith.constant dense<0.000000e+00> : vector<1xf32>
    %244 = vector.multi_reduction <add>, %243, %cst_191 [1, 2] : vector<1x16x128xf32> to vector<1xf32>
    %245 = vector.shape_cast %244 : vector<1xf32> to vector<1x1x1xf32>
    %246 = vector.extract %245[0, 0, 0] : f32 from vector<1x1x1xf32>
    %cst_192 = arith.constant 4.8828125E-4 : f32
    %247 = arith.mulf %246, %cst_192 : f32
    %248 = arith.mulf %242, %242 : vector<16x128xf32>
    %249 = vector.shape_cast %248 : vector<16x128xf32> to vector<1x16x128xf32>
    %cst_193 = arith.constant dense<0.000000e+00> : vector<1xf32>
    %250 = vector.multi_reduction <add>, %249, %cst_193 [1, 2] : vector<1x16x128xf32> to vector<1xf32>
    %251 = vector.shape_cast %250 : vector<1xf32> to vector<1x1x1xf32>
    %252 = vector.extract %251[0, 0, 0] : f32 from vector<1x1x1xf32>
    %cst_194 = arith.constant 4.8828125E-4 : f32
    %253 = arith.mulf %252, %cst_194 : f32
    %254 = arith.mulf %247, %247 : f32
    %255 = arith.subf %253, %254 : f32
    %cst_195 = arith.constant 9.99999974E-6 : f32
    %256 = arith.addf %255, %cst_195 : f32
    %257 = math.rsqrt %256 : f32
    %258 = vector.broadcast %257 : f32 to vector<1x128xf32>
    %259 = arith.mulf %258, %173 : vector<1x128xf32>
    %260 = vector.broadcast %247 : f32 to vector<16x128xf32>
    %261 = arith.subf %242, %260 : vector<16x128xf32>
    %262 = vector.broadcast %259 : vector<1x128xf32> to vector<16x128xf32>
    %263 = arith.mulf %261, %262 : vector<16x128xf32>
    %264 = vector.broadcast %174 : vector<1x128xf32> to vector<16x128xf32>
    %265 = arith.addf %263, %264 : vector<16x128xf32>
    %cst_196 = arith.constant 0.000000e+00 : f32
    %266 = vector.broadcast %cst_196 : f32 to vector<16x128xf32>
    %267 = arith.cmpf oge, %265, %266 : vector<16x128xf32>
    %268 = vector.broadcast %175 : vector<1x128xf32> to vector<16x128xf32>
    %269 = arith.mulf %268, %265 : vector<16x128xf32>
    %270 = arith.select %267, %265, %269 : vector<16x128xi1>, vector<16x128xf32>
    %c1_197 = arith.constant 1 : index
    %c0_198 = arith.constant 0 : index
    %271 = vector.load %arg14[%c1_197, %c0_198] : memref<18x136xf32, #tpu.memory_space<vmem>>, vector<16x128xf32>
    tpu.vector_store %arg14[%c1_197, %c0_198], %270 {strides = array<i32>} : memref<18x136xf32, #tpu.memory_space<vmem>>, vector<16x128xf32>,
    %cst_199 = arith.constant 0.000000e+00 : f32
    %272 = vector.broadcast %cst_199 : f32 to vector<16x128xf32>
    %c0_200 = arith.constant 0 : index
    %c0_201 = arith.constant 0 : index
    %273 = vector.load %arg14[%c0_200, %c0_201] : memref<18x136xf32, #tpu.memory_space<vmem>>, vector<16x136xf32>
    %c2_202 = arith.constant 2 : index
    %c0_203 = arith.constant 0 : index
    %c0_204 = arith.constant 0 : index
    %c0_205 = arith.constant 0 : index
    %274 = vector.load %arg4[%c2_202, %c0_203, %c0_204, %c0_205] : memref<3x3x136x128xf32, #tpu.memory_space<vmem>>, vector<1x1x136x128xf32>
    %275 = vector.shape_cast %274 : vector<1x1x136x128xf32> to vector<136x128xf32>
    %cst_206 = arith.constant dense<0.000000e+00> : vector<16x128xf32>
    %276 = tpu.matmul %273, %275, %cst_206 {dimension_numbers = #tpu.dot_dimension_numbers<[1], [0], [0], [1], [0, 0, 1, 1], [], []>} : vector<16x136xf32>, vector<136x128xf32>, vector<16x128xf32> -> vector<16x128xf32>
    %277 = arith.addf %272, %276 : vector<16x128xf32>
    %c1_207 = arith.constant 1 : index
    %c0_208 = arith.constant 0 : index
    %278 = vector.load %arg14[%c1_207, %c0_208] : memref<18x136xf32, #tpu.memory_space<vmem>>, vector<16x136xf32>
    %c2_209 = arith.constant 2 : index
    %c1_210 = arith.constant 1 : index
    %c0_211 = arith.constant 0 : index
    %c0_212 = arith.constant 0 : index
    %279 = vector.load %arg4[%c2_209, %c1_210, %c0_211, %c0_212] : memref<3x3x136x128xf32, #tpu.memory_space<vmem>>, vector<1x1x136x128xf32>
    %280 = vector.shape_cast %279 : vector<1x1x136x128xf32> to vector<136x128xf32>
    %cst_213 = arith.constant dense<0.000000e+00> : vector<16x128xf32>
    %281 = tpu.matmul %278, %280, %cst_213 {dimension_numbers = #tpu.dot_dimension_numbers<[1], [0], [0], [1], [0, 0, 1, 1], [], []>} : vector<16x136xf32>, vector<136x128xf32>, vector<16x128xf32> -> vector<16x128xf32>
    %282 = arith.addf %277, %281 : vector<16x128xf32>
    %c2_214 = arith.constant 2 : index
    %c0_215 = arith.constant 0 : index
    %283 = vector.load %arg14[%c2_214, %c0_215] : memref<18x136xf32, #tpu.memory_space<vmem>>, vector<16x136xf32>
    %c2_216 = arith.constant 2 : index
    %c2_217 = arith.constant 2 : index
    %c0_218 = arith.constant 0 : index
    %c0_219 = arith.constant 0 : index
    %284 = vector.load %arg4[%c2_216, %c2_217, %c0_218, %c0_219] : memref<3x3x136x128xf32, #tpu.memory_space<vmem>>, vector<1x1x136x128xf32>
    %285 = vector.shape_cast %284 : vector<1x1x136x128xf32> to vector<136x128xf32>
    %cst_220 = arith.constant dense<0.000000e+00> : vector<16x128xf32>
    %286 = tpu.matmul %283, %285, %cst_220 {dimension_numbers = #tpu.dot_dimension_numbers<[1], [0], [0], [1], [0, 0, 1, 1], [], []>} : vector<16x136xf32>, vector<136x128xf32>, vector<16x128xf32> -> vector<16x128xf32>
    %287 = arith.addf %282, %286 : vector<16x128xf32>
    %288 = vector.shape_cast %287 : vector<16x128xf32> to vector<1x16x128xf32>
    %cst_221 = arith.constant dense<0.000000e+00> : vector<1xf32>
    %289 = vector.multi_reduction <add>, %288, %cst_221 [1, 2] : vector<1x16x128xf32> to vector<1xf32>
    %290 = vector.shape_cast %289 : vector<1xf32> to vector<1x1x1xf32>
    %291 = vector.extract %290[0, 0, 0] : f32 from vector<1x1x1xf32>
    %cst_222 = arith.constant 4.8828125E-4 : f32
    %292 = arith.mulf %291, %cst_222 : f32
    %293 = arith.mulf %287, %287 : vector<16x128xf32>
    %294 = vector.shape_cast %293 : vector<16x128xf32> to vector<1x16x128xf32>
    %cst_223 = arith.constant dense<0.000000e+00> : vector<1xf32>
    %295 = vector.multi_reduction <add>, %294, %cst_223 [1, 2] : vector<1x16x128xf32> to vector<1xf32>
    %296 = vector.shape_cast %295 : vector<1xf32> to vector<1x1x1xf32>
    %297 = vector.extract %296[0, 0, 0] : f32 from vector<1x1x1xf32>
    %cst_224 = arith.constant 4.8828125E-4 : f32
    %298 = arith.mulf %297, %cst_224 : f32
    %299 = arith.mulf %292, %292 : f32
    %300 = arith.subf %298, %299 : f32
    %cst_225 = arith.constant 9.99999974E-6 : f32
    %301 = arith.addf %300, %cst_225 : f32
    %302 = math.rsqrt %301 : f32
    %303 = vector.broadcast %302 : f32 to vector<1x128xf32>
    %304 = arith.mulf %303, %173 : vector<1x128xf32>
    %305 = vector.broadcast %292 : f32 to vector<16x128xf32>
    %306 = arith.subf %287, %305 : vector<16x128xf32>
    %307 = vector.broadcast %304 : vector<1x128xf32> to vector<16x128xf32>
    %308 = arith.mulf %306, %307 : vector<16x128xf32>
    %309 = vector.broadcast %174 : vector<1x128xf32> to vector<16x128xf32>
    %310 = arith.addf %308, %309 : vector<16x128xf32>
    %311 = arith.addf %310, %172 : vector<16x128xf32>
    %cst_226 = arith.constant 0.000000e+00 : f32
    %312 = vector.broadcast %cst_226 : f32 to vector<16x128xf32>
    %313 = arith.cmpf oge, %311, %312 : vector<16x128xf32>
    %314 = vector.broadcast %175 : vector<1x128xf32> to vector<16x128xf32>
    %315 = arith.mulf %314, %311 : vector<16x128xf32>
    %316 = arith.select %313, %311, %315 : vector<16x128xi1>, vector<16x128xf32>
    %c0_227 = arith.constant 0 : index
    %c0_228 = arith.constant 0 : index
    %c0_229 = arith.constant 0 : index
    %317 = vector.load %arg11[%c0_227, %c0_228, %c0_229] : memref<1x16x128xf32, #tpu.memory_space<vmem>>, vector<1x16x128xf32>
    %318 = vector.shape_cast %317 : vector<1x16x128xf32> to vector<16x128xf32>
    %319 = vector.shape_cast %316 : vector<16x128xf32> to vector<1x16x128xf32>
    tpu.vector_store %arg11[%c0_227, %c0_228, %c0_229], %319 {strides = array<i32>} : memref<1x16x128xf32, #tpu.memory_space<vmem>>, vector<1x16x128xf32>,
    %cst_230 = arith.constant 0xFF800000 : f32
    %320 = vector.broadcast %cst_230 : f32 to vector<1x128xf32>
    %c0_231 = arith.constant 0 : index
    %c0_232 = arith.constant 0 : index
    %321 = vector.load %arg17[%c0_231, %c0_232] : memref<18x128xf32, #tpu.memory_space<vmem>>, vector<1x128xf32>
    tpu.vector_store %arg17[%c0_231, %c0_232], %320 {strides = array<i32>} : memref<18x128xf32, #tpu.memory_space<vmem>>, vector<1x128xf32>,
    %c17_233 = arith.constant 17 : index
    %c0_234 = arith.constant 0 : index
    %322 = vector.load %arg17[%c17_233, %c0_234] : memref<18x128xf32, #tpu.memory_space<vmem>>, vector<1x128xf32>
    tpu.vector_store %arg17[%c17_233, %c0_234], %320 {strides = array<i32>} : memref<18x128xf32, #tpu.memory_space<vmem>>, vector<1x128xf32>,
    %c1_235 = arith.constant 1 : index
    %c0_236 = arith.constant 0 : index
    %323 = vector.load %arg17[%c1_235, %c0_236] : memref<18x128xf32, #tpu.memory_space<vmem>>, vector<16x128xf32>
    tpu.vector_store %arg17[%c1_235, %c0_236], %316 {strides = array<i32>} : memref<18x128xf32, #tpu.memory_space<vmem>>, vector<16x128xf32>,
    %c0_237 = arith.constant 0 : index
    %c0_238 = arith.constant 0 : index
    %324 = tpu.strided_load %arg17[%c0_237, %c0_238] {strides = array<i32: 2, 1>} : memref<18x128xf32, #tpu.memory_space<vmem>>, vector<8x128xf32>
    %c1_239 = arith.constant 1 : index
    %c0_240 = arith.constant 0 : index
    %325 = tpu.strided_load %arg17[%c1_239, %c0_240] {strides = array<i32: 2, 1>} : memref<18x128xf32, #tpu.memory_space<vmem>>, vector<8x128xf32>
    %326 = arith.maximumf %324, %325 : vector<8x128xf32>
    %c2_241 = arith.constant 2 : index
    %c0_242 = arith.constant 0 : index
    %327 = tpu.strided_load %arg17[%c2_241, %c0_242] {strides = array<i32: 2, 1>} : memref<18x128xf32, #tpu.memory_space<vmem>>, vector<8x128xf32>
    %328 = arith.maximumf %326, %327 : vector<8x128xf32>
    %329 = tpu.iota {dimensions = array<i32: 1>} : vector<8x128xi32>
    %c8_i32 = arith.constant 8 : i32
    %330 = vector.broadcast %c8_i32 : i32 to vector<8x128xi32>
    %331 = arith.cmpi sge, %329, %330 : vector<8x128xi32>
    %c8_i32_243 = arith.constant 8 : i32
    %332 = tpu.dynamic_rotate %328 by %c8_i32_243 dim 1 : vector<8x128xf32>, i32 -> vector<8x128xf32>
    %cst_244 = arith.constant 0xFF800000 : f32
    %333 = vector.broadcast %cst_244 : f32 to vector<8x128xf32>
    %334 = arith.select %331, %332, %333 : vector<8x128xi1>, vector<8x128xf32>
    %c120_i32 = arith.constant 120 : i32
    %335 = vector.broadcast %c120_i32 : i32 to vector<8x128xi32>
    %336 = arith.cmpi slt, %329, %335 : vector<8x128xi32>
    %c120_i32_245 = arith.constant 120 : i32
    %337 = tpu.dynamic_rotate %328 by %c120_i32_245 dim 1 : vector<8x128xf32>, i32 -> vector<8x128xf32>
    %cst_246 = arith.constant 0xFF800000 : f32
    %338 = vector.broadcast %cst_246 : f32 to vector<8x128xf32>
    %339 = arith.select %336, %337, %338 : vector<8x128xi1>, vector<8x128xf32>
    %340 = arith.maximumf %334, %328 : vector<8x128xf32>
    %341 = arith.maximumf %340, %339 : vector<8x128xf32>
    %c0_247 = arith.constant 0 : index
    %c0_248 = arith.constant 0 : index
    %342 = vector.load %arg9[%c0_247, %c0_248] : memref<128x128xf32, #tpu.memory_space<vmem>>, vector<128x128xf32>
    %cst_249 = arith.constant dense<0.000000e+00> : vector<8x128xf32>
    %343 = tpu.matmul %341, %342, %cst_249 {dimension_numbers = #tpu.dot_dimension_numbers<[1], [0], [0], [1], [0, 0, 1, 1], [], []>} : vector<8x128xf32>, vector<128x128xf32>, vector<8x128xf32> -> vector<8x128xf32>
    %c0_250 = arith.constant 0 : index
    %c0_251 = arith.constant 0 : index
    %344 = vector.load %arg7[%c0_250, %c0_251] : memref<3x128xf32, #tpu.memory_space<vmem>>, vector<1x128xf32>
    %c1_252 = arith.constant 1 : index
    %c0_253 = arith.constant 0 : index
    %345 = vector.load %arg7[%c1_252, %c0_253] : memref<3x128xf32, #tpu.memory_space<vmem>>, vector<1x128xf32>
    %c2_254 = arith.constant 2 : index
    %c0_255 = arith.constant 0 : index
    %346 = vector.load %arg7[%c2_254, %c0_255] : memref<3x128xf32, #tpu.memory_space<vmem>>, vector<1x128xf32>
    %cst_256 = arith.constant 0.000000e+00 : f32
    %347 = vector.broadcast %cst_256 : f32 to vector<1x144xf32>
    %c0_257 = arith.constant 0 : index
    %c0_258 = arith.constant 0 : index
    %348 = vector.load %arg15[%c0_257, %c0_258] : memref<10x144xf32, #tpu.memory_space<vmem>>, vector<1x144xf32>
    tpu.vector_store %arg15[%c0_257, %c0_258], %347 {strides = array<i32>} : memref<10x144xf32, #tpu.memory_space<vmem>>, vector<1x144xf32>,
    %c9 = arith.constant 9 : index
    %c0_259 = arith.constant 0 : index
    %349 = vector.load %arg15[%c9, %c0_259] : memref<10x144xf32, #tpu.memory_space<vmem>>, vector<1x144xf32>
    tpu.vector_store %arg15[%c9, %c0_259], %347 {strides = array<i32>} : memref<10x144xf32, #tpu.memory_space<vmem>>, vector<1x144xf32>,
    %cst_260 = arith.constant 0.000000e+00 : f32
    %350 = vector.broadcast %cst_260 : f32 to vector<10x16xf32>
    %c0_261 = arith.constant 0 : index
    %c128_262 = arith.constant 128 : index
    %351 = vector.load %arg15[%c0_261, %c128_262] : memref<10x144xf32, #tpu.memory_space<vmem>>, vector<10x16xf32>
    tpu.vector_store %arg15[%c0_261, %c128_262], %350 {strides = array<i32>} : memref<10x144xf32, #tpu.memory_space<vmem>>, vector<10x16xf32>,
    %c1_263 = arith.constant 1 : index
    %c0_264 = arith.constant 0 : index
    %352 = vector.load %arg15[%c1_263, %c0_264] : memref<10x144xf32, #tpu.memory_space<vmem>>, vector<8x128xf32>
    tpu.vector_store %arg15[%c1_263, %c0_264], %343 {strides = array<i32>} : memref<10x144xf32, #tpu.memory_space<vmem>>, vector<8x128xf32>,
    %cst_265 = arith.constant 0.000000e+00 : f32
    %353 = vector.broadcast %cst_265 : f32 to vector<8x128xf32>
    %c0_266 = arith.constant 0 : index
    %c0_267 = arith.constant 0 : index
    %354 = vector.load %arg15[%c0_266, %c0_267] : memref<10x144xf32, #tpu.memory_space<vmem>>, vector<8x144xf32>
    %c0_268 = arith.constant 0 : index
    %c0_269 = arith.constant 0 : index
    %c0_270 = arith.constant 0 : index
    %c0_271 = arith.constant 0 : index
    %355 = vector.load %arg6[%c0_268, %c0_269, %c0_270, %c0_271] : memref<3x3x144x128xf32, #tpu.memory_space<vmem>>, vector<1x1x144x128xf32>
    %356 = vector.shape_cast %355 : vector<1x1x144x128xf32> to vector<144x128xf32>
    %cst_272 = arith.constant dense<0.000000e+00> : vector<8x128xf32>
    %357 = tpu.matmul %354, %356, %cst_272 {dimension_numbers = #tpu.dot_dimension_numbers<[1], [0], [0], [1], [0, 0, 1, 1], [], []>} : vector<8x144xf32>, vector<144x128xf32>, vector<8x128xf32> -> vector<8x128xf32>
    %358 = arith.addf %353, %357 : vector<8x128xf32>
    %c1_273 = arith.constant 1 : index
    %c0_274 = arith.constant 0 : index
    %359 = vector.load %arg15[%c1_273, %c0_274] : memref<10x144xf32, #tpu.memory_space<vmem>>, vector<8x144xf32>
    %c0_275 = arith.constant 0 : index
    %c1_276 = arith.constant 1 : index
    %c0_277 = arith.constant 0 : index
    %c0_278 = arith.constant 0 : index
    %360 = vector.load %arg6[%c0_275, %c1_276, %c0_277, %c0_278] : memref<3x3x144x128xf32, #tpu.memory_space<vmem>>, vector<1x1x144x128xf32>
    %361 = vector.shape_cast %360 : vector<1x1x144x128xf32> to vector<144x128xf32>
    %cst_279 = arith.constant dense<0.000000e+00> : vector<8x128xf32>
    %362 = tpu.matmul %359, %361, %cst_279 {dimension_numbers = #tpu.dot_dimension_numbers<[1], [0], [0], [1], [0, 0, 1, 1], [], []>} : vector<8x144xf32>, vector<144x128xf32>, vector<8x128xf32> -> vector<8x128xf32>
    %363 = arith.addf %358, %362 : vector<8x128xf32>
    %c2_280 = arith.constant 2 : index
    %c0_281 = arith.constant 0 : index
    %364 = vector.load %arg15[%c2_280, %c0_281] : memref<10x144xf32, #tpu.memory_space<vmem>>, vector<8x144xf32>
    %c0_282 = arith.constant 0 : index
    %c2_283 = arith.constant 2 : index
    %c0_284 = arith.constant 0 : index
    %c0_285 = arith.constant 0 : index
    %365 = vector.load %arg6[%c0_282, %c2_283, %c0_284, %c0_285] : memref<3x3x144x128xf32, #tpu.memory_space<vmem>>, vector<1x1x144x128xf32>
    %366 = vector.shape_cast %365 : vector<1x1x144x128xf32> to vector<144x128xf32>
    %cst_286 = arith.constant dense<0.000000e+00> : vector<8x128xf32>
    %367 = tpu.matmul %364, %366, %cst_286 {dimension_numbers = #tpu.dot_dimension_numbers<[1], [0], [0], [1], [0, 0, 1, 1], [], []>} : vector<8x144xf32>, vector<144x128xf32>, vector<8x128xf32> -> vector<8x128xf32>
    %368 = arith.addf %363, %367 : vector<8x128xf32>
    %369 = vector.shape_cast %368 : vector<8x128xf32> to vector<1x8x128xf32>
    %cst_287 = arith.constant dense<0.000000e+00> : vector<1xf32>
    %370 = vector.multi_reduction <add>, %369, %cst_287 [1, 2] : vector<1x8x128xf32> to vector<1xf32>
    %371 = vector.shape_cast %370 : vector<1xf32> to vector<1x1x1xf32>
    %372 = vector.extract %371[0, 0, 0] : f32 from vector<1x1x1xf32>
    %cst_288 = arith.constant 9.765625E-4 : f32
    %373 = arith.mulf %372, %cst_288 : f32
    %374 = arith.mulf %368, %368 : vector<8x128xf32>
    %375 = vector.shape_cast %374 : vector<8x128xf32> to vector<1x8x128xf32>
    %cst_289 = arith.constant dense<0.000000e+00> : vector<1xf32>
    %376 = vector.multi_reduction <add>, %375, %cst_289 [1, 2] : vector<1x8x128xf32> to vector<1xf32>
    %377 = vector.shape_cast %376 : vector<1xf32> to vector<1x1x1xf32>
    %378 = vector.extract %377[0, 0, 0] : f32 from vector<1x1x1xf32>
    %cst_290 = arith.constant 9.765625E-4 : f32
    %379 = arith.mulf %378, %cst_290 : f32
    %380 = arith.mulf %373, %373 : f32
    %381 = arith.subf %379, %380 : f32
    %cst_291 = arith.constant 9.99999974E-6 : f32
    %382 = arith.addf %381, %cst_291 : f32
    %383 = math.rsqrt %382 : f32
    %384 = vector.broadcast %383 : f32 to vector<1x128xf32>
    %385 = arith.mulf %384, %344 : vector<1x128xf32>
    %386 = vector.broadcast %373 : f32 to vector<8x128xf32>
    %387 = arith.subf %368, %386 : vector<8x128xf32>
    %388 = vector.broadcast %385 : vector<1x128xf32> to vector<8x128xf32>
    %389 = arith.mulf %387, %388 : vector<8x128xf32>
    %390 = vector.broadcast %345 : vector<1x128xf32> to vector<8x128xf32>
    %391 = arith.addf %389, %390 : vector<8x128xf32>
    %cst_292 = arith.constant 0.000000e+00 : f32
    %392 = vector.broadcast %cst_292 : f32 to vector<8x128xf32>
    %393 = arith.cmpf oge, %391, %392 : vector<8x128xf32>
    %394 = vector.broadcast %346 : vector<1x128xf32> to vector<8x128xf32>
    %395 = arith.mulf %394, %391 : vector<8x128xf32>
    %396 = arith.select %393, %391, %395 : vector<8x128xi1>, vector<8x128xf32>
    %c1_293 = arith.constant 1 : index
    %c0_294 = arith.constant 0 : index
    %397 = vector.load %arg15[%c1_293, %c0_294] : memref<10x144xf32, #tpu.memory_space<vmem>>, vector<8x128xf32>
    tpu.vector_store %arg15[%c1_293, %c0_294], %396 {strides = array<i32>} : memref<10x144xf32, #tpu.memory_space<vmem>>, vector<8x128xf32>,
    %cst_295 = arith.constant 0.000000e+00 : f32
    %398 = vector.broadcast %cst_295 : f32 to vector<8x128xf32>
    %c0_296 = arith.constant 0 : index
    %c0_297 = arith.constant 0 : index
    %399 = vector.load %arg15[%c0_296, %c0_297] : memref<10x144xf32, #tpu.memory_space<vmem>>, vector<8x144xf32>
    %c1_298 = arith.constant 1 : index
    %c0_299 = arith.constant 0 : index
    %c0_300 = arith.constant 0 : index
    %c0_301 = arith.constant 0 : index
    %400 = vector.load %arg6[%c1_298, %c0_299, %c0_300, %c0_301] : memref<3x3x144x128xf32, #tpu.memory_space<vmem>>, vector<1x1x144x128xf32>
    %401 = vector.shape_cast %400 : vector<1x1x144x128xf32> to vector<144x128xf32>
    %cst_302 = arith.constant dense<0.000000e+00> : vector<8x128xf32>
    %402 = tpu.matmul %399, %401, %cst_302 {dimension_numbers = #tpu.dot_dimension_numbers<[1], [0], [0], [1], [0, 0, 1, 1], [], []>} : vector<8x144xf32>, vector<144x128xf32>, vector<8x128xf32> -> vector<8x128xf32>
    %403 = arith.addf %398, %402 : vector<8x128xf32>
    %c1_303 = arith.constant 1 : index
    %c0_304 = arith.constant 0 : index
    %404 = vector.load %arg15[%c1_303, %c0_304] : memref<10x144xf32, #tpu.memory_space<vmem>>, vector<8x144xf32>
    %c1_305 = arith.constant 1 : index
    %c1_306 = arith.constant 1 : index
    %c0_307 = arith.constant 0 : index
    %c0_308 = arith.constant 0 : index
    %405 = vector.load %arg6[%c1_305, %c1_306, %c0_307, %c0_308] : memref<3x3x144x128xf32, #tpu.memory_space<vmem>>, vector<1x1x144x128xf32>
    %406 = vector.shape_cast %405 : vector<1x1x144x128xf32> to vector<144x128xf32>
    %cst_309 = arith.constant dense<0.000000e+00> : vector<8x128xf32>
    %407 = tpu.matmul %404, %406, %cst_309 {dimension_numbers = #tpu.dot_dimension_numbers<[1], [0], [0], [1], [0, 0, 1, 1], [], []>} : vector<8x144xf32>, vector<144x128xf32>, vector<8x128xf32> -> vector<8x128xf32>
    %408 = arith.addf %403, %407 : vector<8x128xf32>
    %c2_310 = arith.constant 2 : index
    %c0_311 = arith.constant 0 : index
    %409 = vector.load %arg15[%c2_310, %c0_311] : memref<10x144xf32, #tpu.memory_space<vmem>>, vector<8x144xf32>
    %c1_312 = arith.constant 1 : index
    %c2_313 = arith.constant 2 : index
    %c0_314 = arith.constant 0 : index
    %c0_315 = arith.constant 0 : index
    %410 = vector.load %arg6[%c1_312, %c2_313, %c0_314, %c0_315] : memref<3x3x144x128xf32, #tpu.memory_space<vmem>>, vector<1x1x144x128xf32>
    %411 = vector.shape_cast %410 : vector<1x1x144x128xf32> to vector<144x128xf32>
    %cst_316 = arith.constant dense<0.000000e+00> : vector<8x128xf32>
    %412 = tpu.matmul %409, %411, %cst_316 {dimension_numbers = #tpu.dot_dimension_numbers<[1], [0], [0], [1], [0, 0, 1, 1], [], []>} : vector<8x144xf32>, vector<144x128xf32>, vector<8x128xf32> -> vector<8x128xf32>
    %413 = arith.addf %408, %412 : vector<8x128xf32>
    %414 = vector.shape_cast %413 : vector<8x128xf32> to vector<1x8x128xf32>
    %cst_317 = arith.constant dense<0.000000e+00> : vector<1xf32>
    %415 = vector.multi_reduction <add>, %414, %cst_317 [1, 2] : vector<1x8x128xf32> to vector<1xf32>
    %416 = vector.shape_cast %415 : vector<1xf32> to vector<1x1x1xf32>
    %417 = vector.extract %416[0, 0, 0] : f32 from vector<1x1x1xf32>
    %cst_318 = arith.constant 9.765625E-4 : f32
    %418 = arith.mulf %417, %cst_318 : f32
    %419 = arith.mulf %413, %413 : vector<8x128xf32>
    %420 = vector.shape_cast %419 : vector<8x128xf32> to vector<1x8x128xf32>
    %cst_319 = arith.constant dense<0.000000e+00> : vector<1xf32>
    %421 = vector.multi_reduction <add>, %420, %cst_319 [1, 2] : vector<1x8x128xf32> to vector<1xf32>
    %422 = vector.shape_cast %421 : vector<1xf32> to vector<1x1x1xf32>
    %423 = vector.extract %422[0, 0, 0] : f32 from vector<1x1x1xf32>
    %cst_320 = arith.constant 9.765625E-4 : f32
    %424 = arith.mulf %423, %cst_320 : f32
    %425 = arith.mulf %418, %418 : f32
    %426 = arith.subf %424, %425 : f32
    %cst_321 = arith.constant 9.99999974E-6 : f32
    %427 = arith.addf %426, %cst_321 : f32
    %428 = math.rsqrt %427 : f32
    %429 = vector.broadcast %428 : f32 to vector<1x128xf32>
    %430 = arith.mulf %429, %344 : vector<1x128xf32>
    %431 = vector.broadcast %418 : f32 to vector<8x128xf32>
    %432 = arith.subf %413, %431 : vector<8x128xf32>
    %433 = vector.broadcast %430 : vector<1x128xf32> to vector<8x128xf32>
    %434 = arith.mulf %432, %433 : vector<8x128xf32>
    %435 = vector.broadcast %345 : vector<1x128xf32> to vector<8x128xf32>
    %436 = arith.addf %434, %435 : vector<8x128xf32>
    %cst_322 = arith.constant 0.000000e+00 : f32
    %437 = vector.broadcast %cst_322 : f32 to vector<8x128xf32>
    %438 = arith.cmpf oge, %436, %437 : vector<8x128xf32>
    %439 = vector.broadcast %346 : vector<1x128xf32> to vector<8x128xf32>
    %440 = arith.mulf %439, %436 : vector<8x128xf32>
    %441 = arith.select %438, %436, %440 : vector<8x128xi1>, vector<8x128xf32>
    %c1_323 = arith.constant 1 : index
    %c0_324 = arith.constant 0 : index
    %442 = vector.load %arg15[%c1_323, %c0_324] : memref<10x144xf32, #tpu.memory_space<vmem>>, vector<8x128xf32>
    tpu.vector_store %arg15[%c1_323, %c0_324], %441 {strides = array<i32>} : memref<10x144xf32, #tpu.memory_space<vmem>>, vector<8x128xf32>,
    %cst_325 = arith.constant 0.000000e+00 : f32
    %443 = vector.broadcast %cst_325 : f32 to vector<8x128xf32>
    %c0_326 = arith.constant 0 : index
    %c0_327 = arith.constant 0 : index
    %444 = vector.load %arg15[%c0_326, %c0_327] : memref<10x144xf32, #tpu.memory_space<vmem>>, vector<8x144xf32>
    %c2_328 = arith.constant 2 : index
    %c0_329 = arith.constant 0 : index
    %c0_330 = arith.constant 0 : index
    %c0_331 = arith.constant 0 : index
    %445 = vector.load %arg6[%c2_328, %c0_329, %c0_330, %c0_331] : memref<3x3x144x128xf32, #tpu.memory_space<vmem>>, vector<1x1x144x128xf32>
    %446 = vector.shape_cast %445 : vector<1x1x144x128xf32> to vector<144x128xf32>
    %cst_332 = arith.constant dense<0.000000e+00> : vector<8x128xf32>
    %447 = tpu.matmul %444, %446, %cst_332 {dimension_numbers = #tpu.dot_dimension_numbers<[1], [0], [0], [1], [0, 0, 1, 1], [], []>} : vector<8x144xf32>, vector<144x128xf32>, vector<8x128xf32> -> vector<8x128xf32>
    %448 = arith.addf %443, %447 : vector<8x128xf32>
    %c1_333 = arith.constant 1 : index
    %c0_334 = arith.constant 0 : index
    %449 = vector.load %arg15[%c1_333, %c0_334] : memref<10x144xf32, #tpu.memory_space<vmem>>, vector<8x144xf32>
    %c2_335 = arith.constant 2 : index
    %c1_336 = arith.constant 1 : index
    %c0_337 = arith.constant 0 : index
    %c0_338 = arith.constant 0 : index
    %450 = vector.load %arg6[%c2_335, %c1_336, %c0_337, %c0_338] : memref<3x3x144x128xf32, #tpu.memory_space<vmem>>, vector<1x1x144x128xf32>
    %451 = vector.shape_cast %450 : vector<1x1x144x128xf32> to vector<144x128xf32>
    %cst_339 = arith.constant dense<0.000000e+00> : vector<8x128xf32>
    %452 = tpu.matmul %449, %451, %cst_339 {dimension_numbers = #tpu.dot_dimension_numbers<[1], [0], [0], [1], [0, 0, 1, 1], [], []>} : vector<8x144xf32>, vector<144x128xf32>, vector<8x128xf32> -> vector<8x128xf32>
    %453 = arith.addf %448, %452 : vector<8x128xf32>
    %c2_340 = arith.constant 2 : index
    %c0_341 = arith.constant 0 : index
    %454 = vector.load %arg15[%c2_340, %c0_341] : memref<10x144xf32, #tpu.memory_space<vmem>>, vector<8x144xf32>
    %c2_342 = arith.constant 2 : index
    %c2_343 = arith.constant 2 : index
    %c0_344 = arith.constant 0 : index
    %c0_345 = arith.constant 0 : index
    %455 = vector.load %arg6[%c2_342, %c2_343, %c0_344, %c0_345] : memref<3x3x144x128xf32, #tpu.memory_space<vmem>>, vector<1x1x144x128xf32>
    %456 = vector.shape_cast %455 : vector<1x1x144x128xf32> to vector<144x128xf32>
    %cst_346 = arith.constant dense<0.000000e+00> : vector<8x128xf32>
    %457 = tpu.matmul %454, %456, %cst_346 {dimension_numbers = #tpu.dot_dimension_numbers<[1], [0], [0], [1], [0, 0, 1, 1], [], []>} : vector<8x144xf32>, vector<144x128xf32>, vector<8x128xf32> -> vector<8x128xf32>
    %458 = arith.addf %453, %457 : vector<8x128xf32>
    %459 = vector.shape_cast %458 : vector<8x128xf32> to vector<1x8x128xf32>
    %cst_347 = arith.constant dense<0.000000e+00> : vector<1xf32>
    %460 = vector.multi_reduction <add>, %459, %cst_347 [1, 2] : vector<1x8x128xf32> to vector<1xf32>
    %461 = vector.shape_cast %460 : vector<1xf32> to vector<1x1x1xf32>
    %462 = vector.extract %461[0, 0, 0] : f32 from vector<1x1x1xf32>
    %cst_348 = arith.constant 9.765625E-4 : f32
    %463 = arith.mulf %462, %cst_348 : f32
    %464 = arith.mulf %458, %458 : vector<8x128xf32>
    %465 = vector.shape_cast %464 : vector<8x128xf32> to vector<1x8x128xf32>
    %cst_349 = arith.constant dense<0.000000e+00> : vector<1xf32>
    %466 = vector.multi_reduction <add>, %465, %cst_349 [1, 2] : vector<1x8x128xf32> to vector<1xf32>
    %467 = vector.shape_cast %466 : vector<1xf32> to vector<1x1x1xf32>
    %468 = vector.extract %467[0, 0, 0] : f32 from vector<1x1x1xf32>
    %cst_350 = arith.constant 9.765625E-4 : f32
    %469 = arith.mulf %468, %cst_350 : f32
    %470 = arith.mulf %463, %463 : f32
    %471 = arith.subf %469, %470 : f32
    %cst_351 = arith.constant 9.99999974E-6 : f32
    %472 = arith.addf %471, %cst_351 : f32
    %473 = math.rsqrt %472 : f32
    %474 = vector.broadcast %473 : f32 to vector<1x128xf32>
    %475 = arith.mulf %474, %344 : vector<1x128xf32>
    %476 = vector.broadcast %463 : f32 to vector<8x128xf32>
    %477 = arith.subf %458, %476 : vector<8x128xf32>
    %478 = vector.broadcast %475 : vector<1x128xf32> to vector<8x128xf32>
    %479 = arith.mulf %477, %478 : vector<8x128xf32>
    %480 = vector.broadcast %345 : vector<1x128xf32> to vector<8x128xf32>
    %481 = arith.addf %479, %480 : vector<8x128xf32>
    %482 = arith.addf %481, %343 : vector<8x128xf32>
    %cst_352 = arith.constant 0.000000e+00 : f32
    %483 = vector.broadcast %cst_352 : f32 to vector<8x128xf32>
    %484 = arith.cmpf oge, %482, %483 : vector<8x128xf32>
    %485 = vector.broadcast %346 : vector<1x128xf32> to vector<8x128xf32>
    %486 = arith.mulf %485, %482 : vector<8x128xf32>
    %487 = arith.select %484, %482, %486 : vector<8x128xi1>, vector<8x128xf32>
    %c0_353 = arith.constant 0 : index
    %c0_354 = arith.constant 0 : index
    %c0_355 = arith.constant 0 : index
    %488 = vector.load %arg12[%c0_353, %c0_354, %c0_355] : memref<1x8x128xf32, #tpu.memory_space<vmem>>, vector<1x8x128xf32>
    %489 = vector.shape_cast %488 : vector<1x8x128xf32> to vector<8x128xf32>
    %490 = vector.shape_cast %487 : vector<8x128xf32> to vector<1x8x128xf32>
    tpu.vector_store %arg12[%c0_353, %c0_354, %c0_355], %490 {strides = array<i32>} : memref<1x8x128xf32, #tpu.memory_space<vmem>>, vector<1x8x128xf32>,
    return
  }
  func.func @transform_0(%arg0: i32) -> (i32, i32, i32) {
    %c0_i32 = arith.constant 0 : i32
    %c0_i32_0 = arith.constant 0 : i32
    %c0_i32_1 = arith.constant 0 : i32
    return %arg0, %c0_i32, %c0_i32_0 : i32, i32, i32
  }
  func.func @transform_1(%arg0: i32) -> (i32, i32, i32, i32) {
    %c0_i32 = arith.constant 0 : i32
    %c0_i32_0 = arith.constant 0 : i32
    %c0_i32_1 = arith.constant 0 : i32
    %c0_i32_2 = arith.constant 0 : i32
    %c0_i32_3 = arith.constant 0 : i32
    return %c0_i32, %c0_i32_0, %c0_i32_1, %c0_i32_2 : i32, i32, i32, i32
  }
  func.func @transform_2(%arg0: i32) -> (i32, i32) {
    %c0_i32 = arith.constant 0 : i32
    %c0_i32_0 = arith.constant 0 : i32
    %c0_i32_1 = arith.constant 0 : i32
    return %c0_i32, %c0_i32_0 : i32, i32
  }
  func.func @transform_3(%arg0: i32) -> (i32, i32, i32, i32) {
    %c0_i32 = arith.constant 0 : i32
    %c0_i32_0 = arith.constant 0 : i32
    %c0_i32_1 = arith.constant 0 : i32
    %c0_i32_2 = arith.constant 0 : i32
    %c0_i32_3 = arith.constant 0 : i32
    return %c0_i32, %c0_i32_0, %c0_i32_1, %c0_i32_2 : i32, i32, i32, i32
  }
  func.func @transform_4(%arg0: i32) -> (i32, i32) {
    %c0_i32 = arith.constant 0 : i32
    %c0_i32_0 = arith.constant 0 : i32
    %c0_i32_1 = arith.constant 0 : i32
    return %c0_i32, %c0_i32_0 : i32, i32
  }
  func.func @transform_5(%arg0: i32) -> (i32, i32, i32, i32) {
    %c0_i32 = arith.constant 0 : i32
    %c0_i32_0 = arith.constant 0 : i32
    %c0_i32_1 = arith.constant 0 : i32
    %c0_i32_2 = arith.constant 0 : i32
    %c0_i32_3 = arith.constant 0 : i32
    return %c0_i32, %c0_i32_0, %c0_i32_1, %c0_i32_2 : i32, i32, i32, i32
  }
  func.func @transform_6(%arg0: i32) -> (i32, i32) {
    %c0_i32 = arith.constant 0 : i32
    %c0_i32_0 = arith.constant 0 : i32
    %c0_i32_1 = arith.constant 0 : i32
    return %c0_i32, %c0_i32_0 : i32, i32
  }
  func.func @transform_7(%arg0: i32) -> (i32, i32) {
    %c0_i32 = arith.constant 0 : i32
    %c0_i32_0 = arith.constant 0 : i32
    %c0_i32_1 = arith.constant 0 : i32
    return %c0_i32, %c0_i32_0 : i32, i32
  }
  func.func @transform_8(%arg0: i32) -> (i32, i32) {
    %c0_i32 = arith.constant 0 : i32
    %c0_i32_0 = arith.constant 0 : i32
    %c0_i32_1 = arith.constant 0 : i32
    return %c0_i32, %c0_i32_0 : i32, i32
  }
  func.func @transform_9(%arg0: i32) -> (i32, i32, i32) {
    %c0_i32 = arith.constant 0 : i32
    %c0_i32_0 = arith.constant 0 : i32
    %c0_i32_1 = arith.constant 0 : i32
    return %arg0, %c0_i32, %c0_i32_0 : i32, i32, i32
  }
  func.func @transform_10(%arg0: i32) -> (i32, i32, i32) {
    %c0_i32 = arith.constant 0 : i32
    %c0_i32_0 = arith.constant 0 : i32
    %c0_i32_1 = arith.constant 0 : i32
    return %arg0, %c0_i32, %c0_i32_0 : i32, i32, i32
  }
  func.func @transform_11(%arg0: i32) -> (i32, i32, i32) {
    %c0_i32 = arith.constant 0 : i32
    %c0_i32_0 = arith.constant 0 : i32
    %c0_i32_1 = arith.constant 0 : i32
    return %arg0, %c0_i32, %c0_i32_0 : i32, i32, i32
  }
}

</mosaic_0001>

<llo_original>
// kernel: tile.19
$region0: #{tile.19}
  %s0 = inlined_call_operand.vmem [shape: f32[3,32,4], index: 0, kind: input, shape index: {}]
  %s1 = inlined_call_operand.vmem [shape: f32[3,128], index: 1, kind: output, shape index: {}]
  $region1: #{tile.19} parent=0
    #allocation0 [shape = 'u8[4096]{0}', space=vmem, size = 0x1000, scoped, tag = 'scoped mem for output reshape']
    %v2 = vld [vmem:[%s0] sm:$0x1]
    %s3 = scalar_lea.vmem %s0, 31
    %v4 = vld [vmem:[%s3] sm:$0x2]
    %vm5 = vcmask 1041409
    %v6 = vsel %vm5, %v4, %v2
    %s7 = scalar_lea.vmem %s0, 62
    %v8 = vld [vmem:[%s7] sm:$0x4]
    %vm9 = vcmask 1042434
    %v10 = vsel %vm9, %v8, %v6
    %vm11 = vcmask 31744
    %12 = vst.msk [vmem:[#allocation0] sm:$0x7] %vm11, %v10
    %s13 = scalar_lea.vmem %s0, 31
    %v14 = vld [vmem:[%s13] sm:$0x1]
    %s15 = scalar_lea.vmem %s0, 62
    %v16 = vld [vmem:[%s15] sm:$0x2]
    %vm17 = vcmask 1041409
    %v18 = vsel %vm17, %v16, %v14
    %s19 = scalar_lea.vmem %s0, 93
    %v20 = vld [vmem:[%s19] sm:$0x4]
    %vm21 = vcmask 1042434
    %v22 = vsel %vm21, %v20, %v18
    %23 = vrot.lane.b32.xlu0 %v22, 124
    %v24 = vpop.permute.xlu0 %23
    %vm25 = vcmask 1048544
    %26 = vst.msk [vmem:[#allocation0] sm:$0x7] %vm25, %v24
    %s27 = scalar_lea.vmem %s0, 30
    %v28 = vld [vmem:[%s27] sm:$0x1]
    %s29 = scalar_lea.vmem %s0, 61
    %v30 = vld [vmem:[%s29] sm:$0x2]
    %vm31 = vcmask 1041409
    %v32 = vsel %vm31, %v30, %v28
    %s33 = scalar_lea.vmem %s0, 92
    %v34 = vld [vmem:[%s33] sm:$0x4]
    %vm35 = vcmask 1042434
    %v36 = vsel %vm35, %v34, %v32
    %37 = vrot.lane.b32.xlu0 %v36, 120
    %v38 = vpop.permute.xlu0 %37
    %vm39 = vcmask 1015744
    %40 = vst.msk [vmem:[#allocation0] sm:$0x7] %vm39, %v38
    %s41 = scalar_lea.vmem %s0, 29
    %v42 = vld [vmem:[%s41] sm:$0x1]
    %s43 = scalar_lea.vmem %s0, 60
    %v44 = vld [vmem:[%s43] sm:$0x2]
    %vm45 = vcmask 1041409
    %v46 = vsel %vm45, %v44, %v42
    %s47 = scalar_lea.vmem %s0, 91
    %v48 = vld [vmem:[%s47] sm:$0x4]
    %vm49 = vcmask 1042434
    %v50 = vsel %vm49, %v48, %v46
    %51 = vrot.lane.b32.xlu0 %v50, 116
    %v52 = vpop.permute.xlu0 %51
    %vm53 = vcmask 982944
    %54 = vst.msk [vmem:[#allocation0] sm:$0x7] %vm53, %v52
    %s55 = scalar_lea.vmem %s0, 28
    %v56 = vld [vmem:[%s55] sm:$0x1]
    %s57 = scalar_lea.vmem %s0, 59
    %v58 = vld [vmem:[%s57] sm:$0x2]
    %vm59 = vcmask 1041409
    %v60 = vsel %vm59, %v58, %v56
    %s61 = scalar_lea.vmem %s0, 90
    %v62 = vld [vmem:[%s61] sm:$0x4]
    %vm63 = vcmask 1042434
    %v64 = vsel %vm63, %v62, %v60
    %65 = vrot.lane.b32.xlu0 %v64, 112
    %v66 = vpop.permute.xlu0 %65
    %vm67 = vcmask 950144
    %68 = vst.msk [vmem:[#allocation0] sm:$0x7] %vm67, %v66
    %s69 = scalar_lea.vmem %s0, 27
    %v70 = vld [vmem:[%s69] sm:$0x1]
    %s71 = scalar_lea.vmem %s0, 58
    %v72 = vld [vmem:[%s71] sm:$0x2]
    %vm73 = vcmask 1041409
    %v74 = vsel %vm73, %v72, %v70
    %s75 = scalar_lea.vmem %s0, 89
    %v76 = vld [vmem:[%s75] sm:$0x4]
    %vm77 = vcmask 1042434
    %v78 = vsel %vm77, %v76, %v74
    %79 = vrot.lane.b32.xlu0 %v78, 108
    %v80 = vpop.permute.xlu0 %79
    %vm81 = vcmask 917344
    %82 = vst.msk [vmem:[#allocation0] sm:$0x7] %vm81, %v80
    %s83 = scalar_lea.vmem %s0, 26
    %v84 = vld [vmem:[%s83] sm:$0x1]
    %s85 = scalar_lea.vmem %s0, 57
    %v86 = vld [vmem:[%s85] sm:$0x2]
    %vm87 = vcmask 1041409
    %v88 = vsel %vm87, %v86, %v84
    %s89 = scalar_lea.vmem %s0, 88
    %v90 = vld [vmem:[%s89] sm:$0x4]
    %vm91 = vcmask 1042434
    %v92 = vsel %vm91, %v90, %v88
    %93 = vrot.lane.b32.xlu0 %v92, 104
    %v94 = vpop.permute.xlu0 %93
    %vm95 = vcmask 884544
    %96 = vst.msk [vmem:[#allocation0] sm:$0x7] %vm95, %v94
    %s97 = scalar_lea.vmem %s0, 25
    %v98 = vld [vmem:[%s97] sm:$0x1]
    %s99 = scalar_lea.vmem %s0, 56
    %v100 = vld [vmem:[%s99] sm:$0x2]
    %vm101 = vcmask 1041409
    %v102 = vsel %vm101, %v100, %v98
    %s103 = scalar_lea.vmem %s0, 87
    %v104 = vld [vmem:[%s103] sm:$0x4]
    %vm105 = vcmask 1042434
    %v106 = vsel %vm105, %v104, %v102
    %107 = vrot.lane.b32.xlu0 %v106, 100
    %v108 = vpop.permute.xlu0 %107
    %vm109 = vcmask 851744
    %110 = vst.msk [vmem:[#allocation0] sm:$0x7] %vm109, %v108
    %s111 = scalar_lea.vmem %s0, 24
    %v112 = vld [vmem:[%s111] sm:$0x1]
    %s113 = scalar_lea.vmem %s0, 55
    %v114 = vld [vmem:[%s113] sm:$0x2]
    %vm115 = vcmask 1041409
    %v116 = vsel %vm115, %v114, %v112
    %s117 = scalar_lea.vmem %s0, 86
    %v118 = vld [vmem:[%s117] sm:$0x4]
    %vm119 = vcmask 1042434
    %v120 = vsel %vm119, %v118, %v116
    %121 = vrot.lane.b32.xlu0 %v120, 96
    %v122 = vpop.permute.xlu0 %121
    %vm123 = vcmask 818944
    %124 = vst.msk [vmem:[#allocation0] sm:$0x7] %vm123, %v122
    %s125 = scalar_lea.vmem %s0, 23
    %v126 = vld [vmem:[%s125] sm:$0x1]
    %s127 = scalar_lea.vmem %s0, 54
    %v128 = vld [vmem:[%s127] sm:$0x2]
    %vm129 = vcmask 1041409
    %v130 = vsel %vm129, %v128, %v126
    %s131 = scalar_lea.vmem %s0, 85
    %v132 = vld [vmem:[%s131] sm:$0x4]
    %vm133 = vcmask 1042434
    %v134 = vsel %vm133, %v132, %v130
    %135 = vrot.lane.b32.xlu0 %v134, 92
    %v136 = vpop.permute.xlu0 %135
    %vm137 = vcmask 786144
    %138 = vst.msk [vmem:[#allocation0] sm:$0x7] %vm137, %v136
    %s139 = scalar_lea.vmem %s0, 22
    %v140 = vld [vmem:[%s139] sm:$0x1]
    %s141 = scalar_lea.vmem %s0, 53
    %v142 = vld [vmem:[%s141] sm:$0x2]
    %vm143 = vcmask 1041409
    %v144 = vsel %vm143, %v142, %v140
    %s145 = scalar_lea.vmem %s0, 84
    %v146 = vld [vmem:[%s145] sm:$0x4]
    %vm147 = vcmask 1042434
    %v148 = vsel %vm147, %v146, %v144
    %149 = vrot.lane.b32.xlu0 %v148, 88
    %v150 = vpop.permute.xlu0 %149
    %vm151 = vcmask 753344
    %152 = vst.msk [vmem:[#allocation0] sm:$0x7] %vm151, %v150
    %s153 = scalar_lea.vmem %s0, 21
    %v154 = vld [vmem:[%s153] sm:$0x1]
    %s155 = scalar_lea.vmem %s0, 52
    %v156 = vld [vmem:[%s155] sm:$0x2]
    %vm157 = vcmask 1041409
    %v158 = vsel %vm157, %v156, %v154
    %s159 = scalar_lea.vmem %s0, 83
    %v160 = vld [vmem:[%s159] sm:$0x4]
    %vm161 = vcmask 1042434
    %v162 = vsel %vm161, %v160, %v158
    %163 = vrot.lane.b32.xlu0 %v162, 84
    %v164 = vpop.permute.xlu0 %163
    %vm165 = vcmask 720544
    %166 = vst.msk [vmem:[#allocation0] sm:$0x7] %vm165, %v164
    %s167 = scalar_lea.vmem %s0, 20
    %v168 = vld [vmem:[%s167] sm:$0x1]
    %s169 = scalar_lea.vmem %s0, 51
    %v170 = vld [vmem:[%s169] sm:$0x2]
    %vm171 = vcmask 1041409
    %v172 = vsel %vm171, %v170, %v168
    %s173 = scalar_lea.vmem %s0, 82
    %v174 = vld [vmem:[%s173] sm:$0x4]
    %vm175 = vcmask 1042434
    %v176 = vsel %vm175, %v174, %v172
    %177 = vrot.lane.b32.xlu0 %v176, 80
    %v178 = vpop.permute.xlu0 %177
    %vm179 = vcmask 687744
    %180 = vst.msk [vmem:[#allocation0] sm:$0x7] %vm179, %v178
    %s181 = scalar_lea.vmem %s0, 19
    %v182 = vld [vmem:[%s181] sm:$0x1]
    %s183 = scalar_lea.vmem %s0, 50
    %v184 = vld [vmem:[%s183] sm:$0x2]
    %vm185 = vcmask 1041409
    %v186 = vsel %vm185, %v184, %v182
    %s187 = scalar_lea.vmem %s0, 81
    %v188 = vld [vmem:[%s187] sm:$0x4]
    %vm189 = vcmask 1042434
    %v190 = vsel %vm189, %v188, %v186
    %191 = vrot.lane.b32.xlu0 %v190, 76
    %v192 = vpop.permute.xlu0 %191
    %vm193 = vcmask 654944
    %194 = vst.msk [vmem:[#allocation0] sm:$0x7] %vm193, %v192
    %s195 = scalar_lea.vmem %s0, 18
    %v196 = vld [vmem:[%s195] sm:$0x1]
    %s197 = scalar_lea.vmem %s0, 49
    %v198 = vld [vmem:[%s197] sm:$0x2]
    %vm199 = vcmask 1041409
    %v200 = vsel %vm199, %v198, %v196
    %s201 = scalar_lea.vmem %s0, 80
    %v202 = vld [vmem:[%s201] sm:$0x4]
    %vm203 = vcmask 1042434
    %v204 = vsel %vm203, %v202, %v200
    %205 = vrot.lane.b32.xlu0 %v204, 72
    %v206 = vpop.permute.xlu0 %205
    %vm207 = vcmask 622144
    %208 = vst.msk [vmem:[#allocation0] sm:$0x7] %vm207, %v206
    %s209 = scalar_lea.vmem %s0, 17
    %v210 = vld [vmem:[%s209] sm:$0x1]
    %s211 = scalar_lea.vmem %s0, 48
    %v212 = vld [vmem:[%s211] sm:$0x2]
    %vm213 = vcmask 1041409
    %v214 = vsel %vm213, %v212, %v210
    %s215 = scalar_lea.vmem %s0, 79
    %v216 = vld [vmem:[%s215] sm:$0x4]
    %vm217 = vcmask 1042434
    %v218 = vsel %vm217, %v216, %v214
    %219 = vrot.lane.b32.xlu0 %v218, 68
    %v220 = vpop.permute.xlu0 %219
    %vm221 = vcmask 589344
    %222 = vst.msk [vmem:[#allocation0] sm:$0x7] %vm221, %v220
    %s223 = scalar_lea.vmem %s0, 16
    %v224 = vld [vmem:[%s223] sm:$0x1]
    %s225 = scalar_lea.vmem %s0, 47
    %v226 = vld [vmem:[%s225] sm:$0x2]
    %vm227 = vcmask 1041409
    %v228 = vsel %vm227, %v226, %v224
    %s229 = scalar_lea.vmem %s0, 78
    %v230 = vld [vmem:[%s229] sm:$0x4]
    %vm231 = vcmask 1042434
    %v232 = vsel %vm231, %v230, %v228
    %233 = vrot.lane.b32.xlu0 %v232, 64
    %v234 = vpop.permute.xlu0 %233
    %vm235 = vcmask 556544
    %236 = vst.msk [vmem:[#allocation0] sm:$0x7] %vm235, %v234
    %s237 = scalar_lea.vmem %s0, 15
    %v238 = vld [vmem:[%s237] sm:$0x1]
    %s239 = scalar_lea.vmem %s0, 46
    %v240 = vld [vmem:[%s239] sm:$0x2]
    %vm241 = vcmask 1041409
    %v242 = vsel %vm241, %v240, %v238
    %s243 = scalar_lea.vmem %s0, 77
    %v244 = vld [vmem:[%s243] sm:$0x4]
    %vm245 = vcmask 1042434
    %v246 = vsel %vm245, %v244, %v242
    %247 = vrot.lane.b32.xlu0 %v246, 60
    %v248 = vpop.permute.xlu0 %247
    %vm249 = vcmask 523744
    %250 = vst.msk [vmem:[#allocation0] sm:$0x7] %vm249, %v248
    %s251 = scalar_lea.vmem %s0, 14
    %v252 = vld [vmem:[%s251] sm:$0x1]
    %s253 = scalar_lea.vmem %s0, 45
    %v254 = vld [vmem:[%s253] sm:$0x2]
    %vm255 = vcmask 1041409
    %v256 = vsel %vm255, %v254, %v252
    %s257 = scalar_lea.vmem %s0, 76
    %v258 = vld [vmem:[%s257] sm:$0x4]
    %vm259 = vcmask 1042434
    %v260 = vsel %vm259, %v258, %v256
    %261 = vrot.lane.b32.xlu0 %v260, 56
    %v262 = vpop.permute.xlu0 %261
    %vm263 = vcmask 490944
    %264 = vst.msk [vmem:[#allocation0] sm:$0x7] %vm263, %v262
    %s265 = scalar_lea.vmem %s0, 13
    %v266 = vld [vmem:[%s265] sm:$0x1]
    %s267 = scalar_lea.vmem %s0, 44
    %v268 = vld [vmem:[%s267] sm:$0x2]
    %vm269 = vcmask 1041409
    %v270 = vsel %vm269, %v268, %v266
    %s271 = scalar_lea.vmem %s0, 75
    %v272 = vld [vmem:[%s271] sm:$0x4]
    %vm273 = vcmask 1042434
    %v274 = vsel %vm273, %v272, %v270
    %275 = vrot.lane.b32.xlu0 %v274, 52
    %v276 = vpop.permute.xlu0 %275
    %vm277 = vcmask 458144
    %278 = vst.msk [vmem:[#allocation0] sm:$0x7] %vm277, %v276
    %s279 = scalar_lea.vmem %s0, 12
    %v280 = vld [vmem:[%s279] sm:$0x1]
    %s281 = scalar_lea.vmem %s0, 43
    %v282 = vld [vmem:[%s281] sm:$0x2]
    %vm283 = vcmask 1041409
    %v284 = vsel %vm283, %v282, %v280
    %s285 = scalar_lea.vmem %s0, 74
    %v286 = vld [vmem:[%s285] sm:$0x4]
    %vm287 = vcmask 1042434
    %v288 = vsel %vm287, %v286, %v284
    %289 = vrot.lane.b32.xlu0 %v288, 48
    %v290 = vpop.permute.xlu0 %289
    %vm291 = vcmask 425344
    %292 = vst.msk [vmem:[#allocation0] sm:$0x7] %vm291, %v290
    %s293 = scalar_lea.vmem %s0, 11
    %v294 = vld [vmem:[%s293] sm:$0x1]
    %s295 = scalar_lea.vmem %s0, 42
    %v296 = vld [vmem:[%s295] sm:$0x2]
    %vm297 = vcmask 1041409
    %v298 = vsel %vm297, %v296, %v294
    %s299 = scalar_lea.vmem %s0, 73
    %v300 = vld [vmem:[%s299] sm:$0x4]
    %vm301 = vcmask 1042434
    %v302 = vsel %vm301, %v300, %v298
    %303 = vrot.lane.b32.xlu0 %v302, 44
    %v304 = vpop.permute.xlu0 %303
    %vm305 = vcmask 392544
    %306 = vst.msk [vmem:[#allocation0] sm:$0x7] %vm305, %v304
    %s307 = scalar_lea.vmem %s0, 10
    %v308 = vld [vmem:[%s307] sm:$0x1]
    %s309 = scalar_lea.vmem %s0, 41
    %v310 = vld [vmem:[%s309] sm:$0x2]
    %vm311 = vcmask 1041409
    %v312 = vsel %vm311, %v310, %v308
    %s313 = scalar_lea.vmem %s0, 72
    %v314 = vld [vmem:[%s313] sm:$0x4]
    %vm315 = vcmask 1042434
    %v316 = vsel %vm315, %v314, %v312
    %317 = vrot.lane.b32.xlu0 %v316, 40
    %v318 = vpop.permute.xlu0 %317
    %vm319 = vcmask 359744
    %320 = vst.msk [vmem:[#allocation0] sm:$0x7] %vm319, %v318
    %s321 = scalar_lea.vmem %s0, 9
    %v322 = vld [vmem:[%s321] sm:$0x1]
    %s323 = scalar_lea.vmem %s0, 40
    %v324 = vld [vmem:[%s323] sm:$0x2]
    %vm325 = vcmask 1041409
    %v326 = vsel %vm325, %v324, %v322
    %s327 = scalar_lea.vmem %s0, 71
    %v328 = vld [vmem:[%s327] sm:$0x4]
    %vm329 = vcmask 1042434
    %v330 = vsel %vm329, %v328, %v326
    %331 = vrot.lane.b32.xlu0 %v330, 36
    %v332 = vpop.permute.xlu0 %331
    %vm333 = vcmask 326944
    %334 = vst.msk [vmem:[#allocation0] sm:$0x7] %vm333, %v332
    %s335 = scalar_lea.vmem %s0, 8
    %v336 = vld [vmem:[%s335] sm:$0x1]
    %s337 = scalar_lea.vmem %s0, 39
    %v338 = vld [vmem:[%s337] sm:$0x2]
    %vm339 = vcmask 1041409
    %v340 = vsel %vm339, %v338, %v336
    %s341 = scalar_lea.vmem %s0, 70
    %v342 = vld [vmem:[%s341] sm:$0x4]
    %vm343 = vcmask 1042434
    %v344 = vsel %vm343, %v342, %v340
    %345 = vrot.lane.b32.xlu0 %v344, 32
    %v346 = vpop.permute.xlu0 %345
    %vm347 = vcmask 294144
    %348 = vst.msk [vmem:[#allocation0] sm:$0x7] %vm347, %v346
    %s349 = scalar_lea.vmem %s0, 7
    %v350 = vld [vmem:[%s349] sm:$0x1]
    %s351 = scalar_lea.vmem %s0, 38
    %v352 = vld [vmem:[%s351] sm:$0x2]
    %vm353 = vcmask 1041409
    %v354 = vsel %vm353, %v352, %v350
    %s355 = scalar_lea.vmem %s0, 69
    %v356 = vld [vmem:[%s355] sm:$0x4]
    %vm357 = vcmask 1042434
    %v358 = vsel %vm357, %v356, %v354
    %359 = vrot.lane.b32.xlu0 %v358, 28
    %v360 = vpop.permute.xlu0 %359
    %vm361 = vcmask 261344
    %362 = vst.msk [vmem:[#allocation0] sm:$0x7] %vm361, %v360
    %s363 = scalar_lea.vmem %s0, 6
    %v364 = vld [vmem:[%s363] sm:$0x1]
    %s365 = scalar_lea.vmem %s0, 37
    %v366 = vld [vmem:[%s365] sm:$0x2]
    %vm367 = vcmask 1041409
    %v368 = vsel %vm367, %v366, %v364
    %s369 = scalar_lea.vmem %s0, 68
    %v370 = vld [vmem:[%s369] sm:$0x4]
    %vm371 = vcmask 1042434
    %v372 = vsel %vm371, %v370, %v368
    %373 = vrot.lane.b32.xlu0 %v372, 24
    %v374 = vpop.permute.xlu0 %373
    %vm375 = vcmask 228544
    %376 = vst.msk [vmem:[#allocation0] sm:$0x7] %vm375, %v374
    %s377 = scalar_lea.vmem %s0, 5
    %v378 = vld [vmem:[%s377] sm:$0x1]
    %s379 = scalar_lea.vmem %s0, 36
    %v380 = vld [vmem:[%s379] sm:$0x2]
    %vm381 = vcmask 1041409
    %v382 = vsel %vm381, %v380, %v378
    %s383 = scalar_lea.vmem %s0, 67
    %v384 = vld [vmem:[%s383] sm:$0x4]
    %vm385 = vcmask 1042434
    %v386 = vsel %vm385, %v384, %v382
    %387 = vrot.lane.b32.xlu0 %v386, 20
    %v388 = vpop.permute.xlu0 %387
    %vm389 = vcmask 195744
    %390 = vst.msk [vmem:[#allocation0] sm:$0x7] %vm389, %v388
    %s391 = scalar_lea.vmem %s0, 4
    %v392 = vld [vmem:[%s391] sm:$0x1]
    %s393 = scalar_lea.vmem %s0, 35
    %v394 = vld [vmem:[%s393] sm:$0x2]
    %vm395 = vcmask 1041409
    %v396 = vsel %vm395, %v394, %v392
    %s397 = scalar_lea.vmem %s0, 66
    %v398 = vld [vmem:[%s397] sm:$0x4]
    %vm399 = vcmask 1042434
    %v400 = vsel %vm399, %v398, %v396
    %401 = vrot.lane.b32.xlu0 %v400, 16
    %v402 = vpop.permute.xlu0 %401
    %vm403 = vcmask 162944
    %404 = vst.msk [vmem:[#allocation0] sm:$0x7] %vm403, %v402
    %s405 = scalar_lea.vmem %s0, 3
    %v406 = vld [vmem:[%s405] sm:$0x1]
    %s407 = scalar_lea.vmem %s0, 34
    %v408 = vld [vmem:[%s407] sm:$0x2]
    %vm409 = vcmask 1041409
    %v410 = vsel %vm409, %v408, %v406
    %s411 = scalar_lea.vmem %s0, 65
    %v412 = vld [vmem:[%s411] sm:$0x4]
    %vm413 = vcmask 1042434
    %v414 = vsel %vm413, %v412, %v410
    %415 = vrot.lane.b32.xlu0 %v414, 12
    %v416 = vpop.permute.xlu0 %415
    %vm417 = vcmask 130144
    %418 = vst.msk [vmem:[#allocation0] sm:$0x7] %vm417, %v416
    %s419 = scalar_lea.vmem %s0, 2
    %v420 = vld [vmem:[%s419] sm:$0x1]
    %s421 = scalar_lea.vmem %s0, 33
    %v422 = vld [vmem:[%s421] sm:$0x2]
    %vm423 = vcmask 1041409
    %v424 = vsel %vm423, %v422, %v420
    %s425 = scalar_lea.vmem %s0, 64
    %v426 = vld [vmem:[%s425] sm:$0x4]
    %vm427 = vcmask 1042434
    %v428 = vsel %vm427, %v426, %v424
    %429 = vrot.lane.b32.xlu0 %v428, 8
    %v430 = vpop.permute.xlu0 %429
    %vm431 = vcmask 97344
    %432 = vst.msk [vmem:[#allocation0] sm:$0x7] %vm431, %v430
    %s433 = scalar_lea.vmem %s0, 1
    %v434 = vld [vmem:[%s433] sm:$0x1]
    %s435 = scalar_lea.vmem %s0, 32
    %v436 = vld [vmem:[%s435] sm:$0x2]
    %vm437 = vcmask 1041409
    %v438 = vsel %vm437, %v436, %v434
    %s439 = scalar_lea.vmem %s0, 63
    %v440 = vld [vmem:[%s439] sm:$0x4]
    %vm441 = vcmask 1042434
    %v442 = vsel %vm441, %v440, %v438
    %443 = vrot.lane.b32.xlu0 %v442, 4
    %v444 = vpop.permute.xlu0 %443
    %vm445 = vcmask 64544
    %446 = vst.msk [vmem:[#allocation0] sm:$0x7] %vm445, %v444
    %s448 = ssub.s32 16, 1
    %v449 = vld [vmem:[#allocation0] sm:%s448]
    %s451 = ssub.s32 16, 1
    %452 = vst [vmem:[%s1] sm:%s451] %v449

// kernel: tile.24
$region0: #{tile.24}
  %s0 = inlined_call_operand.vmem [shape: f32[3,16,8], index: 0, kind: input, shape index: {}]
  %s1 = inlined_call_operand.vmem [shape: f32[3,128], index: 1, kind: output, shape index: {}]
  $region1: #{tile.24} parent=0
    #allocation0 [shape = 'u8[4096]{0}', space=vmem, size = 0x1000, scoped, tag = 'scoped mem for output reshape']
    %s2 = smov 3
    %v3 = vld [vmem:[%s0] ss:$16 sm:%s2]
    %s4 = scalar_lea.vmem %s0, 30
    %v5 = vld [vmem:[%s4] sm:$0x4]
    %vm6 = vcmask 1042434
    %v7 = vsel %vm6, %v5, %v3
    %vm8 = vcmask 64512
    %9 = vst.msk [vmem:[#allocation0] sm:$0x7] %vm8, %v7
    %s10 = scalar_lea.vmem %s0, 15
    %s11 = smov 3
    %v12 = vld [vmem:[%s10] ss:$16 sm:%s11]
    %s13 = scalar_lea.vmem %s0, 45
    %v14 = vld [vmem:[%s13] sm:$0x4]
    %vm15 = vcmask 1042434
    %v16 = vsel %vm15, %v14, %v12
    %17 = vrot.lane.b32.xlu0 %v16, 120
    %v18 = vpop.permute.xlu0 %17
    %vm19 = vcmask 1048512
    %20 = vst.msk [vmem:[#allocation0] sm:$0x7] %vm19, %v18
    %s21 = scalar_lea.vmem %s0, 14
    %s22 = smov 3
    %v23 = vld [vmem:[%s21] ss:$16 sm:%s22]
    %s24 = scalar_lea.vmem %s0, 44
    %v25 = vld [vmem:[%s24] sm:$0x4]
    %vm26 = vcmask 1042434
    %v27 = vsel %vm26, %v25, %v23
    %28 = vrot.lane.b32.xlu0 %v27, 112
    %v29 = vpop.permute.xlu0 %28
    %vm30 = vcmask 982912
    %31 = vst.msk [vmem:[#allocation0] sm:$0x7] %vm30, %v29
    %s32 = scalar_lea.vmem %s0, 13
    %s33 = smov 3
    %v34 = vld [vmem:[%s32] ss:$16 sm:%s33]
    %s35 = scalar_lea.vmem %s0, 43
    %v36 = vld [vmem:[%s35] sm:$0x4]
    %vm37 = vcmask 1042434
    %v38 = vsel %vm37, %v36, %v34
    %39 = vrot.lane.b32.xlu0 %v38, 104
    %v40 = vpop.permute.xlu0 %39
    %vm41 = vcmask 917312
    %42 = vst.msk [vmem:[#allocation0] sm:$0x7] %vm41, %v40
    %s43 = scalar_lea.vmem %s0, 12
    %s44 = smov 3
    %v45 = vld [vmem:[%s43] ss:$16 sm:%s44]
    %s46 = scalar_lea.vmem %s0, 42
    %v47 = vld [vmem:[%s46] sm:$0x4]
    %vm48 = vcmask 1042434
    %v49 = vsel %vm48, %v47, %v45
    %50 = vrot.lane.b32.xlu0 %v49, 96
    %v51 = vpop.permute.xlu0 %50
    %vm52 = vcmask 851712
    %53 = vst.msk [vmem:[#allocation0] sm:$0x7] %vm52, %v51
    %s54 = scalar_lea.vmem %s0, 11
    %s55 = smov 3
    %v56 = vld [vmem:[%s54] ss:$16 sm:%s55]
    %s57 = scalar_lea.vmem %s0, 41
    %v58 = vld [vmem:[%s57] sm:$0x4]
    %vm59 = vcmask 1042434
    %v60 = vsel %vm59, %v58, %v56
    %61 = vrot.lane.b32.xlu0 %v60, 88
    %v62 = vpop.permute.xlu0 %61
    %vm63 = vcmask 786112
    %64 = vst.msk [vmem:[#allocation0] sm:$0x7] %vm63, %v62
    %s65 = scalar_lea.vmem %s0, 10
    %s66 = smov 3
    %v67 = vld [vmem:[%s65] ss:$16 sm:%s66]
    %s68 = scalar_lea.vmem %s0, 40
    %v69 = vld [vmem:[%s68] sm:$0x4]
    %vm70 = vcmask 1042434
    %v71 = vsel %vm70, %v69, %v67
    %72 = vrot.lane.b32.xlu0 %v71, 80
    %v73 = vpop.permute.xlu0 %72
    %vm74 = vcmask 720512
    %75 = vst.msk [vmem:[#allocation0] sm:$0x7] %vm74, %v73
    %s76 = scalar_lea.vmem %s0, 9
    %s77 = smov 3
    %v78 = vld [vmem:[%s76] ss:$16 sm:%s77]
    %s79 = scalar_lea.vmem %s0, 39
    %v80 = vld [vmem:[%s79] sm:$0x4]
    %vm81 = vcmask 1042434
    %v82 = vsel %vm81, %v80, %v78
    %83 = vrot.lane.b32.xlu0 %v82, 72
    %v84 = vpop.permute.xlu0 %83
    %vm85 = vcmask 654912
    %86 = vst.msk [vmem:[#allocation0] sm:$0x7] %vm85, %v84
    %s87 = scalar_lea.vmem %s0, 8
    %s88 = smov 3
    %v89 = vld [vmem:[%s87] ss:$16 sm:%s88]
    %s90 = scalar_lea.vmem %s0, 38
    %v91 = vld [vmem:[%s90] sm:$0x4]
    %vm92 = vcmask 1042434
    %v93 = vsel %vm92, %v91, %v89
    %94 = vrot.lane.b32.xlu0 %v93, 64
    %v95 = vpop.permute.xlu0 %94
    %vm96 = vcmask 589312
    %97 = vst.msk [vmem:[#allocation0] sm:$0x7] %vm96, %v95
    %s98 = scalar_lea.vmem %s0, 7
    %s99 = smov 3
    %v100 = vld [vmem:[%s98] ss:$16 sm:%s99]
    %s101 = scalar_lea.vmem %s0, 37
    %v102 = vld [vmem:[%s101] sm:$0x4]
    %vm103 = vcmask 1042434
    %v104 = vsel %vm103, %v102, %v100
    %105 = vrot.lane.b32.xlu0 %v104, 56
    %v106 = vpop.permute.xlu0 %105
    %vm107 = vcmask 523712
    %108 = vst.msk [vmem:[#allocation0] sm:$0x7] %vm107, %v106
    %s109 = scalar_lea.vmem %s0, 6
    %s110 = smov 3
    %v111 = vld [vmem:[%s109] ss:$16 sm:%s110]
    %s112 = scalar_lea.vmem %s0, 36
    %v113 = vld [vmem:[%s112] sm:$0x4]
    %vm114 = vcmask 1042434
    %v115 = vsel %vm114, %v113, %v111
    %116 = vrot.lane.b32.xlu0 %v115, 48
    %v117 = vpop.permute.xlu0 %116
    %vm118 = vcmask 458112
    %119 = vst.msk [vmem:[#allocation0] sm:$0x7] %vm118, %v117
    %s120 = scalar_lea.vmem %s0, 5
    %s121 = smov 3
    %v122 = vld [vmem:[%s120] ss:$16 sm:%s121]
    %s123 = scalar_lea.vmem %s0, 35
    %v124 = vld [vmem:[%s123] sm:$0x4]
    %vm125 = vcmask 1042434
    %v126 = vsel %vm125, %v124, %v122
    %127 = vrot.lane.b32.xlu0 %v126, 40
    %v128 = vpop.permute.xlu0 %127
    %vm129 = vcmask 392512
    %130 = vst.msk [vmem:[#allocation0] sm:$0x7] %vm129, %v128
    %s131 = scalar_lea.vmem %s0, 4
    %s132 = smov 3
    %v133 = vld [vmem:[%s131] ss:$16 sm:%s132]
    %s134 = scalar_lea.vmem %s0, 34
    %v135 = vld [vmem:[%s134] sm:$0x4]
    %vm136 = vcmask 1042434
    %v137 = vsel %vm136, %v135, %v133
    %138 = vrot.lane.b32.xlu0 %v137, 32
    %v139 = vpop.permute.xlu0 %138
    %vm140 = vcmask 326912
    %141 = vst.msk [vmem:[#allocation0] sm:$0x7] %vm140, %v139
    %s142 = scalar_lea.vmem %s0, 3
    %s143 = smov 3
    %v144 = vld [vmem:[%s142] ss:$16 sm:%s143]
    %s145 = scalar_lea.vmem %s0, 33
    %v146 = vld [vmem:[%s145] sm:$0x4]
    %vm147 = vcmask 1042434
    %v148 = vsel %vm147, %v146, %v144
    %149 = vrot.lane.b32.xlu0 %v148, 24
    %v150 = vpop.permute.xlu0 %149
    %vm151 = vcmask 261312
    %152 = vst.msk [vmem:[#allocation0] sm:$0x7] %vm151, %v150
    %s153 = scalar_lea.vmem %s0, 2
    %s154 = smov 3
    %v155 = vld [vmem:[%s153] ss:$16 sm:%s154]
    %s156 = scalar_lea.vmem %s0, 32
    %v157 = vld [vmem:[%s156] sm:$0x4]
    %vm158 = vcmask 1042434
    %v159 = vsel %vm158, %v157, %v155
    %160 = vrot.lane.b32.xlu0 %v159, 16
    %v161 = vpop.permute.xlu0 %160
    %vm162 = vcmask 195712
    %163 = vst.msk [vmem:[#allocation0] sm:$0x7] %vm162, %v161
    %s164 = scalar_lea.vmem %s0, 1
    %s165 = smov 3
    %v166 = vld [vmem:[%s164] ss:$16 sm:%s165]
    %s167 = scalar_lea.vmem %s0, 31
    %v168 = vld [vmem:[%s167] sm:$0x4]
    %vm169 = vcmask 1042434
    %v170 = vsel %vm169, %v168, %v166
    %171 = vrot.lane.b32.xlu0 %v170, 8
    %v172 = vpop.permute.xlu0 %171
    %vm173 = vcmask 130112
    %174 = vst.msk [vmem:[#allocation0] sm:$0x7] %vm173, %v172
    %s176 = ssub.s32 16, 1
    %v177 = vld [vmem:[#allocation0] sm:%s176]
    %s179 = ssub.s32 16, 1
    %180 = vst [vmem:[%s1] sm:%s179] %v177

// kernel: tile.29
$region0: #{tile.29}
  %s0 = inlined_call_operand.vmem [shape: f32[3,8,16], index: 0, kind: input, shape index: {}]
  %s1 = inlined_call_operand.vmem [shape: f32[3,128], index: 1, kind: output, shape index: {}]
  $region1: #{tile.29} parent=0
    #allocation0 [shape = 'u8[4096]{0}', space=vmem, size = 0x1000, scoped, tag = 'scoped mem for output reshape']
    %v2 = vld [vmem:[%s0] ss:$8 sm:$0x7]
    %vm3 = vcmask 130048
    %4 = vst.msk [vmem:[#allocation0] sm:$0x7] %vm3, %v2
    %s5 = scalar_lea.vmem %s0, 7
    %v6 = vld [vmem:[%s5] ss:$8 sm:$0x7]
    %7 = vrot.lane.b32.xlu0 %v6, 112
    %v8 = vpop.permute.xlu0 %7
    %vm9 = vcmask 1048448
    %10 = vst.msk [vmem:[#allocation0] sm:$0x7] %vm9, %v8
    %s11 = scalar_lea.vmem %s0, 6
    %v12 = vld [vmem:[%s11] ss:$8 sm:$0x7]
    %13 = vrot.lane.b32.xlu0 %v12, 96
    %v14 = vpop.permute.xlu0 %13
    %vm15 = vcmask 917248
    %16 = vst.msk [vmem:[#allocation0] sm:$0x7] %vm15, %v14
    %s17 = scalar_lea.vmem %s0, 5
    %v18 = vld [vmem:[%s17] ss:$8 sm:$0x7]
    %19 = vrot.lane.b32.xlu0 %v18, 80
    %v20 = vpop.permute.xlu0 %19
    %vm21 = vcmask 786048
    %22 = vst.msk [vmem:[#allocation0] sm:$0x7] %vm21, %v20
    %s23 = scalar_lea.vmem %s0, 4
    %v24 = vld [vmem:[%s23] ss:$8 sm:$0x7]
    %25 = vrot.lane.b32.xlu0 %v24, 64
    %v26 = vpop.permute.xlu0 %25
    %vm27 = vcmask 654848
    %28 = vst.msk [vmem:[#allocation0] sm:$0x7] %vm27, %v26
    %s29 = scalar_lea.vmem %s0, 3
    %v30 = vld [vmem:[%s29] ss:$8 sm:$0x7]
    %31 = vrot.lane.b32.xlu0 %v30, 48
    %v32 = vpop.permute.xlu0 %31
    %vm33 = vcmask 523648
    %34 = vst.msk [vmem:[#allocation0] sm:$0x7] %vm33, %v32
    %s35 = scalar_lea.vmem %s0, 2
    %v36 = vld [vmem:[%s35] ss:$8 sm:$0x7]
    %37 = vrot.lane.b32.xlu0 %v36, 32
    %v38 = vpop.permute.xlu0 %37
    %vm39 = vcmask 392448
    %40 = vst.msk [vmem:[#allocation0] sm:$0x7] %vm39, %v38
    %s41 = scalar_lea.vmem %s0, 1
    %v42 = vld [vmem:[%s41] ss:$8 sm:$0x7]
    %43 = vrot.lane.b32.xlu0 %v42, 16
    %v44 = vpop.permute.xlu0 %43
    %vm45 = vcmask 261248
    %46 = vst.msk [vmem:[#allocation0] sm:$0x7] %vm45, %v44
    %s48 = ssub.s32 16, 1
    %v49 = vld [vmem:[#allocation0] sm:%s48]
    %s51 = ssub.s32 16, 1
    %52 = vst [vmem:[%s1] sm:%s51] %v49

// kernel: encoder_forward.1
$region0: #{encoder_forward.1}
  #allocation0 [shape = 'u32[]', space=smem, size = 0x4, offset = 0x4, fixed_abs, tag = 'smem constant byte address 0x4 - core index']
  #allocation1 [shape = 'u32[72,128]{1,0:T(1,128)}', space=vmem, size = 0x9000, scoped, tag = 'internal scratch']
  #allocation2 [shape = 'f32[34,132]{1,0:T(8,128)}', space=vmem, size = 0xa000, scoped, tag = 'scratch operand']
  #allocation3 [shape = 'f32[18,136]{1,0:T(8,128)}', space=vmem, size = 0x6000, scoped, tag = 'scratch operand']
  #allocation4 [shape = 'f32[10,144]{1,0:T(8,128)}', space=vmem, size = 0x4000, scoped, tag = 'scratch operand']
  #allocation5 [shape = 'f32[34,128]{1,0:T(8,128)}', space=vmem, size = 0x5000, scoped, tag = 'scratch operand']
  #allocation6 [shape = 'f32[18,128]{1,0:T(8,128)}', space=vmem, size = 0x3000, scoped, tag = 'scratch operand']
  %s0 = inlined_call_operand.vmem [shape: f32[2,32,128], index: 0, kind: input, shape index: {}]
  %s1 = inlined_call_operand.vmem [shape: f32[3,3,132,128], index: 1, kind: input, shape index: {}]
  %s2 = inlined_call_operand.vmem [shape: f32[3,128], index: 2, kind: input, shape index: {}]
  %s3 = inlined_call_operand.vmem [shape: f32[3,3,136,128], index: 3, kind: input, shape index: {}]
  %s4 = inlined_call_operand.vmem [shape: f32[3,128], index: 4, kind: input, shape index: {}]
  %s5 = inlined_call_operand.vmem [shape: f32[3,3,144,128], index: 5, kind: input, shape index: {}]
  %s6 = inlined_call_operand.vmem [shape: f32[3,128], index: 6, kind: input, shape index: {}]
  %s7 = inlined_call_operand.vmem [shape: f32[128,128], index: 7, kind: input, shape index: {}]
  %s8 = inlined_call_operand.vmem [shape: f32[128,128], index: 8, kind: input, shape index: {}]
  %s9 = inlined_call_operand.vmem [shape: f32[2,32,128], index: 9, kind: output, shape index: {0}]
  %s10 = inlined_call_operand.vmem [shape: f32[2,16,128], index: 10, kind: output, shape index: {1}]
  %s11 = inlined_call_operand.vmem [shape: f32[2,8,128], index: 11, kind: output, shape index: {2}]
  %12 = xla_tuple %s9, %s10, %s11
  %s13 = sld [smem:[#allocation0]]
  $region85: #{encoder_forward.1} parent=0
    _
  %s15 = ssub.s32 1, %s13
  %s16 = scalar_select 0, %s15, %s13
  loop: start=0, step=1, limit=4
  $region2: #{encoder_forward.1} parent=0 // loop_pre_header
    _
  $region3: #{encoder_forward.1} parent=0 // loop_header
    %s18 = sphi 0, %s22
    %p19 = scmp.ge.s32.totalorder %s18, 4
    %s28 = sphi 0, %s30
    %s31 = sphi 0, %s28
    %s32 = sphi 0, %s31
    %s48 = sphi 0, %s32
    %s52 = sphi 0, %s52
    %s54 = sphi 0, %s52
    %s55 = sphi 0, %s54
    %s69 = sphi 0, %s55
    %s73 = sphi 0, %s73
    %s75 = sphi 0, %s73
    %s76 = sphi 0, %s75
    %s90 = sphi 0, %s76
    %s94 = sphi 0, %s94
    %s96 = sphi 0, %s94
    %s97 = sphi 0, %s96
    %s111 = sphi 0, %s97
    %s115 = sphi 0, %s115
    %s117 = sphi 0, %s115
    %s118 = sphi 0, %s117
    %s132 = sphi 0, %s118
    %s136 = sphi 0, %s136
    %s138 = sphi 0, %s136
    %s139 = sphi 0, %s138
    %s153 = sphi 0, %s139
    %s157 = sphi 0, %s157
    %s159 = sphi 0, %s157
    %s160 = sphi 0, %s159
    %s174 = sphi 0, %s160
    %s178 = sphi 0, %s178
    %s180 = sphi 0, %s178
    %s181 = sphi 0, %s180
    %s195 = sphi 0, %s181
    %s199 = sphi 0, %s199
    %s201 = sphi 0, %s199
    %s202 = sphi 0, %s201
    %s216 = sphi 0, %s202
    %s222 = sphi 0, %s224
    %s225 = sphi 0, %s222
    %s226 = sphi 0, %s225
    %s242 = sphi 0, %s226
    %s248 = sphi 0, %s250
    %s251 = sphi 0, %s248
    %s252 = sphi 0, %s251
    %s268 = sphi 0, %s252
    %s274 = sphi 0, %s276
    %s277 = sphi 0, %s274
    %s278 = sphi 0, %s277
    %s294 = sphi 0, %s278
  $region4: #{encoder_forward.1} parent=0 // loop_header_branch
    %21 = sbr.rel (%p19) target = $region8
  $region5: #{encoder_forward.1} parent=0 // loop_body
    %s23 = ssub.s32 %s18, 1
    %s24 = ssub.s32 %s18, 2
    %s25 = sadd.s32 %s18, 1
    %s26 = ssub.s32 %s18, %s25
    %p27 = scmp.eq.s32.totalorder %s26, 0
    %s29 = sadd.s32 %s28, 1
    %s30 = scalar_select %p27, %s28, %s29
    %p33 = pneg %p27
    %p34 = scmp.eq.s32.totalorder %s18, 1
    %p35 = por %p33, %p34
    %p36 = scmp.ne.s32.totalorder %s28, %s31
    %p37 = scmp.eq.s32.totalorder %s18, 0
    %p38 = por %p36, %p37
    %p39 = scmp.ne.s32.totalorder %s28, %s31
    %p40 = scmp.eq.s32.totalorder %s23, 1
    %p41 = por %p39, %p40
    %p42 = scmp.ne.s32.totalorder %s31, %s32
    %p43 = scmp.eq.s32.totalorder %s23, 0
    %p44 = por %p42, %p43
    %p45 = scmp.ne.s32.totalorder %s31, %s32
    %p46 = scmp.eq.s32.totalorder %s24, 1
    %p47 = por %p45, %p46
    %p49 = scmp.ne.s32.totalorder %s32, %s48
    %p50 = scmp.eq.s32.totalorder %s24, 0
    %p51 = por %p49, %p50
    %s53 = sadd.s32 %s52, 1
    %p56 = scmp.eq.s32.totalorder %s18, 1
    %p57 = scmp.ne.s32.totalorder %s52, %s54
    %p58 = scmp.eq.s32.totalorder %s18, 0
    %p59 = por %p57, %p58
    %p60 = scmp.ne.s32.totalorder %s52, %s54
    %p61 = scmp.eq.s32.totalorder %s23, 1
    %p62 = por %p60, %p61
    %p63 = scmp.ne.s32.totalorder %s54, %s55
    %p64 = scmp.eq.s32.totalorder %s23, 0
    %p65 = por %p63, %p64
    %p66 = scmp.ne.s32.totalorder %s54, %s55
    %p67 = scmp.eq.s32.totalorder %s24, 1
    %p68 = por %p66, %p67
    %p70 = scmp.ne.s32.totalorder %s55, %s69
    %p71 = scmp.eq.s32.totalorder %s24, 0
    %p72 = por %p70, %p71
    %s74 = sadd.s32 %s73, 1
    %p77 = scmp.eq.s32.totalorder %s18, 1
    %p78 = scmp.ne.s32.totalorder %s73, %s75
    %p79 = scmp.eq.s32.totalorder %s18, 0
    %p80 = por %p78, %p79
    %p81 = scmp.ne.s32.totalorder %s73, %s75
    %p82 = scmp.eq.s32.totalorder %s23, 1
    %p83 = por %p81, %p82
    %p84 = scmp.ne.s32.totalorder %s75, %s76
    %p85 = scmp.eq.s32.totalorder %s23, 0
    %p86 = por %p84, %p85
    %p87 = scmp.ne.s32.totalorder %s75, %s76
    %p88 = scmp.eq.s32.totalorder %s24, 1
    %p89 = por %p87, %p88
    %p91 = scmp.ne.s32.totalorder %s76, %s90
    %p92 = scmp.eq.s32.totalorder %s24, 0
    %p93 = por %p91, %p92
    %s95 = sadd.s32 %s94, 1
    %p98 = scmp.eq.s32.totalorder %s18, 1
    %p99 = scmp.ne.s32.totalorder %s94, %s96
    %p100 = scmp.eq.s32.totalorder %s18, 0
    %p101 = por %p99, %p100
    %p102 = scmp.ne.s32.totalorder %s94, %s96
    %p103 = scmp.eq.s32.totalorder %s23, 1
    %p104 = por %p102, %p103
    %p105 = scmp.ne.s32.totalorder %s96, %s97
    %p106 = scmp.eq.s32.totalorder %s23, 0
    %p107 = por %p105, %p106
    %p108 = scmp.ne.s32.totalorder %s96, %s97
    %p109 = scmp.eq.s32.totalorder %s24, 1
    %p110 = por %p108, %p109
    %p112 = scmp.ne.s32.totalorder %s97, %s111
    %p113 = scmp.eq.s32.totalorder %s24, 0
    %p114 = por %p112, %p113
    %s116 = sadd.s32 %s115, 1
    %p119 = scmp.eq.s32.totalorder %s18, 1
    %p120 = scmp.ne.s32.totalorder %s115, %s117
    %p121 = scmp.eq.s32.totalorder %s18, 0
    %p122 = por %p120, %p121
    %p123 = scmp.ne.s32.totalorder %s115, %s117
    %p124 = scmp.eq.s32.totalorder %s23, 1
    %p125 = por %p123, %p124
    %p126 = scmp.ne.s32.totalorder %s117, %s118
    %p127 = scmp.eq.s32.totalorder %s23, 0
    %p128 = por %p126, %p127
    %p129 = scmp.ne.s32.totalorder %s117, %s118
    %p130 = scmp.eq.s32.totalorder %s24, 1
    %p131 = por %p129, %p130
    %p133 = scmp.ne.s32.totalorder %s118, %s132
    %p134 = scmp.eq.s32.totalorder %s24, 0
    %p135 = por %p133, %p134
    %s137 = sadd.s32 %s136, 1
    %p140 = scmp.eq.s32.totalorder %s18, 1
    %p141 = scmp.ne.s32.totalorder %s136, %s138
    %p142 = scmp.eq.s32.totalorder %s18, 0
    %p143 = por %p141, %p142
    %p144 = scmp.ne.s32.totalorder %s136, %s138
    %p145 = scmp.eq.s32.totalorder %s23, 1
    %p146 = por %p144, %p145
    %p147 = scmp.ne.s32.totalorder %s138, %s139
    %p148 = scmp.eq.s32.totalorder %s23, 0
    %p149 = por %p147, %p148
    %p150 = scmp.ne.s32.totalorder %s138, %s139
    %p151 = scmp.eq.s32.totalorder %s24, 1
    %p152 = por %p150, %p151
    %p154 = scmp.ne.s32.totalorder %s139, %s153
    %p155 = scmp.eq.s32.totalorder %s24, 0
    %p156 = por %p154, %p155
    %s158 = sadd.s32 %s157, 1
    %p161 = scmp.eq.s32.totalorder %s18, 1
    %p162 = scmp.ne.s32.totalorder %s157, %s159
    %p163 = scmp.eq.s32.totalorder %s18, 0
    %p164 = por %p162, %p163
    %p165 = scmp.ne.s32.totalorder %s157, %s159
    %p166 = scmp.eq.s32.totalorder %s23, 1
    %p167 = por %p165, %p166
    %p168 = scmp.ne.s32.totalorder %s159, %s160
    %p169 = scmp.eq.s32.totalorder %s23, 0
    %p170 = por %p168, %p169
    %p171 = scmp.ne.s32.totalorder %s159, %s160
    %p172 = scmp.eq.s32.totalorder %s24, 1
    %p173 = por %p171, %p172
    %p175 = scmp.ne.s32.totalorder %s160, %s174
    %p176 = scmp.eq.s32.totalorder %s24, 0
    %p177 = por %p175, %p176
    %s179 = sadd.s32 %s178, 1
    %p182 = scmp.eq.s32.totalorder %s18, 1
    %p183 = scmp.ne.s32.totalorder %s178, %s180
    %p184 = scmp.eq.s32.totalorder %s18, 0
    %p185 = por %p183, %p184
    %p186 = scmp.ne.s32.totalorder %s178, %s180
    %p187 = scmp.eq.s32.totalorder %s23, 1
    %p188 = por %p186, %p187
    %p189 = scmp.ne.s32.totalorder %s180, %s181
    %p190 = scmp.eq.s32.totalorder %s23, 0
    %p191 = por %p189, %p190
    %p192 = scmp.ne.s32.totalorder %s180, %s181
    %p193 = scmp.eq.s32.totalorder %s24, 1
    %p194 = por %p192, %p193
    %p196 = scmp.ne.s32.totalorder %s181, %s195
    %p197 = scmp.eq.s32.totalorder %s24, 0
    %p198 = por %p196, %p197
    %s200 = sadd.s32 %s199, 1
    %p203 = scmp.eq.s32.totalorder %s18, 1
    %p204 = scmp.ne.s32.totalorder %s199, %s201
    %p205 = scmp.eq.s32.totalorder %s18, 0
    %p206 = por %p204, %p205
    %p207 = scmp.ne.s32.totalorder %s199, %s201
    %p208 = scmp.eq.s32.totalorder %s23, 1
    %p209 = por %p207, %p208
    %p210 = scmp.ne.s32.totalorder %s201, %s202
    %p211 = scmp.eq.s32.totalorder %s23, 0
    %p212 = por %p210, %p211
    %p213 = scmp.ne.s32.totalorder %s201, %s202
    %p214 = scmp.eq.s32.totalorder %s24, 1
    %p215 = por %p213, %p214
    %p217 = scmp.ne.s32.totalorder %s202, %s216
    %p218 = scmp.eq.s32.totalorder %s24, 0
    %p219 = por %p217, %p218
    %s220 = ssub.s32 %s18, %s25
    %p221 = scmp.eq.s32.totalorder %s220, 0
    %s223 = sadd.s32 %s222, 1
    %s224 = scalar_select %p221, %s222, %s223
    %p227 = pneg %p221
    %p228 = scmp.eq.s32.totalorder %s18, 1
    %p229 = por %p227, %p228
    %p230 = scmp.ne.s32.totalorder %s222, %s225
    %p231 = scmp.eq.s32.totalorder %s18, 0
    %p232 = por %p230, %p231
    %p233 = scmp.ne.s32.totalorder %s222, %s225
    %p234 = scmp.eq.s32.totalorder %s23, 1
    %p235 = por %p233, %p234
    %p236 = scmp.ne.s32.totalorder %s225, %s226
    %p237 = scmp.eq.s32.totalorder %s23, 0
    %p238 = por %p236, %p237
    %p239 = scmp.ne.s32.totalorder %s225, %s226
    %p240 = scmp.eq.s32.totalorder %s24, 1
    %p241 = por %p239, %p240
    %p243 = scmp.ne.s32.totalorder %s226, %s242
    %p244 = scmp.eq.s32.totalorder %s24, 0
    %p245 = por %p243, %p244
    %s246 = ssub.s32 %s18, %s25
    %p247 = scmp.eq.s32.totalorder %s246, 0
    %s249 = sadd.s32 %s248, 1
    %s250 = scalar_select %p247, %s248, %s249
    %p253 = pneg %p247
    %p254 = scmp.eq.s32.totalorder %s18, 1
    %p255 = por %p253, %p254
    %p256 = scmp.ne.s32.totalorder %s248, %s251
    %p257 = scmp.eq.s32.totalorder %s18, 0
    %p258 = por %p256, %p257
    %p259 = scmp.ne.s32.totalorder %s248, %s251
    %p260 = scmp.eq.s32.totalorder %s23, 1
    %p261 = por %p259, %p260
    %p262 = scmp.ne.s32.totalorder %s251, %s252
    %p263 = scmp.eq.s32.totalorder %s23, 0
    %p264 = por %p262, %p263
    %p265 = scmp.ne.s32.totalorder %s251, %s252
    %p266 = scmp.eq.s32.totalorder %s24, 1
    %p267 = por %p265, %p266
    %p269 = scmp.ne.s32.totalorder %s252, %s268
    %p270 = scmp.eq.s32.totalorder %s24, 0
    %p271 = por %p269, %p270
    %s272 = ssub.s32 %s18, %s25
    %p273 = scmp.eq.s32.totalorder %s272, 0
    %s275 = sadd.s32 %s274, 1
    %s276 = scalar_select %p273, %s274, %s275
    %p279 = pneg %p273
    %p280 = scmp.eq.s32.totalorder %s18, 1
    %p281 = por %p279, %p280
    %p282 = scmp.ne.s32.totalorder %s274, %s277
    %p283 = scmp.eq.s32.totalorder %s18, 0
    %p284 = por %p282, %p283
    %p285 = scmp.ne.s32.totalorder %s274, %s277
    %p286 = scmp.eq.s32.totalorder %s23, 1
    %p287 = por %p285, %p286
    %p288 = scmp.ne.s32.totalorder %s277, %s278
    %p289 = scmp.eq.s32.totalorder %s23, 0
    %p290 = por %p288, %p289
    %p291 = scmp.ne.s32.totalorder %s277, %s278
    %p292 = scmp.eq.s32.totalorder %s24, 1
    %p293 = por %p291, %p292
    %p295 = scmp.ne.s32.totalorder %s278, %s294
    %p296 = scmp.eq.s32.totalorder %s24, 0
    %p297 = por %p295, %p296
    %p298 = scmp.le.s32.totalorder 1, %s18
    %p299 = scmp.lt.s32.totalorder %s18, 3
    %p300 = pnand %p298, %p299
    %p301 = pneg %p300
    // Predicated region
    $region9: #{encoder_forward.1} parent=5 // pred_check
      _
    $region10: #{encoder_forward.1} parent=5 // pred_check_branch
      %303 = sbr.rel (%p300) target = $region12
    $region11: #{encoder_forward.1} parent=5 // pred_region
      %s304 = ssub.s32 %s18, 1
      // Predicated region
      $region13: #{encoder_forward.1} parent=11 // pred_check
        %p305 = pneg %p65
      $region14: #{encoder_forward.1} parent=11 // pred_check_branch
        %307 = sbr.rel (%p305) target = $region16
      $region15: #{encoder_forward.1} parent=11 // pred_region
        _
      $region16: #{encoder_forward.1} parent=11 // pred_fallthru
        _
      // Predicated region
      $region17: #{encoder_forward.1} parent=11 // pred_check
        %p308 = pneg %p86
      $region18: #{encoder_forward.1} parent=11 // pred_check_branch
        %310 = sbr.rel (%p308) target = $region20
      $region19: #{encoder_forward.1} parent=11 // pred_region
        _
      $region20: #{encoder_forward.1} parent=11 // pred_fallthru
        _
      // Predicated region
      $region21: #{encoder_forward.1} parent=11 // pred_check
        %p311 = pneg %p107
      $region22: #{encoder_forward.1} parent=11 // pred_check_branch
        %313 = sbr.rel (%p311) target = $region24
      $region23: #{encoder_forward.1} parent=11 // pred_region
        _
      $region24: #{encoder_forward.1} parent=11 // pred_fallthru
        _
      // Predicated region
      $region25: #{encoder_forward.1} parent=11 // pred_check
        %p314 = pneg %p128
      $region26: #{encoder_forward.1} parent=11 // pred_check_branch
        %316 = sbr.rel (%p314) target = $region28
      $region27: #{encoder_forward.1} parent=11 // pred_region
        _
      $region28: #{encoder_forward.1} parent=11 // pred_fallthru
        _
      // Predicated region
      $region29: #{encoder_forward.1} parent=11 // pred_check
        %p317 = pneg %p149
      $region30: #{encoder_forward.1} parent=11 // pred_check_branch
        %319 = sbr.rel (%p317) target = $region32
      $region31: #{encoder_forward.1} parent=11 // pred_region
        _
      $region32: #{encoder_forward.1} parent=11 // pred_fallthru
        _
      // Predicated region
      $region33: #{encoder_forward.1} parent=11 // pred_check
        %p320 = pneg %p170
      $region34: #{encoder_forward.1} parent=11 // pred_check_branch
        %322 = sbr.rel (%p320) target = $region36
      $region35: #{encoder_forward.1} parent=11 // pred_region
        _
      $region36: #{encoder_forward.1} parent=11 // pred_fallthru
        _
      // Predicated region
      $region37: #{encoder_forward.1} parent=11 // pred_check
        %p323 = pneg %p191
      $region38: #{encoder_forward.1} parent=11 // pred_check_branch
        %325 = sbr.rel (%p323) target = $region40
      $region39: #{encoder_forward.1} parent=11 // pred_region
        _
      $region40: #{encoder_forward.1} parent=11 // pred_fallthru
        _
      // Predicated region
      $region41: #{encoder_forward.1} parent=11 // pred_check
        %p326 = pneg %p212
      $region42: #{encoder_forward.1} parent=11 // pred_check_branch
        %328 = sbr.rel (%p326) target = $region44
      $region43: #{encoder_forward.1} parent=11 // pred_region
        _
      $region44: #{encoder_forward.1} parent=11 // pred_fallthru
        _
    $region12: #{encoder_forward.1} parent=5 // pred_fallthru
      _
    %p329 = scmp.lt.s32.totalorder %s18, 2
    // Predicated region
    $region45: #{encoder_forward.1} parent=5 // pred_check
      %p330 = pneg %p329
    $region46: #{encoder_forward.1} parent=5 // pred_check_branch
      %332 = sbr.rel (%p330) target = $region48
    $region47: #{encoder_forward.1} parent=5 // pred_region
      // Predicated region
      $region49: #{encoder_forward.1} parent=47 // pred_check
        %p333 = pneg %p38
      $region50: #{encoder_forward.1} parent=47 // pred_check_branch
        %335 = sbr.rel (%p333) target = $region52
      $region51: #{encoder_forward.1} parent=47 // pred_region
        %p336 = scmp.lt.s32.totalorder %s18, 1
        %s337 = scalar_select %p336, %s18, 1
        %s338 = smul.addr %s337, 4
        %s339 = smul.addr %s338, 8
        %s340 = scalar_lea.vmem %s0, %s339
      $region52: #{encoder_forward.1} parent=47 // pred_fallthru
        _
    $region48: #{encoder_forward.1} parent=5 // pred_fallthru
      _
    %p341 = scmp.le.s32.totalorder 1, %s18
    %p342 = scmp.lt.s32.totalorder %s18, 3
    %p343 = pnand %p341, %p342
    %p344 = pneg %p343
    // Predicated region
    $region53: #{encoder_forward.1} parent=5 // pred_check
      _
    $region54: #{encoder_forward.1} parent=5 // pred_check_branch
      %346 = sbr.rel (%p343) target = $region56
    $region55: #{encoder_forward.1} parent=5 // pred_region
      %s347 = ssub.s32 %s18, 1
      %p348 = scmp.lt.s32.totalorder %s23, 1
      %s349 = scalar_select %p348, %s23, 1
      %s350 = smul.addr %s349, 4
      %s351 = smul.addr %s350, 8
      %s352 = scalar_lea.vmem %s0, %s351
      %p353 = pneg %p44
      %p354 = pneg %p41
      %p355 = pneg %p65
      %p356 = pneg %p62
      %p357 = pneg %p86
      %p358 = pneg %p83
      %p359 = pneg %p107
      %p360 = pneg %p104
      %p361 = pneg %p128
      %p362 = pneg %p125
      %p363 = pneg %p149
      %p364 = pneg %p146
      %p365 = pneg %p170
      %p366 = pneg %p167
      %p367 = pneg %p191
      %p368 = pneg %p188
      %p369 = pneg %p212
      %p370 = pneg %p209
      %p371 = pneg %p238
      %p372 = pneg %p235
      %p373 = scmp.lt.s32.totalorder %s23, 1
      %s374 = scalar_select %p373, %s23, 1
      %s375 = smul.addr %s374, 4
      %s376 = smul.addr %s375, 8
      %s377 = scalar_lea.vmem %s9, %s376
      %p378 = pneg %p264
      %p379 = pneg %p261
      %p380 = scmp.lt.s32.totalorder %s23, 1
      %s381 = scalar_select %p380, %s23, 1
      %s382 = smul.addr %s381, 2
      %s383 = smul.addr %s382, 8
      %s384 = scalar_lea.vmem %s10, %s383
      %p385 = pneg %p290
      %p386 = pneg %p287
      %p387 = scmp.lt.s32.totalorder %s23, 1
      %s388 = scalar_select %p387, %s23, 1
      %s389 = smul.addr %s388, 8
      %s390 = scalar_lea.vmem %s11, %s389
      %p391 = scmp.lt.s32.totalorder %s23, 1
      %s392 = scalar_select %p391, %s23, 1
      %s393 = smul.addr %s392, 4
      %s394 = smul.addr %s393, 8
      %s395 = scalar_lea.vmem %s0, %s394
      %p396 = scmp.lt.s32.totalorder %s23, 1
      %s397 = scalar_select %p396, %s23, 1
      %s398 = smul.addr %s397, 4
      %s399 = smul.addr %s398, 8
      %s400 = scalar_lea.vmem %s9, %s399
      %p401 = scmp.lt.s32.totalorder %s23, 1
      %s402 = scalar_select %p401, %s23, 1
      %s403 = smul.addr %s402, 2
      %s404 = smul.addr %s403, 8
      %s405 = scalar_lea.vmem %s10, %s404
      %p406 = scmp.lt.s32.totalorder %s23, 1
      %s407 = scalar_select %p406, %s23, 1
      %s408 = smul.addr %s407, 8
      %s409 = scalar_lea.vmem %s11, %s408
      %v410 = vld [vmem:[%s395] sm:$0xff]
      %v411 = vld [vmem:[%s395 + $0x8] sm:$0xff]
      %v412 = vld [vmem:[%s395 + $0x10] sm:$0xff]
      %v413 = vld [vmem:[%s395 + $0x18] sm:$0xff]
      %v414 = vld [vmem:[%s2] sm:$0x1]
      %v415 = vld [vmem:[%s2 + $0x1] sm:$0x1]
      %v416 = vld [vmem:[%s2 + $0x2] sm:$0x1]
      %v417 = vlaneseq
      %vm418 = vcmp.ge.s32.totalorder %v417, 0
      %vm419 = vcmp.lt.s32.totalorder %v417, 132
      %vm420 = vmand %vm418, %vm419
      %421 = vst.msk [vmem:[#allocation2] ss:$8 sm:$0x3] %vm420, 0.0
      %422 = vst.msk [vmem:[#allocation2] ss:$8 sm:$0x0] %vm420, 0.0
      %s423 = scalar_lea.vmem [#allocation2], 65
      %424 = vst.msk [vmem:[%s423] ss:$8 sm:$0x3] %vm420, 0.0
      %425 = vst.msk [vmem:[%s423] ss:$8 sm:$0x0] %vm420, 0.0
      %vm426 = vcmask 31744
      %427 = vst.msk [vmem:[#allocation2 + $0x8] sm:$0xff] %vm426, 0.0
      %428 = vst.msk [vmem:[#allocation2 + $0x18] sm:$0xff] %vm426, 0.0
      %429 = vst.msk [vmem:[#allocation2 + $0x28] sm:$0xff] %vm426, 0.0
      %430 = vst.msk [vmem:[#allocation2 + $0x38] sm:$0xff] %vm426, 0.0
      %vm431 = vcmask 25600
      %432 = vst.msk [vmem:[#allocation2 + $0x48] sm:$0x3] %vm431, 0.0
      %vm437 = vcmask 1040384
      %v438 = vrot.slane %v410, 7
      %v439 = vrot.slane %v411, 7
      %v440 = vsel %vm437, %v438, %v439
      %v441 = vrot.slane %v412, 7
      %v442 = vsel %vm437, %v439, %v441
      %v443 = vrot.slane %v413, 7
      %v444 = vsel %vm437, %v441, %v443
      %450 = vst [vmem:[#allocation2] sm:$0xfe] %v438
      %451 = vst [vmem:[#allocation2 + $0x10] sm:$0xff] %v440
      %452 = vst [vmem:[#allocation2 + $0x20] sm:$0xff] %v442
      %453 = vst [vmem:[#allocation2 + $0x30] sm:$0xff] %v444
      %454 = vst [vmem:[#allocation2 + $0x40] sm:$0x1] %v443
      %v455 = vld [vmem:[#allocation2] sm:$0xff]
      %v456 = vld [vmem:[#allocation2 + $0x8] sm:$0xff]
      %v457 = vld [vmem:[#allocation2 + $0x10] sm:$0xff]
      %v458 = vld [vmem:[#allocation2 + $0x18] sm:$0xff]
      %v459 = vld [vmem:[#allocation2 + $0x20] sm:$0xff]
      %v460 = vld [vmem:[#allocation2 + $0x28] sm:$0xff]
      %v461 = vld [vmem:[#allocation2 + $0x30] sm:$0xff]
      %v462 = vld [vmem:[#allocation2 + $0x38] sm:$0xff]
      %v463 = vld [vmem:[%s1] sm:$0xff]
      %v464 = vld [vmem:[%s1 + $0x8] sm:$0xff]
      %v465 = vld [vmem:[%s1 + $0x10] sm:$0xff]
      %v466 = vld [vmem:[%s1 + $0x18] sm:$0xff]
      %v467 = vld [vmem:[%s1 + $0x20] sm:$0xff]
      %v468 = vld [vmem:[%s1 + $0x28] sm:$0xff]
      %v469 = vld [vmem:[%s1 + $0x30] sm:$0xff]
      %v470 = vld [vmem:[%s1 + $0x38] sm:$0xff]
      %v471 = vld [vmem:[%s1 + $0x40] sm:$0xff]
      %v472 = vld [vmem:[%s1 + $0x48] sm:$0xff]
      %v473 = vld [vmem:[%s1 + $0x50] sm:$0xff]
      %v474 = vld [vmem:[%s1 + $0x58] sm:$0xff]
      %v475 = vld [vmem:[%s1 + $0x60] sm:$0xff]
      %v476 = vld [vmem:[%s1 + $0x68] sm:$0xff]
      %v477 = vld [vmem:[%s1 + $0x70] sm:$0xff]
      %v478 = vld [vmem:[%s1 + $0x78] sm:$0xff]
      %v479 = vld [vmem:[%s1 + $0x80] sm:$0xf]
      %v480 = vld [vmem:[#allocation2] sm:$0xfe]
      %v481 = vld [vmem:[#allocation2 + $0x8] sm:$0xfe]
      %v482 = vld [vmem:[#allocation2 + $0x40] sm:$0x1]
      %v483 = vld [vmem:[#allocation2 + $0x48] sm:$0x1]
      %s484 = scalar_lea.vmem %s1, 136
      %v485 = vld [vmem:[%s484] sm:$0xff]
      %v486 = vld [vmem:[%s484 + $0x8] sm:$0xff]
      %v487 = vld [vmem:[%s484 + $0x10] sm:$0xff]
      %v488 = vld [vmem:[%s484 + $0x18] sm:$0xff]
      %v489 = vld [vmem:[%s484 + $0x20] sm:$0xff]
      %v490 = vld [vmem:[%s484 + $0x28] sm:$0xff]
      %v491 = vld [vmem:[%s484 + $0x30] sm:$0xff]
      %v492 = vld [vmem:[%s484 + $0x38] sm:$0xff]
      %v493 = vld [vmem:[%s484 + $0x40] sm:$0xff]
      %v494 = vld [vmem:[%s484 + $0x48] sm:$0xff]
      %v495 = vld [vmem:[%s484 + $0x50] sm:$0xff]
      %v496 = vld [vmem:[%s484 + $0x58] sm:$0xff]
      %v497 = vld [vmem:[%s484 + $0x60] sm:$0xff]
      %v498 = vld [vmem:[%s484 + $0x68] sm:$0xff]
      %v499 = vld [vmem:[%s484 + $0x70] sm:$0xff]
      %v500 = vld [vmem:[%s484 + $0x78] sm:$0xff]
      %v501 = vld [vmem:[%s484 + $0x80] sm:$0xf]
      %vm512 = vcmask 1046528
      %v513 = vrot.slane %v480, 1
      %v514 = vrot.slane %v457, 1
      %v515 = vsel %vm512, %v513, %v514
      %v516 = vrot.slane %v481, 1
      %v517 = vrot.slane %v458, 1
      %v518 = vsel %vm512, %v516, %v517
      %v519 = vrot.slane %v459, 1
      %v520 = vsel %vm512, %v514, %v519
      %v521 = vrot.slane %v460, 1
      %v522 = vsel %vm512, %v517, %v521
      %v523 = vrot.slane %v461, 1
      %v524 = vsel %vm512, %v519, %v523
      %v525 = vrot.slane %v462, 1
      %v526 = vsel %vm512, %v521, %v525
      %v527 = vrot.slane %v482, 1
      %v528 = vsel %vm512, %v523, %v527
      %v529 = vrot.slane %v483, 1
      %v530 = vsel %vm512, %v525, %v529
      %v535 = vsel %vm426, %v518, 0
      %v537 = vsel %vm426, %v522, 0
      %v539 = vsel %vm426, %v526, 0
      %v541 = vsel %vm426, %v530, 0
      %vm543 = vcmask 1043456
      %v545 = vsel %vm543, %v501, 0
      %547 = vmatpush.msra.mxu0 %v500
      %548 = vmatpush.msra.mxu0 %v499
      %549 = vmatpush.msra.mxu0 %v498
      %550 = vmatpush.msra.mxu0 %v497
      %551 = vmatpush.msra.mxu0 %v496
      %552 = vmatpush.msra.mxu0 %v495
      %553 = vmatpush.msra.mxu0 %v494
      %554 = vmatpush.msra.mxu0 %v493
      %555 = vmatpush.msra.mxu0 %v492
      %556 = vmatpush.msra.mxu0 %v491
      %557 = vmatpush.msra.mxu0 %v490
      %558 = vmatpush.msra.mxu0 %v489
      %559 = vmatpush.msra.mxu0 %v488
      %560 = vmatpush.msra.mxu0 %v487
      %561 = vmatpush.msra.mxu0 %v486
      %562 = vmatpush.msra.mxu0 %v485
      %563 = vmatmul.f32.gmra.mxu0 %v515
      %v564 = vpop.f32.mrf.mxu0
      %v565 = vadd.f32 0.0, %v564
      %566 = vmatmul.f32.gmra.mxu0 %v520
      %v567 = vpop.f32.mrf.mxu0
      %v568 = vadd.f32 0.0, %v567
      %569 = vmatmul.f32.gmra.mxu0 %v524
      %v570 = vpop.f32.mrf.mxu0
      %v571 = vadd.f32 0.0, %v570
      %572 = vmatmul.f32.gmra.mxu0 %v528
      %v573 = vpop.f32.mrf.mxu0
      %v574 = vadd.f32 0.0, %v573
      %575 = vdwg.mxu0
      %576 = vmatpush.msra.mxu0 0.0
      %577 = vmatpush.msra.mxu0 0.0
      %578 = vmatpush.msra.mxu0 0.0
      %579 = vmatpush.msra.mxu0 0.0
      %580 = vmatpush.msra.mxu0 0.0
      %581 = vmatpush.msra.mxu0 0.0
      %582 = vmatpush.msra.mxu0 0.0
      %583 = vmatpush.msra.mxu0 0.0
      %584 = vmatpush.msra.mxu0 0.0
      %585 = vmatpush.msra.mxu0 0.0
      %586 = vmatpush.msra.mxu0 0.0
      %587 = vmatpush.msra.mxu0 0.0
      %588 = vmatpush.msra.mxu0 0.0
      %589 = vmatpush.msra.mxu0 0.0
      %590 = vmatpush.msra.mxu0 0.0
      %591 = vmatpush.msra.mxu0 %v545
      %592 = vmatmul.f32.gmra.mxu0 %v535
      %v593 = vpop.f32.mrf.mxu0
      %v594 = vadd.f32 %v565, %v593
      %595 = vmatmul.f32.gmra.mxu0 %v537
      %v596 = vpop.f32.mrf.mxu0
      %v597 = vadd.f32 %v568, %v596
      %598 = vmatmul.f32.gmra.mxu0 %v539
      %v599 = vpop.f32.mrf.mxu0
      %v600 = vadd.f32 %v571, %v599
      %601 = vmatmul.f32.gmra.mxu0 %v541
      %v602 = vpop.f32.mrf.mxu0
      %v603 = vadd.f32 %v574, %v602
      %604 = vdwg.mxu0
      %v606 = vsel %vm426, %v456, 0
      %v608 = vsel %vm426, %v458, 0
      %v610 = vsel %vm426, %v460, 0
      %v612 = vsel %vm426, %v462, 0
      %v615 = vsel %vm543, %v479, 0
      %617 = vmatpush.msra.mxu0 %v478
      %618 = vmatpush.msra.mxu0 %v477
      %619 = vmatpush.msra.mxu0 %v476
      %620 = vmatpush.msra.mxu0 %v475
      %621 = vmatpush.msra.mxu0 %v474
      %622 = vmatpush.msra.mxu0 %v473
      %623 = vmatpush.msra.mxu0 %v472
      %624 = vmatpush.msra.mxu0 %v471
      %625 = vmatpush.msra.mxu0 %v470
      %626 = vmatpush.msra.mxu0 %v469
      %627 = vmatpush.msra.mxu0 %v468
      %628 = vmatpush.msra.mxu0 %v467
      %629 = vmatpush.msra.mxu0 %v466
      %630 = vmatpush.msra.mxu0 %v465
      %631 = vmatpush.msra.mxu0 %v464
      %632 = vmatpush.msra.mxu0 %v463
      %633 = vmatmul.f32.gmra.mxu0 %v455
      %v634 = vpop.f32.mrf.mxu0
      %v635 = vadd.f32 %v594, %v634
      %636 = vmatmul.f32.gmra.mxu0 %v457
      %v637 = vpop.f32.mrf.mxu0
      %v638 = vadd.f32 %v597, %v637
      %639 = vmatmul.f32.gmra.mxu0 %v459
      %v640 = vpop.f32.mrf.mxu0
      %v641 = vadd.f32 %v600, %v640
      %642 = vmatmul.f32.gmra.mxu0 %v461
      %v643 = vpop.f32.mrf.mxu0
      %v644 = vadd.f32 %v603, %v643
      %645 = vdwg.mxu0
      %646 = vmatpush.msra.mxu0 0.0
      %647 = vmatpush.msra.mxu0 0.0
      %648 = vmatpush.msra.mxu0 0.0
      %649 = vmatpush.msra.mxu0 0.0
      %650 = vmatpush.msra.mxu0 0.0
      %651 = vmatpush.msra.mxu0 0.0
      %652 = vmatpush.msra.mxu0 0.0
      %653 = vmatpush.msra.mxu0 0.0
      %654 = vmatpush.msra.mxu0 0.0
      %655 = vmatpush.msra.mxu0 0.0
      %656 = vmatpush.msra.mxu0 0.0
      %657 = vmatpush.msra.mxu0 0.0
      %658 = vmatpush.msra.mxu0 0.0
      %659 = vmatpush.msra.mxu0 0.0
      %660 = vmatpush.msra.mxu0 0.0
      %661 = vmatpush.msra.mxu0 %v615
      %662 = vmatmul.f32.gmra.mxu0 %v606
      %v663 = vpop.f32.mrf.mxu0
      %v664 = vadd.f32 %v635, %v663
      %665 = vmatmul.f32.gmra.mxu0 %v608
      %v666 = vpop.f32.mrf.mxu0
      %v667 = vadd.f32 %v638, %v666
      %668 = vmatmul.f32.gmra.mxu0 %v610
      %v669 = vpop.f32.mrf.mxu0
      %v670 = vadd.f32 %v641, %v669
      %671 = vmatmul.f32.gmra.mxu0 %v612
      %v672 = vpop.f32.mrf.mxu0
      %v673 = vadd.f32 %v644, %v672
      %674 = vdwg.mxu0
      %v675 = vld [vmem:[#allocation2] sm:$0xfc]
      %v676 = vld [vmem:[#allocation2 + $0x8] sm:$0xfc]
      %v677 = vld [vmem:[#allocation2 + $0x40] sm:$0x3]
      %v678 = vld [vmem:[#allocation2 + $0x48] sm:$0x3]
      %s679 = scalar_lea.vmem %s1, 272
      %v680 = vld [vmem:[%s679] sm:$0xff]
      %v681 = vld [vmem:[%s679 + $0x8] sm:$0xff]
      %v682 = vld [vmem:[%s679 + $0x10] sm:$0xff]
      %v683 = vld [vmem:[%s679 + $0x18] sm:$0xff]
      %v684 = vld [vmem:[%s679 + $0x20] sm:$0xff]
      %v685 = vld [vmem:[%s679 + $0x28] sm:$0xff]
      %v686 = vld [vmem:[%s679 + $0x30] sm:$0xff]
      %v687 = vld [vmem:[%s679 + $0x38] sm:$0xff]
      %v688 = vld [vmem:[%s679 + $0x40] sm:$0xff]
      %v689 = vld [vmem:[%s679 + $0x48] sm:$0xff]
      %v690 = vld [vmem:[%s679 + $0x50] sm:$0xff]
      %v691 = vld [vmem:[%s679 + $0x58] sm:$0xff]
      %v692 = vld [vmem:[%s679 + $0x60] sm:$0xff]
      %v693 = vld [vmem:[%s679 + $0x68] sm:$0xff]
      %v694 = vld [vmem:[%s679 + $0x70] sm:$0xff]
      %v695 = vld [vmem:[%s679 + $0x78] sm:$0xff]
      %v696 = vld [vmem:[%s679 + $0x80] sm:$0xf]
      %vm701 = vcmask 1045504
      %v702 = vrot.slane %v675, 2
      %v703 = vrot.slane %v457, 2
      %v704 = vsel %vm701, %v702, %v703
      %v705 = vrot.slane %v676, 2
      %v706 = vrot.slane %v458, 2
      %v707 = vsel %vm701, %v705, %v706
      %v708 = vrot.slane %v459, 2
      %v709 = vsel %vm701, %v703, %v708
      %v710 = vrot.slane %v460, 2
      %v711 = vsel %vm701, %v706, %v710
      %v712 = vrot.slane %v461, 2
      %v713 = vsel %vm701, %v708, %v712
      %v714 = vrot.slane %v462, 2
      %v715 = vsel %vm701, %v710, %v714
      %v716 = vrot.slane %v677, 2
      %v717 = vsel %vm701, %v712, %v716
      %v718 = vrot.slane %v678, 2
      %v719 = vsel %vm701, %v714, %v718
      %v724 = vsel %vm426, %v707, 0
      %v726 = vsel %vm426, %v711, 0
      %v728 = vsel %vm426, %v715, 0
      %v730 = vsel %vm426, %v719, 0
      %v733 = vsel %vm543, %v696, 0
      %735 = vmatpush.msra.mxu0 %v695
      %736 = vmatpush.msra.mxu0 %v694
      %737 = vmatpush.msra.mxu0 %v693
      %738 = vmatpush.msra.mxu0 %v692
      %739 = vmatpush.msra.mxu0 %v691
      %740 = vmatpush.msra.mxu0 %v690
      %741 = vmatpush.msra.mxu0 %v689
      %742 = vmatpush.msra.mxu0 %v688
      %743 = vmatpush.msra.mxu0 %v687
      %744 = vmatpush.msra.mxu0 %v686
      %745 = vmatpush.msra.mxu0 %v685
      %746 = vmatpush.msra.mxu0 %v684
      %747 = vmatpush.msra.mxu0 %v683
      %748 = vmatpush.msra.mxu0 %v682
      %749 = vmatpush.msra.mxu0 %v681
      %750 = vmatpush.msra.mxu0 %v680
      %751 = vmatmul.f32.gmra.mxu0 %v704
      %v752 = vpop.f32.mrf.mxu0
      %v753 = vadd.f32 0.0, %v752
      %754 = vmatmul.f32.gmra.mxu0 %v709
      %v755 = vpop.f32.mrf.mxu0
      %v756 = vadd.f32 0.0, %v755
      %757 = vmatmul.f32.gmra.mxu0 %v713
      %v758 = vpop.f32.mrf.mxu0
      %v759 = vadd.f32 0.0, %v758
      %760 = vmatmul.f32.gmra.mxu0 %v717
      %v761 = vpop.f32.mrf.mxu0
      %v762 = vadd.f32 0.0, %v761
      %763 = vdwg.mxu0
      %764 = vmatpush.msra.mxu0 0.0
      %765 = vmatpush.msra.mxu0 0.0
      %766 = vmatpush.msra.mxu0 0.0
      %767 = vmatpush.msra.mxu0 0.0
      %768 = vmatpush.msra.mxu0 0.0
      %769 = vmatpush.msra.mxu0 0.0
      %770 = vmatpush.msra.mxu0 0.0
      %771 = vmatpush.msra.mxu0 0.0
      %772 = vmatpush.msra.mxu0 0.0
      %773 = vmatpush.msra.mxu0 0.0
      %774 = vmatpush.msra.mxu0 0.0
      %775 = vmatpush.msra.mxu0 0.0
      %776 = vmatpush.msra.mxu0 0.0
      %777 = vmatpush.msra.mxu0 0.0
      %778 = vmatpush.msra.mxu0 0.0
      %779 = vmatpush.msra.mxu0 %v733
      %780 = vmatmul.f32.gmra.mxu0 %v724
      %v781 = vpop.f32.mrf.mxu0
      %v782 = vadd.f32 %v753, %v781
      %783 = vmatmul.f32.gmra.mxu0 %v726
      %v784 = vpop.f32.mrf.mxu0
      %v785 = vadd.f32 %v756, %v784
      %786 = vmatmul.f32.gmra.mxu0 %v728
      %v787 = vpop.f32.mrf.mxu0
      %v788 = vadd.f32 %v759, %v787
      %789 = vmatmul.f32.gmra.mxu0 %v730
      %v790 = vpop.f32.mrf.mxu0
      %v791 = vadd.f32 %v762, %v790
      %792 = vdwg.mxu0
      %v793 = vadd.f32 %v664, %v782
      %v794 = vadd.f32 %v667, %v785
      %v795 = vadd.f32 %v670, %v788
      %v796 = vadd.f32 %v673, %v791
      %v797 = vadd.f32 %v793, %v794
      %v798 = vadd.f32 %v797, %v795
      %v799 = vadd.f32 %v798, %v796
      %800 = vadd.xlane.f32.xlu0 %v799
      %v801 = vpop.xlane.xlu0 %800
      %v802 = vrot.slane %v801, 4
      %v803 = vadd.f32 %v801, %v802
      %v804 = vrot.slane %v803, 2
      %v805 = vadd.f32 %v803, %v804
      %v806 = vrot.slane %v805, 1
      %v807 = vadd.f32 %v805, %v806
      %s808 = vtos %v807
      %s809 = smul.f32 %s808, 0.00024414063
      %v810 = vmul.f32 %v793, %v793
      %v811 = vmul.f32 %v794, %v794
      %v812 = vmul.f32 %v795, %v795
      %v813 = vmul.f32 %v796, %v796
      %v814 = vadd.f32 %v810, %v811
      %v815 = vadd.f32 %v814, %v812
      %v816 = vadd.f32 %v815, %v813
      %817 = vadd.xlane.f32.xlu0 %v816
      %v818 = vpop.xlane.xlu0 %817
      %v819 = vrot.slane %v818, 4
      %v820 = vadd.f32 %v818, %v819
      %v821 = vrot.slane %v820, 2
      %v822 = vadd.f32 %v820, %v821
      %v823 = vrot.slane %v822, 1
      %v824 = vadd.f32 %v822, %v823
      %s825 = vtos %v824
      %s826 = smul.f32 %s825, 0.00024414063
      %s827 = smul.f32 %s809, %s809
      %s828 = ssub.f32 %s826, %s827
      %s829 = sadd.f32 %s828, 1e-05
      %v830 = vstv %s829
      %v831 = vrsqrt.pop %v830
      %v832 = vmul.f32 %v831, %v830
      %v833 = vmul.f32 %v832, %v831
      %v834 = vmul.f32 0.5, %v833
      %v835 = vsub.f32 1.5, %v834
      %v836 = vmul.f32 %v831, %v835
      %vm837 = vweird.f32 %v830
      %vm838 = vweird.f32 %v831
      %vm839 = vmor %vm837, %vm838
      %v840 = vsel %vm839, %v831, %v836
      %s841 = vtos %v840
      %v842 = vstv %s841
      %v843 = vmul.f32 %v842, %v414
      %v844 = vstv %s809
      %v845 = vsub.f32 %v793, %v844
      %v846 = vsub.f32 %v794, %v844
      %v847 = vsub.f32 %v795, %v844
      %v848 = vsub.f32 %v796, %v844
      %v849 = vperm.slane %v843, 0
      %v850 = vmul.f32 %v845, %v849
      %v851 = vmul.f32 %v846, %v849
      %v852 = vmul.f32 %v847, %v849
      %v853 = vmul.f32 %v848, %v849
      %v854 = vperm.slane %v415, 0
      %v855 = vadd.f32 %v850, %v854
      %v856 = vadd.f32 %v851, %v854
      %v857 = vadd.f32 %v852, %v854
      %v858 = vadd.f32 %v853, %v854
      %vm859 = vcmp.ge.f32.partialorder %v855, 0.0
      %vm860 = vcmp.ge.f32.partialorder %v856, 0.0
      %vm861 = vcmp.ge.f32.partialorder %v857, 0.0
      %vm862 = vcmp.ge.f32.partialorder %v858, 0.0
      %v863 = vperm.slane %v416, 0
      %v864 = vmul.f32 %v863, %v855
      %v865 = vmul.f32 %v863, %v856
      %v866 = vmul.f32 %v863, %v857
      %v867 = vmul.f32 %v863, %v858
      %v868 = vsel %vm859, %v855, %v864
      %v869 = vsel %vm860, %v856, %v865
      %v870 = vsel %vm861, %v857, %v866
      %v871 = vsel %vm862, %v858, %v867
      %v876 = vrot.slane %v868, 7
      %v877 = vrot.slane %v869, 7
      %v878 = vsel %vm437, %v876, %v877
      %v879 = vrot.slane %v870, 7
      %v880 = vsel %vm437, %v877, %v879
      %v881 = vrot.slane %v871, 7
      %v882 = vsel %vm437, %v879, %v881
      %888 = vst [vmem:[#allocation2] sm:$0xfe] %v876
      %889 = vst [vmem:[#allocation2 + $0x10] sm:$0xff] %v878
      %890 = vst [vmem:[#allocation2 + $0x20] sm:$0xff] %v880
      %891 = vst [vmem:[#allocation2 + $0x30] sm:$0xff] %v882
      %892 = vst [vmem:[#allocation2 + $0x40] sm:$0x1] %v881
      %v893 = vld [vmem:[#allocation2] sm:$0xff]
      %v894 = vld [vmem:[#allocation2 + $0x8] sm:$0xff]
      %v895 = vld [vmem:[#allocation2 + $0x10] sm:$0xff]
      %v896 = vld [vmem:[#allocation2 + $0x18] sm:$0xff]
      %v897 = vld [vmem:[#allocation2 + $0x20] sm:$0xff]
      %v898 = vld [vmem:[#allocation2 + $0x28] sm:$0xff]
      %v899 = vld [vmem:[#allocation2 + $0x30] sm:$0xff]
      %v900 = vld [vmem:[#allocation2 + $0x38] sm:$0xff]
      %s901 = scalar_lea.vmem %s1, 408
      %v902 = vld [vmem:[%s901] sm:$0xff]
      %v903 = vld [vmem:[%s901 + $0x8] sm:$0xff]
      %v904 = vld [vmem:[%s901 + $0x10] sm:$0xff]
      %v905 = vld [vmem:[%s901 + $0x18] sm:$0xff]
      %v906 = vld [vmem:[%s901 + $0x20] sm:$0xff]
      %v907 = vld [vmem:[%s901 + $0x28] sm:$0xff]
      %v908 = vld [vmem:[%s901 + $0x30] sm:$0xff]
      %v909 = vld [vmem:[%s901 + $0x38] sm:$0xff]
      %v910 = vld [vmem:[%s901 + $0x40] sm:$0xff]
      %v911 = vld [vmem:[%s901 + $0x48] sm:$0xff]
      %v912 = vld [vmem:[%s901 + $0x50] sm:$0xff]
      %v913 = vld [vmem:[%s901 + $0x58] sm:$0xff]
      %v914 = vld [vmem:[%s901 + $0x60] sm:$0xff]
      %v915 = vld [vmem:[%s901 + $0x68] sm:$0xff]
      %v916 = vld [vmem:[%s901 + $0x70] sm:$0xff]
      %v917 = vld [vmem:[%s901 + $0x78] sm:$0xff]
      %v918 = vld [vmem:[%s901 + $0x80] sm:$0xf]
      %v919 = vld [vmem:[#allocation2] sm:$0xfe]
      %v920 = vld [vmem:[#allocation2 + $0x8] sm:$0xfe]
      %v921 = vld [vmem:[#allocation2 + $0x40] sm:$0x1]
      %v922 = vld [vmem:[#allocation2 + $0x48] sm:$0x1]
      %s923 = scalar_lea.vmem %s1, 544
      %v924 = vld [vmem:[%s923] sm:$0xff]
      %v925 = vld [vmem:[%s923 + $0x8] sm:$0xff]
      %v926 = vld [vmem:[%s923 + $0x10] sm:$0xff]
      %v927 = vld [vmem:[%s923 + $0x18] sm:$0xff]
      %v928 = vld [vmem:[%s923 + $0x20] sm:$0xff]
      %v929 = vld [vmem:[%s923 + $0x28] sm:$0xff]
      %v930 = vld [vmem:[%s923 + $0x30] sm:$0xff]
      %v931 = vld [vmem:[%s923 + $0x38] sm:$0xff]
      %v932 = vld [vmem:[%s923 + $0x40] sm:$0xff]
      %v933 = vld [vmem:[%s923 + $0x48] sm:$0xff]
      %v934 = vld [vmem:[%s923 + $0x50] sm:$0xff]
      %v935 = vld [vmem:[%s923 + $0x58] sm:$0xff]
      %v936 = vld [vmem:[%s923 + $0x60] sm:$0xff]
      %v937 = vld [vmem:[%s923 + $0x68] sm:$0xff]
      %v938 = vld [vmem:[%s923 + $0x70] sm:$0xff]
      %v939 = vld [vmem:[%s923 + $0x78] sm:$0xff]
      %v940 = vld [vmem:[%s923 + $0x80] sm:$0xf]
      %v951 = vrot.slane %v919, 1
      %v952 = vrot.slane %v895, 1
      %v953 = vsel %vm512, %v951, %v952
      %v954 = vrot.slane %v920, 1
      %v955 = vrot.slane %v896, 1
      %v956 = vsel %vm512, %v954, %v955
      %v957 = vrot.slane %v897, 1
      %v958 = vsel %vm512, %v952, %v957
      %v959 = vrot.slane %v898, 1
      %v960 = vsel %vm512, %v955, %v959
      %v961 = vrot.slane %v899, 1
      %v962 = vsel %vm512, %v957, %v961
      %v963 = vrot.slane %v900, 1
      %v964 = vsel %vm512, %v959, %v963
      %v965 = vrot.slane %v921, 1
      %v966 = vsel %vm512, %v961, %v965
      %v967 = vrot.slane %v922, 1
      %v968 = vsel %vm512, %v963, %v967
      %v973 = vsel %vm426, %v956, 0
      %v975 = vsel %vm426, %v960, 0
      %v977 = vsel %vm426, %v964, 0
      %v979 = vsel %vm426, %v968, 0
      %v982 = vsel %vm543, %v940, 0
      %984 = vmatpush.msra.mxu0 %v939
      %985 = vmatpush.msra.mxu0 %v938
      %986 = vmatpush.msra.mxu0 %v937
      %987 = vmatpush.msra.mxu0 %v936
      %988 = vmatpush.msra.mxu0 %v935
      %989 = vmatpush.msra.mxu0 %v934
      %990 = vmatpush.msra.mxu0 %v933
      %991 = vmatpush.msra.mxu0 %v932
      %992 = vmatpush.msra.mxu0 %v931
      %993 = vmatpush.msra.mxu0 %v930
      %994 = vmatpush.msra.mxu0 %v929
      %995 = vmatpush.msra.mxu0 %v928
      %996 = vmatpush.msra.mxu0 %v927
      %997 = vmatpush.msra.mxu0 %v926
      %998 = vmatpush.msra.mxu0 %v925
      %999 = vmatpush.msra.mxu0 %v924
      %1000 = vmatmul.f32.gmra.mxu0 %v953
      %v1001 = vpop.f32.mrf.mxu0
      %v1002 = vadd.f32 0.0, %v1001
      %1003 = vmatmul.f32.gmra.mxu0 %v958
      %v1004 = vpop.f32.mrf.mxu0
      %v1005 = vadd.f32 0.0, %v1004
      %1006 = vmatmul.f32.gmra.mxu0 %v962
      %v1007 = vpop.f32.mrf.mxu0
      %v1008 = vadd.f32 0.0, %v1007
      %1009 = vmatmul.f32.gmra.mxu0 %v966
      %v1010 = vpop.f32.mrf.mxu0
      %v1011 = vadd.f32 0.0, %v1010
      %1012 = vdwg.mxu0
      %1013 = vmatpush.msra.mxu0 0.0
      %1014 = vmatpush.msra.mxu0 0.0
      %1015 = vmatpush.msra.mxu0 0.0
      %1016 = vmatpush.msra.mxu0 0.0
      %1017 = vmatpush.msra.mxu0 0.0
      %1018 = vmatpush.msra.mxu0 0.0
      %1019 = vmatpush.msra.mxu0 0.0
      %1020 = vmatpush.msra.mxu0 0.0
      %1021 = vmatpush.msra.mxu0 0.0
      %1022 = vmatpush.msra.mxu0 0.0
      %1023 = vmatpush.msra.mxu0 0.0
      %1024 = vmatpush.msra.mxu0 0.0
      %1025 = vmatpush.msra.mxu0 0.0
      %1026 = vmatpush.msra.mxu0 0.0
      %1027 = vmatpush.msra.mxu0 0.0
      %1028 = vmatpush.msra.mxu0 %v982
      %1029 = vmatmul.f32.gmra.mxu0 %v973
      %v1030 = vpop.f32.mrf.mxu0
      %v1031 = vadd.f32 %v1002, %v1030
      %1032 = vmatmul.f32.gmra.mxu0 %v975
      %v1033 = vpop.f32.mrf.mxu0
      %v1034 = vadd.f32 %v1005, %v1033
      %1035 = vmatmul.f32.gmra.mxu0 %v977
      %v1036 = vpop.f32.mrf.mxu0
      %v1037 = vadd.f32 %v1008, %v1036
      %1038 = vmatmul.f32.gmra.mxu0 %v979
      %v1039 = vpop.f32.mrf.mxu0
      %v1040 = vadd.f32 %v1011, %v1039
      %1041 = vdwg.mxu0
      %v1043 = vsel %vm426, %v894, 0
      %v1045 = vsel %vm426, %v896, 0
      %v1047 = vsel %vm426, %v898, 0
      %v1049 = vsel %vm426, %v900, 0
      %v1052 = vsel %vm543, %v918, 0
      %1054 = vmatpush.msra.mxu0 %v917
      %1055 = vmatpush.msra.mxu0 %v916
      %1056 = vmatpush.msra.mxu0 %v915
      %1057 = vmatpush.msra.mxu0 %v914
      %1058 = vmatpush.msra.mxu0 %v913
      %1059 = vmatpush.msra.mxu0 %v912
      %1060 = vmatpush.msra.mxu0 %v911
      %1061 = vmatpush.msra.mxu0 %v910
      %1062 = vmatpush.msra.mxu0 %v909
      %1063 = vmatpush.msra.mxu0 %v908
      %1064 = vmatpush.msra.mxu0 %v907
      %1065 = vmatpush.msra.mxu0 %v906
      %1066 = vmatpush.msra.mxu0 %v905
      %1067 = vmatpush.msra.mxu0 %v904
      %1068 = vmatpush.msra.mxu0 %v903
      %1069 = vmatpush.msra.mxu0 %v902
      %1070 = vmatmul.f32.gmra.mxu0 %v893
      %v1071 = vpop.f32.mrf.mxu0
      %v1072 = vadd.f32 %v1031, %v1071
      %1073 = vmatmul.f32.gmra.mxu0 %v895
      %v1074 = vpop.f32.mrf.mxu0
      %v1075 = vadd.f32 %v1034, %v1074
      %1076 = vmatmul.f32.gmra.mxu0 %v897
      %v1077 = vpop.f32.mrf.mxu0
      %v1078 = vadd.f32 %v1037, %v1077
      %1079 = vmatmul.f32.gmra.mxu0 %v899
      %v1080 = vpop.f32.mrf.mxu0
      %v1081 = vadd.f32 %v1040, %v1080
      %1082 = vdwg.mxu0
      %1083 = vmatpush.msra.mxu0 0.0
      %1084 = vmatpush.msra.mxu0 0.0
      %1085 = vmatpush.msra.mxu0 0.0
      %1086 = vmatpush.msra.mxu0 0.0
      %1087 = vmatpush.msra.mxu0 0.0
      %1088 = vmatpush.msra.mxu0 0.0
      %1089 = vmatpush.msra.mxu0 0.0
      %1090 = vmatpush.msra.mxu0 0.0
      %1091 = vmatpush.msra.mxu0 0.0
      %1092 = vmatpush.msra.mxu0 0.0
      %1093 = vmatpush.msra.mxu0 0.0
      %1094 = vmatpush.msra.mxu0 0.0
      %1095 = vmatpush.msra.mxu0 0.0
      %1096 = vmatpush.msra.mxu0 0.0
      %1097 = vmatpush.msra.mxu0 0.0
      %1098 = vmatpush.msra.mxu0 %v1052
      %1099 = vmatmul.f32.gmra.mxu0 %v1043
      %v1100 = vpop.f32.mrf.mxu0
      %v1101 = vadd.f32 %v1072, %v1100
      %1102 = vmatmul.f32.gmra.mxu0 %v1045
      %v1103 = vpop.f32.mrf.mxu0
      %v1104 = vadd.f32 %v1075, %v1103
      %1105 = vmatmul.f32.gmra.mxu0 %v1047
      %v1106 = vpop.f32.mrf.mxu0
      %v1107 = vadd.f32 %v1078, %v1106
      %1108 = vmatmul.f32.gmra.mxu0 %v1049
      %v1109 = vpop.f32.mrf.mxu0
      %v1110 = vadd.f32 %v1081, %v1109
      %1111 = vdwg.mxu0
      %v1112 = vld [vmem:[#allocation2] sm:$0xfc]
      %v1113 = vld [vmem:[#allocation2 + $0x8] sm:$0xfc]
      %v1114 = vld [vmem:[#allocation2 + $0x40] sm:$0x3]
      %v1115 = vld [vmem:[#allocation2 + $0x48] sm:$0x3]
      %s1116 = scalar_lea.vmem %s1, 680
      %v1117 = vld [vmem:[%s1116] sm:$0xff]
      %v1118 = vld [vmem:[%s1116 + $0x8] sm:$0xff]
      %v1119 = vld [vmem:[%s1116 + $0x10] sm:$0xff]
      %v1120 = vld [vmem:[%s1116 + $0x18] sm:$0xff]
      %v1121 = vld [vmem:[%s1116 + $0x20] sm:$0xff]
      %v1122 = vld [vmem:[%s1116 + $0x28] sm:$0xff]
      %v1123 = vld [vmem:[%s1116 + $0x30] sm:$0xff]
      %v1124 = vld [vmem:[%s1116 + $0x38] sm:$0xff]
      %v1125 = vld [vmem:[%s1116 + $0x40] sm:$0xff]
      %v1126 = vld [vmem:[%s1116 + $0x48] sm:$0xff]
      %v1127 = vld [vmem:[%s1116 + $0x50] sm:$0xff]
      %v1128 = vld [vmem:[%s1116 + $0x58] sm:$0xff]
      %v1129 = vld [vmem:[%s1116 + $0x60] sm:$0xff]
      %v1130 = vld [vmem:[%s1116 + $0x68] sm:$0xff]
      %v1131 = vld [vmem:[%s1116 + $0x70] sm:$0xff]
      %v1132 = vld [vmem:[%s1116 + $0x78] sm:$0xff]
      %v1133 = vld [vmem:[%s1116 + $0x80] sm:$0xf]
      %v1138 = vrot.slane %v1112, 2
      %v1139 = vrot.slane %v895, 2
      %v1140 = vsel %vm701, %v1138, %v1139
      %v1141 = vrot.slane %v1113, 2
      %v1142 = vrot.slane %v896, 2
      %v1143 = vsel %vm701, %v1141, %v1142
      %v1144 = vrot.slane %v897, 2
      %v1145 = vsel %vm701, %v1139, %v1144
      %v1146 = vrot.slane %v898, 2
      %v1147 = vsel %vm701, %v1142, %v1146
      %v1148 = vrot.slane %v899, 2
      %v1149 = vsel %vm701, %v1144, %v1148
      %v1150 = vrot.slane %v900, 2
      %v1151 = vsel %vm701, %v1146, %v1150
      %v1152 = vrot.slane %v1114, 2
      %v1153 = vsel %vm701, %v1148, %v1152
      %v1154 = vrot.slane %v1115, 2
      %v1155 = vsel %vm701, %v1150, %v1154
      %v1160 = vsel %vm426, %v1143, 0
      %v1162 = vsel %vm426, %v1147, 0
      %v1164 = vsel %vm426, %v1151, 0
      %v1166 = vsel %vm426, %v1155, 0
      %v1169 = vsel %vm543, %v1133, 0
      %1171 = vmatpush.msra.mxu0 %v1132
      %1172 = vmatpush.msra.mxu0 %v1131
      %1173 = vmatpush.msra.mxu0 %v1130
      %1174 = vmatpush.msra.mxu0 %v1129
      %1175 = vmatpush.msra.mxu0 %v1128
      %1176 = vmatpush.msra.mxu0 %v1127
      %1177 = vmatpush.msra.mxu0 %v1126
      %1178 = vmatpush.msra.mxu0 %v1125
      %1179 = vmatpush.msra.mxu0 %v1124
      %1180 = vmatpush.msra.mxu0 %v1123
      %1181 = vmatpush.msra.mxu0 %v1122
      %1182 = vmatpush.msra.mxu0 %v1121
      %1183 = vmatpush.msra.mxu0 %v1120
      %1184 = vmatpush.msra.mxu0 %v1119
      %1185 = vmatpush.msra.mxu0 %v1118
      %1186 = vmatpush.msra.mxu0 %v1117
      %1187 = vmatmul.f32.gmra.mxu0 %v1140
      %v1188 = vpop.f32.mrf.mxu0
      %v1189 = vadd.f32 0.0, %v1188
      %1190 = vmatmul.f32.gmra.mxu0 %v1145
      %v1191 = vpop.f32.mrf.mxu0
      %v1192 = vadd.f32 0.0, %v1191
      %1193 = vmatmul.f32.gmra.mxu0 %v1149
      %v1194 = vpop.f32.mrf.mxu0
      %v1195 = vadd.f32 0.0, %v1194
      %1196 = vmatmul.f32.gmra.mxu0 %v1153
      %v1197 = vpop.f32.mrf.mxu0
      %v1198 = vadd.f32 0.0, %v1197
      %1199 = vdwg.mxu0
      %1200 = vmatpush.msra.mxu0 0.0
      %1201 = vmatpush.msra.mxu0 0.0
      %1202 = vmatpush.msra.mxu0 0.0
      %1203 = vmatpush.msra.mxu0 0.0
      %1204 = vmatpush.msra.mxu0 0.0
      %1205 = vmatpush.msra.mxu0 0.0
      %1206 = vmatpush.msra.mxu0 0.0
      %1207 = vmatpush.msra.mxu0 0.0
      %1208 = vmatpush.msra.mxu0 0.0
      %1209 = vmatpush.msra.mxu0 0.0
      %1210 = vmatpush.msra.mxu0 0.0
      %1211 = vmatpush.msra.mxu0 0.0
      %1212 = vmatpush.msra.mxu0 0.0
      %1213 = vmatpush.msra.mxu0 0.0
      %1214 = vmatpush.msra.mxu0 0.0
      %1215 = vmatpush.msra.mxu0 %v1169
      %1216 = vmatmul.f32.gmra.mxu0 %v1160
      %v1217 = vpop.f32.mrf.mxu0
      %v1218 = vadd.f32 %v1189, %v1217
      %1219 = vmatmul.f32.gmra.mxu0 %v1162
      %v1220 = vpop.f32.mrf.mxu0
      %v1221 = vadd.f32 %v1192, %v1220
      %1222 = vmatmul.f32.gmra.mxu0 %v1164
      %v1223 = vpop.f32.mrf.mxu0
      %v1224 = vadd.f32 %v1195, %v1223
      %1225 = vmatmul.f32.gmra.mxu0 %v1166
      %v1226 = vpop.f32.mrf.mxu0
      %v1227 = vadd.f32 %v1198, %v1226
      %1228 = vdwg.mxu0
      %v1229 = vadd.f32 %v1101, %v1218
      %v1230 = vadd.f32 %v1104, %v1221
      %v1231 = vadd.f32 %v1107, %v1224
      %v1232 = vadd.f32 %v1110, %v1227
      %v1233 = vadd.f32 %v1229, %v1230
      %v1234 = vadd.f32 %v1233, %v1231
      %v1235 = vadd.f32 %v1234, %v1232
      %1236 = vadd.xlane.f32.xlu0 %v1235
      %v1237 = vpop.xlane.xlu0 %1236
      %v1238 = vrot.slane %v1237, 4
      %v1239 = vadd.f32 %v1237, %v1238
      %v1240 = vrot.slane %v1239, 2
      %v1241 = vadd.f32 %v1239, %v1240
      %v1242 = vrot.slane %v1241, 1
      %v1243 = vadd.f32 %v1241, %v1242
      %s1244 = vtos %v1243
      %s1245 = smul.f32 %s1244, 0.00024414063
      %v1246 = vmul.f32 %v1229, %v1229
      %v1247 = vmul.f32 %v1230, %v1230
      %v1248 = vmul.f32 %v1231, %v1231
      %v1249 = vmul.f32 %v1232, %v1232
      %v1250 = vadd.f32 %v1246, %v1247
      %v1251 = vadd.f32 %v1250, %v1248
      %v1252 = vadd.f32 %v1251, %v1249
      %1253 = vadd.xlane.f32.xlu0 %v1252
      %v1254 = vpop.xlane.xlu0 %1253
      %v1255 = vrot.slane %v1254, 4
      %v1256 = vadd.f32 %v1254, %v1255
      %v1257 = vrot.slane %v1256, 2
      %v1258 = vadd.f32 %v1256, %v1257
      %v1259 = vrot.slane %v1258, 1
      %v1260 = vadd.f32 %v1258, %v1259
      %s1261 = vtos %v1260
      %s1262 = smul.f32 %s1261, 0.00024414063
      %s1263 = smul.f32 %s1245, %s1245
      %s1264 = ssub.f32 %s1262, %s1263
      %s1265 = sadd.f32 %s1264, 1e-05
      %v1266 = vstv %s1265
      %v1267 = vrsqrt.pop %v1266
      %v1268 = vmul.f32 %v1267, %v1266
      %v1269 = vmul.f32 %v1268, %v1267
      %v1270 = vmul.f32 0.5, %v1269
      %v1271 = vsub.f32 1.5, %v1270
      %v1272 = vmul.f32 %v1267, %v1271
      %vm1273 = vweird.f32 %v1266
      %vm1274 = vweird.f32 %v1267
      %vm1275 = vmor %vm1273, %vm1274
      %v1276 = vsel %vm1275, %v1267, %v1272
      %s1277 = vtos %v1276
      %v1278 = vstv %s1277
      %v1279 = vmul.f32 %v1278, %v414
      %v1280 = vstv %s1245
      %v1281 = vsub.f32 %v1229, %v1280
      %v1282 = vsub.f32 %v1230, %v1280
      %v1283 = vsub.f32 %v1231, %v1280
      %v1284 = vsub.f32 %v1232, %v1280
      %v1285 = vperm.slane %v1279, 0
      %v1286 = vmul.f32 %v1281, %v1285
      %v1287 = vmul.f32 %v1282, %v1285
      %v1288 = vmul.f32 %v1283, %v1285
      %v1289 = vmul.f32 %v1284, %v1285
      %v1290 = vadd.f32 %v1286, %v854
      %v1291 = vadd.f32 %v1287, %v854
      %v1292 = vadd.f32 %v1288, %v854
      %v1293 = vadd.f32 %v1289, %v854
      %vm1294 = vcmp.ge.f32.partialorder %v1290, 0.0
      %vm1295 = vcmp.ge.f32.partialorder %v1291, 0.0
      %vm1296 = vcmp.ge.f32.partialorder %v1292, 0.0
      %vm1297 = vcmp.ge.f32.partialorder %v1293, 0.0
      %v1298 = vmul.f32 %v863, %v1290
      %v1299 = vmul.f32 %v863, %v1291
      %v1300 = vmul.f32 %v863, %v1292
      %v1301 = vmul.f32 %v863, %v1293
      %v1302 = vsel %vm1294, %v1290, %v1298
      %v1303 = vsel %vm1295, %v1291, %v1299
      %v1304 = vsel %vm1296, %v1292, %v1300
      %v1305 = vsel %vm1297, %v1293, %v1301
      %v1310 = vrot.slane %v1302, 7
      %v1311 = vrot.slane %v1303, 7
      %v1312 = vsel %vm437, %v1310, %v1311
      %v1313 = vrot.slane %v1304, 7
      %v1314 = vsel %vm437, %v1311, %v1313
      %v1315 = vrot.slane %v1305, 7
      %v1316 = vsel %vm437, %v1313, %v1315
      %1322 = vst [vmem:[#allocation2] sm:$0xfe] %v1310
      %1323 = vst [vmem:[#allocation2 + $0x10] sm:$0xff] %v1312
      %1324 = vst [vmem:[#allocation2 + $0x20] sm:$0xff] %v1314
      %1325 = vst [vmem:[#allocation2 + $0x30] sm:$0xff] %v1316
      %1326 = vst [vmem:[#allocation2 + $0x40] sm:$0x1] %v1315
      %v1327 = vld [vmem:[#allocation2] sm:$0xff]
      %v1328 = vld [vmem:[#allocation2 + $0x8] sm:$0xff]
      %v1329 = vld [vmem:[#allocation2 + $0x10] sm:$0xff]
      %v1330 = vld [vmem:[#allocation2 + $0x18] sm:$0xff]
      %v1331 = vld [vmem:[#allocation2 + $0x20] sm:$0xff]
      %v1332 = vld [vmem:[#allocation2 + $0x28] sm:$0xff]
      %v1333 = vld [vmem:[#allocation2 + $0x30] sm:$0xff]
      %v1334 = vld [vmem:[#allocation2 + $0x38] sm:$0xff]
      %s1335 = scalar_lea.vmem %s1, 816
      %v1336 = vld [vmem:[%s1335] sm:$0xff]
      %v1337 = vld [vmem:[%s1335 + $0x8] sm:$0xff]
      %v1338 = vld [vmem:[%s1335 + $0x10] sm:$0xff]
      %v1339 = vld [vmem:[%s1335 + $0x18] sm:$0xff]
      %v1340 = vld [vmem:[%s1335 + $0x20] sm:$0xff]
      %v1341 = vld [vmem:[%s1335 + $0x28] sm:$0xff]
      %v1342 = vld [vmem:[%s1335 + $0x30] sm:$0xff]
      %v1343 = vld [vmem:[%s1335 + $0x38] sm:$0xff]
      %v1344 = vld [vmem:[%s1335 + $0x40] sm:$0xff]
      %v1345 = vld [vmem:[%s1335 + $0x48] sm:$0xff]
      %v1346 = vld [vmem:[%s1335 + $0x50] sm:$0xff]
      %v1347 = vld [vmem:[%s1335 + $0x58] sm:$0xff]
      %v1348 = vld [vmem:[%s1335 + $0x60] sm:$0xff]
      %v1349 = vld [vmem:[%s1335 + $0x68] sm:$0xff]
      %v1350 = vld [vmem:[%s1335 + $0x70] sm:$0xff]
      %v1351 = vld [vmem:[%s1335 + $0x78] sm:$0xff]
      %v1352 = vld [vmem:[%s1335 + $0x80] sm:$0xf]
      %v1353 = vld [vmem:[#allocation2] sm:$0xfe]
      %v1354 = vld [vmem:[#allocation2 + $0x8] sm:$0xfe]
      %v1355 = vld [vmem:[#allocation2 + $0x40] sm:$0x1]
      %v1356 = vld [vmem:[#allocation2 + $0x48] sm:$0x1]
      %s1357 = scalar_lea.vmem %s1, 952
      %v1358 = vld [vmem:[%s1357] sm:$0xff]
      %v1359 = vld [vmem:[%s1357 + $0x8] sm:$0xff]
      %v1360 = vld [vmem:[%s1357 + $0x10] sm:$0xff]
      %v1361 = vld [vmem:[%s1357 + $0x18] sm:$0xff]
      %v1362 = vld [vmem:[%s1357 + $0x20] sm:$0xff]
      %v1363 = vld [vmem:[%s1357 + $0x28] sm:$0xff]
      %v1364 = vld [vmem:[%s1357 + $0x30] sm:$0xff]
      %v1365 = vld [vmem:[%s1357 + $0x38] sm:$0xff]
      %v1366 = vld [vmem:[%s1357 + $0x40] sm:$0xff]
      %v1367 = vld [vmem:[%s1357 + $0x48] sm:$0xff]
      %v1368 = vld [vmem:[%s1357 + $0x50] sm:$0xff]
      %v1369 = vld [vmem:[%s1357 + $0x58] sm:$0xff]
      %v1370 = vld [vmem:[%s1357 + $0x60] sm:$0xff]
      %v1371 = vld [vmem:[%s1357 + $0x68] sm:$0xff]
      %v1372 = vld [vmem:[%s1357 + $0x70] sm:$0xff]
      %v1373 = vld [vmem:[%s1357 + $0x78] sm:$0xff]
      %v1374 = vld [vmem:[%s1357 + $0x80] sm:$0xf]
      %v1385 = vrot.slane %v1353, 1
      %v1386 = vrot.slane %v1329, 1
      %v1387 = vsel %vm512, %v1385, %v1386
      %v1388 = vrot.slane %v1354, 1
      %v1389 = vrot.slane %v1330, 1
      %v1390 = vsel %vm512, %v1388, %v1389
      %v1391 = vrot.slane %v1331, 1
      %v1392 = vsel %vm512, %v1386, %v1391
      %v1393 = vrot.slane %v1332, 1
      %v1394 = vsel %vm512, %v1389, %v1393
      %v1395 = vrot.slane %v1333, 1
      %v1396 = vsel %vm512, %v1391, %v1395
      %v1397 = vrot.slane %v1334, 1
      %v1398 = vsel %vm512, %v1393, %v1397
      %v1399 = vrot.slane %v1355, 1
      %v1400 = vsel %vm512, %v1395, %v1399
      %v1401 = vrot.slane %v1356, 1
      %v1402 = vsel %vm512, %v1397, %v1401
      %v1407 = vsel %vm426, %v1390, 0
      %v1409 = vsel %vm426, %v1394, 0
      %v1411 = vsel %vm426, %v1398, 0
      %v1413 = vsel %vm426, %v1402, 0
      %v1416 = vsel %vm543, %v1374, 0
      %1418 = vmatpush.msra.mxu0 %v1373
      %1419 = vmatpush.msra.mxu0 %v1372
      %1420 = vmatpush.msra.mxu0 %v1371
      %1421 = vmatpush.msra.mxu0 %v1370
      %1422 = vmatpush.msra.mxu0 %v1369
      %1423 = vmatpush.msra.mxu0 %v1368
      %1424 = vmatpush.msra.mxu0 %v1367
      %1425 = vmatpush.msra.mxu0 %v1366
      %1426 = vmatpush.msra.mxu0 %v1365
      %1427 = vmatpush.msra.mxu0 %v1364
      %1428 = vmatpush.msra.mxu0 %v1363
      %1429 = vmatpush.msra.mxu0 %v1362
      %1430 = vmatpush.msra.mxu0 %v1361
      %1431 = vmatpush.msra.mxu0 %v1360
      %1432 = vmatpush.msra.mxu0 %v1359
      %1433 = vmatpush.msra.mxu0 %v1358
      %1434 = vmatmul.f32.gmra.mxu0 %v1387
      %v1435 = vpop.f32.mrf.mxu0
      %v1436 = vadd.f32 0.0, %v1435
      %1437 = vmatmul.f32.gmra.mxu0 %v1392
      %v1438 = vpop.f32.mrf.mxu0
      %v1439 = vadd.f32 0.0, %v1438
      %1440 = vmatmul.f32.gmra.mxu0 %v1396
      %v1441 = vpop.f32.mrf.mxu0
      %v1442 = vadd.f32 0.0, %v1441
      %1443 = vmatmul.f32.gmra.mxu0 %v1400
      %v1444 = vpop.f32.mrf.mxu0
      %v1445 = vadd.f32 0.0, %v1444
      %1446 = vdwg.mxu0
      %1447 = vmatpush.msra.mxu0 0.0
      %1448 = vmatpush.msra.mxu0 0.0
      %1449 = vmatpush.msra.mxu0 0.0
      %1450 = vmatpush.msra.mxu0 0.0
      %1451 = vmatpush.msra.mxu0 0.0
      %1452 = vmatpush.msra.mxu0 0.0
      %1453 = vmatpush.msra.mxu0 0.0
      %1454 = vmatpush.msra.mxu0 0.0
      %1455 = vmatpush.msra.mxu0 0.0
      %1456 = vmatpush.msra.mxu0 0.0
      %1457 = vmatpush.msra.mxu0 0.0
      %1458 = vmatpush.msra.mxu0 0.0
      %1459 = vmatpush.msra.mxu0 0.0
      %1460 = vmatpush.msra.mxu0 0.0
      %1461 = vmatpush.msra.mxu0 0.0
      %1462 = vmatpush.msra.mxu0 %v1416
      %1463 = vmatmul.f32.gmra.mxu0 %v1407
      %v1464 = vpop.f32.mrf.mxu0
      %v1465 = vadd.f32 %v1436, %v1464
      %1466 = vmatmul.f32.gmra.mxu0 %v1409
      %v1467 = vpop.f32.mrf.mxu0
      %v1468 = vadd.f32 %v1439, %v1467
      %1469 = vmatmul.f32.gmra.mxu0 %v1411
      %v1470 = vpop.f32.mrf.mxu0
      %v1471 = vadd.f32 %v1442, %v1470
      %1472 = vmatmul.f32.gmra.mxu0 %v1413
      %v1473 = vpop.f32.mrf.mxu0
      %v1474 = vadd.f32 %v1445, %v1473
      %1475 = vdwg.mxu0
      %v1477 = vsel %vm426, %v1328, 0
      %v1479 = vsel %vm426, %v1330, 0
      %v1481 = vsel %vm426, %v1332, 0
      %v1483 = vsel %vm426, %v1334, 0
      %v1486 = vsel %vm543, %v1352, 0
      %1488 = vmatpush.msra.mxu0 %v1351
      %1489 = vmatpush.msra.mxu0 %v1350
      %1490 = vmatpush.msra.mxu0 %v1349
      %1491 = vmatpush.msra.mxu0 %v1348
      %1492 = vmatpush.msra.mxu0 %v1347
      %1493 = vmatpush.msra.mxu0 %v1346
      %1494 = vmatpush.msra.mxu0 %v1345
      %1495 = vmatpush.msra.mxu0 %v1344
      %1496 = vmatpush.msra.mxu0 %v1343
      %1497 = vmatpush.msra.mxu0 %v1342
      %1498 = vmatpush.msra.mxu0 %v1341
      %1499 = vmatpush.msra.mxu0 %v1340
      %1500 = vmatpush.msra.mxu0 %v1339
      %1501 = vmatpush.msra.mxu0 %v1338
      %1502 = vmatpush.msra.mxu0 %v1337
      %1503 = vmatpush.msra.mxu0 %v1336
      %1504 = vmatmul.f32.gmra.mxu0 %v1327
      %v1505 = vpop.f32.mrf.mxu0
      %v1506 = vadd.f32 %v1465, %v1505
      %1507 = vmatmul.f32.gmra.mxu0 %v1329
      %v1508 = vpop.f32.mrf.mxu0
      %v1509 = vadd.f32 %v1468, %v1508
      %1510 = vmatmul.f32.gmra.mxu0 %v1331
      %v1511 = vpop.f32.mrf.mxu0
      %v1512 = vadd.f32 %v1471, %v1511
      %1513 = vmatmul.f32.gmra.mxu0 %v1333
      %v1514 = vpop.f32.mrf.mxu0
      %v1515 = vadd.f32 %v1474, %v1514
      %1516 = vdwg.mxu0
      %1517 = vmatpush.msra.mxu0 0.0
      %1518 = vmatpush.msra.mxu0 0.0
      %1519 = vmatpush.msra.mxu0 0.0
      %1520 = vmatpush.msra.mxu0 0.0
      %1521 = vmatpush.msra.mxu0 0.0
      %1522 = vmatpush.msra.mxu0 0.0
      %1523 = vmatpush.msra.mxu0 0.0
      %1524 = vmatpush.msra.mxu0 0.0
      %1525 = vmatpush.msra.mxu0 0.0
      %1526 = vmatpush.msra.mxu0 0.0
      %1527 = vmatpush.msra.mxu0 0.0
      %1528 = vmatpush.msra.mxu0 0.0
      %1529 = vmatpush.msra.mxu0 0.0
      %1530 = vmatpush.msra.mxu0 0.0
      %1531 = vmatpush.msra.mxu0 0.0
      %1532 = vmatpush.msra.mxu0 %v1486
      %1533 = vmatmul.f32.gmra.mxu0 %v1477
      %v1534 = vpop.f32.mrf.mxu0
      %v1535 = vadd.f32 %v1506, %v1534
      %1536 = vmatmul.f32.gmra.mxu0 %v1479
      %v1537 = vpop.f32.mrf.mxu0
      %v1538 = vadd.f32 %v1509, %v1537
      %1539 = vmatmul.f32.gmra.mxu0 %v1481
      %v1540 = vpop.f32.mrf.mxu0
      %v1541 = vadd.f32 %v1512, %v1540
      %1542 = vmatmul.f32.gmra.mxu0 %v1483
      %v1543 = vpop.f32.mrf.mxu0
      %v1544 = vadd.f32 %v1515, %v1543
      %1545 = vdwg.mxu0
      %v1546 = vld [vmem:[#allocation2] sm:$0xfc]
      %v1547 = vld [vmem:[#allocation2 + $0x8] sm:$0xfc]
      %v1548 = vld [vmem:[#allocation2 + $0x40] sm:$0x3]
      %v1549 = vld [vmem:[#allocation2 + $0x48] sm:$0x3]
      %s1550 = scalar_lea.vmem %s1, 1088
      %v1551 = vld [vmem:[%s1550] sm:$0xff]
      %v1552 = vld [vmem:[%s1550 + $0x8] sm:$0xff]
      %v1553 = vld [vmem:[%s1550 + $0x10] sm:$0xff]
      %v1554 = vld [vmem:[%s1550 + $0x18] sm:$0xff]
      %v1555 = vld [vmem:[%s1550 + $0x20] sm:$0xff]
      %v1556 = vld [vmem:[%s1550 + $0x28] sm:$0xff]
      %v1557 = vld [vmem:[%s1550 + $0x30] sm:$0xff]
      %v1558 = vld [vmem:[%s1550 + $0x38] sm:$0xff]
      %v1559 = vld [vmem:[%s1550 + $0x40] sm:$0xff]
      %v1560 = vld [vmem:[%s1550 + $0x48] sm:$0xff]
      %v1561 = vld [vmem:[%s1550 + $0x50] sm:$0xff]
      %v1562 = vld [vmem:[%s1550 + $0x58] sm:$0xff]
      %v1563 = vld [vmem:[%s1550 + $0x60] sm:$0xff]
      %v1564 = vld [vmem:[%s1550 + $0x68] sm:$0xff]
      %v1565 = vld [vmem:[%s1550 + $0x70] sm:$0xff]
      %v1566 = vld [vmem:[%s1550 + $0x78] sm:$0xff]
      %v1567 = vld [vmem:[%s1550 + $0x80] sm:$0xf]
      %v1572 = vrot.slane %v1546, 2
      %v1573 = vrot.slane %v1329, 2
      %v1574 = vsel %vm701, %v1572, %v1573
      %v1575 = vrot.slane %v1547, 2
      %v1576 = vrot.slane %v1330, 2
      %v1577 = vsel %vm701, %v1575, %v1576
      %v1578 = vrot.slane %v1331, 2
      %v1579 = vsel %vm701, %v1573, %v1578
      %v1580 = vrot.slane %v1332, 2
      %v1581 = vsel %vm701, %v1576, %v1580
      %v1582 = vrot.slane %v1333, 2
      %v1583 = vsel %vm701, %v1578, %v1582
      %v1584 = vrot.slane %v1334, 2
      %v1585 = vsel %vm701, %v1580, %v1584
      %v1586 = vrot.slane %v1548, 2
      %v1587 = vsel %vm701, %v1582, %v1586
      %v1588 = vrot.slane %v1549, 2
      %v1589 = vsel %vm701, %v1584, %v1588
      %v1594 = vsel %vm426, %v1577, 0
      %v1596 = vsel %vm426, %v1581, 0
      %v1598 = vsel %vm426, %v1585, 0
      %v1600 = vsel %vm426, %v1589, 0
      %v1603 = vsel %vm543, %v1567, 0
      %1605 = vmatpush.msra.mxu0 %v1566
      %1606 = vmatpush.msra.mxu0 %v1565
      %1607 = vmatpush.msra.mxu0 %v1564
      %1608 = vmatpush.msra.mxu0 %v1563
      %1609 = vmatpush.msra.mxu0 %v1562
      %1610 = vmatpush.msra.mxu0 %v1561
      %1611 = vmatpush.msra.mxu0 %v1560
      %1612 = vmatpush.msra.mxu0 %v1559
      %1613 = vmatpush.msra.mxu0 %v1558
      %1614 = vmatpush.msra.mxu0 %v1557
      %1615 = vmatpush.msra.mxu0 %v1556
      %1616 = vmatpush.msra.mxu0 %v1555
      %1617 = vmatpush.msra.mxu0 %v1554
      %1618 = vmatpush.msra.mxu0 %v1553
      %1619 = vmatpush.msra.mxu0 %v1552
      %1620 = vmatpush.msra.mxu0 %v1551
      %1621 = vmatmul.f32.gmra.mxu0 %v1574
      %v1622 = vpop.f32.mrf.mxu0
      %v1623 = vadd.f32 0.0, %v1622
      %1624 = vmatmul.f32.gmra.mxu0 %v1579
      %v1625 = vpop.f32.mrf.mxu0
      %v1626 = vadd.f32 0.0, %v1625
      %1627 = vmatmul.f32.gmra.mxu0 %v1583
      %v1628 = vpop.f32.mrf.mxu0
      %v1629 = vadd.f32 0.0, %v1628
      %1630 = vmatmul.f32.gmra.mxu0 %v1587
      %v1631 = vpop.f32.mrf.mxu0
      %v1632 = vadd.f32 0.0, %v1631
      %1633 = vdwg.mxu0
      %1634 = vmatpush.msra.mxu0 0.0
      %1635 = vmatpush.msra.mxu0 0.0
      %1636 = vmatpush.msra.mxu0 0.0
      %1637 = vmatpush.msra.mxu0 0.0
      %1638 = vmatpush.msra.mxu0 0.0
      %1639 = vmatpush.msra.mxu0 0.0
      %1640 = vmatpush.msra.mxu0 0.0
      %1641 = vmatpush.msra.mxu0 0.0
      %1642 = vmatpush.msra.mxu0 0.0
      %1643 = vmatpush.msra.mxu0 0.0
      %1644 = vmatpush.msra.mxu0 0.0
      %1645 = vmatpush.msra.mxu0 0.0
      %1646 = vmatpush.msra.mxu0 0.0
      %1647 = vmatpush.msra.mxu0 0.0
      %1648 = vmatpush.msra.mxu0 0.0
      %1649 = vmatpush.msra.mxu0 %v1603
      %1650 = vmatmul.f32.gmra.mxu0 %v1594
      %v1651 = vpop.f32.mrf.mxu0
      %v1652 = vadd.f32 %v1623, %v1651
      %1653 = vmatmul.f32.gmra.mxu0 %v1596
      %v1654 = vpop.f32.mrf.mxu0
      %v1655 = vadd.f32 %v1626, %v1654
      %1656 = vmatmul.f32.gmra.mxu0 %v1598
      %v1657 = vpop.f32.mrf.mxu0
      %v1658 = vadd.f32 %v1629, %v1657
      %1659 = vmatmul.f32.gmra.mxu0 %v1600
      %v1660 = vpop.f32.mrf.mxu0
      %v1661 = vadd.f32 %v1632, %v1660
      %1662 = vdwg.mxu0
      %v1663 = vadd.f32 %v1535, %v1652
      %v1664 = vadd.f32 %v1538, %v1655
      %v1665 = vadd.f32 %v1541, %v1658
      %v1666 = vadd.f32 %v1544, %v1661
      %v1667 = vadd.f32 %v1663, %v1664
      %v1668 = vadd.f32 %v1667, %v1665
      %v1669 = vadd.f32 %v1668, %v1666
      %1670 = vadd.xlane.f32.xlu0 %v1669
      %v1671 = vpop.xlane.xlu0 %1670
      %v1672 = vrot.slane %v1671, 4
      %v1673 = vadd.f32 %v1671, %v1672
      %v1674 = vrot.slane %v1673, 2
      %v1675 = vadd.f32 %v1673, %v1674
      %v1676 = vrot.slane %v1675, 1
      %v1677 = vadd.f32 %v1675, %v1676
      %s1678 = vtos %v1677
      %s1679 = smul.f32 %s1678, 0.00024414063
      %v1680 = vmul.f32 %v1663, %v1663
      %v1681 = vmul.f32 %v1664, %v1664
      %v1682 = vmul.f32 %v1665, %v1665
      %v1683 = vmul.f32 %v1666, %v1666
      %v1684 = vadd.f32 %v1680, %v1681
      %v1685 = vadd.f32 %v1684, %v1682
      %v1686 = vadd.f32 %v1685, %v1683
      %1687 = vadd.xlane.f32.xlu0 %v1686
      %v1688 = vpop.xlane.xlu0 %1687
      %v1689 = vrot.slane %v1688, 4
      %v1690 = vadd.f32 %v1688, %v1689
      %v1691 = vrot.slane %v1690, 2
      %v1692 = vadd.f32 %v1690, %v1691
      %v1693 = vrot.slane %v1692, 1
      %v1694 = vadd.f32 %v1692, %v1693
      %s1695 = vtos %v1694
      %s1696 = smul.f32 %s1695, 0.00024414063
      %s1697 = smul.f32 %s1679, %s1679
      %s1698 = ssub.f32 %s1696, %s1697
      %s1699 = sadd.f32 %s1698, 1e-05
      %v1700 = vstv %s1699
      %v1701 = vrsqrt.pop %v1700
      %v1702 = vmul.f32 %v1701, %v1700
      %v1703 = vmul.f32 %v1702, %v1701
      %v1704 = vmul.f32 0.5, %v1703
      %v1705 = vsub.f32 1.5, %v1704
      %v1706 = vmul.f32 %v1701, %v1705
      %vm1707 = vweird.f32 %v1700
      %vm1708 = vweird.f32 %v1701
      %vm1709 = vmor %vm1707, %vm1708
      %v1710 = vsel %vm1709, %v1701, %v1706
      %s1711 = vtos %v1710
      %v1712 = vstv %s1711
      %v1713 = vmul.f32 %v1712, %v414
      %v1714 = vstv %s1679
      %v1715 = vsub.f32 %v1663, %v1714
      %v1716 = vsub.f32 %v1664, %v1714
      %v1717 = vsub.f32 %v1665, %v1714
      %v1718 = vsub.f32 %v1666, %v1714
      %v1719 = vperm.slane %v1713, 0
      %v1720 = vmul.f32 %v1715, %v1719
      %v1721 = vmul.f32 %v1716, %v1719
      %v1722 = vmul.f32 %v1717, %v1719
      %v1723 = vmul.f32 %v1718, %v1719
      %v1724 = vadd.f32 %v1720, %v854
      %v1725 = vadd.f32 %v1721, %v854
      %v1726 = vadd.f32 %v1722, %v854
      %v1727 = vadd.f32 %v1723, %v854
      %v1728 = vadd.f32 %v1724, %v410
      %v1729 = vadd.f32 %v1725, %v411
      %v1730 = vadd.f32 %v1726, %v412
      %v1731 = vadd.f32 %v1727, %v413
      %vm1732 = vcmp.ge.f32.partialorder %v1728, 0.0
      %vm1733 = vcmp.ge.f32.partialorder %v1729, 0.0
      %vm1734 = vcmp.ge.f32.partialorder %v1730, 0.0
      %vm1735 = vcmp.ge.f32.partialorder %v1731, 0.0
      %v1736 = vmul.f32 %v863, %v1728
      %v1737 = vmul.f32 %v863, %v1729
      %v1738 = vmul.f32 %v863, %v1730
      %v1739 = vmul.f32 %v863, %v1731
      %v1740 = vsel %vm1732, %v1728, %v1736
      %v1741 = vsel %vm1733, %v1729, %v1737
      %v1742 = vsel %vm1734, %v1730, %v1738
      %v1743 = vsel %vm1735, %v1731, %v1739
      %1744 = vst [vmem:[%s400] sm:$0xff] %v1740
      %1745 = vst [vmem:[%s400 + $0x8] sm:$0xff] %v1741
      %1746 = vst [vmem:[%s400 + $0x10] sm:$0xff] %v1742
      %1747 = vst [vmem:[%s400 + $0x18] sm:$0xff] %v1743
      %1748 = vst [vmem:[#allocation5] sm:$0x1] -inf
      %1749 = vst [vmem:[#allocation5 + $0x21] sm:$0x1] -inf
      %1750 = vst [vmem:[#allocation5 + $0x1] sm:$0xff] %v1740
      %1751 = vst [vmem:[#allocation5 + $0x9] sm:$0xff] %v1741
      %1752 = vst [vmem:[#allocation5 + $0x11] sm:$0xff] %v1742
      %1753 = vst [vmem:[#allocation5 + $0x19] sm:$0xff] %v1743
      %v1754 = vld [vmem:[#allocation5] ss:$2 sm:$0xff]
      %s1755 = scalar_lea.vmem [#allocation5], 16
      %v1756 = vld [vmem:[%s1755] ss:$2 sm:$0xff]
      %s1757 = scalar_lea.vmem [#allocation5], 1
      %v1758 = vld [vmem:[%s1757] ss:$2 sm:$0xff]
      %s1759 = scalar_lea.vmem [#allocation5], 17
      %v1760 = vld [vmem:[%s1759] ss:$2 sm:$0xff]
      %v1761 = vmax.f32 %v1754, %v1758
      %v1762 = vmax.f32 %v1756, %v1760
      %s1763 = scalar_lea.vmem [#allocation5], 2
      %v1764 = vld [vmem:[%s1763] ss:$2 sm:$0xff]
      %s1765 = scalar_lea.vmem [#allocation5], 18
      %v1766 = vld [vmem:[%s1765] ss:$2 sm:$0xff]
      %v1767 = vmax.f32 %v1761, %v1764
      %v1768 = vmax.f32 %v1762, %v1766
      %v1769 = vlaneseq
      %v1770 = vand.u32 %v1769, 127
      %vm1771 = vcmp.ge.s32.totalorder %v1770, 4
      %1772 = vrot.lane.b32.xlu0 %v1767, 4
      %v1773 = vpop.permute.xlu0 %1772
      %1774 = vrot.lane.b32.xlu0 %v1768, 4
      %v1775 = vpop.permute.xlu0 %1774
      %v1776 = vsel %vm1771, %v1773, -inf
      %v1777 = vsel %vm1771, %v1775, -inf
      %vm1778 = vcmp.lt.s32.totalorder %v1770, 124
      %1779 = vrot.lane.b32.xlu0 %v1767, 124
      %v1780 = vpop.permute.xlu0 %1779
      %1781 = vrot.lane.b32.xlu0 %v1768, 124
      %v1782 = vpop.permute.xlu0 %1781
      %v1783 = vsel %vm1778, %v1780, -inf
      %v1784 = vsel %vm1778, %v1782, -inf
      %v1785 = vmax.f32 %v1776, %v1767
      %v1786 = vmax.f32 %v1777, %v1768
      %v1787 = vmax.f32 %v1785, %v1783
      %v1788 = vmax.f32 %v1786, %v1784
      %v1789 = vld [vmem:[%s7] sm:$0xff]
      %v1790 = vld [vmem:[%s7 + $0x8] sm:$0xff]
      %v1791 = vld [vmem:[%s7 + $0x10] sm:$0xff]
      %v1792 = vld [vmem:[%s7 + $0x18] sm:$0xff]
      %v1793 = vld [vmem:[%s7 + $0x20] sm:$0xff]
      %v1794 = vld [vmem:[%s7 + $0x28] sm:$0xff]
      %v1795 = vld [vmem:[%s7 + $0x30] sm:$0xff]
      %v1796 = vld [vmem:[%s7 + $0x38] sm:$0xff]
      %v1797 = vld [vmem:[%s7 + $0x40] sm:$0xff]
      %v1798 = vld [vmem:[%s7 + $0x48] sm:$0xff]
      %v1799 = vld [vmem:[%s7 + $0x50] sm:$0xff]
      %v1800 = vld [vmem:[%s7 + $0x58] sm:$0xff]
      %v1801 = vld [vmem:[%s7 + $0x60] sm:$0xff]
      %v1802 = vld [vmem:[%s7 + $0x68] sm:$0xff]
      %v1803 = vld [vmem:[%s7 + $0x70] sm:$0xff]
      %v1804 = vld [vmem:[%s7 + $0x78] sm:$0xff]
      %1805 = vmatpush.msra.mxu0 %v1804
      %1806 = vmatpush.msra.mxu0 %v1803
      %1807 = vmatpush.msra.mxu0 %v1802
      %1808 = vmatpush.msra.mxu0 %v1801
      %1809 = vmatpush.msra.mxu0 %v1800
      %1810 = vmatpush.msra.mxu0 %v1799
      %1811 = vmatpush.msra.mxu0 %v1798
      %1812 = vmatpush.msra.mxu0 %v1797
      %1813 = vmatpush.msra.mxu0 %v1796
      %1814 = vmatpush.msra.mxu0 %v1795
      %1815 = vmatpush.msra.mxu0 %v1794
      %1816 = vmatpush.msra.mxu0 %v1793
      %1817 = vmatpush.msra.mxu0 %v1792
      %1818 = vmatpush.msra.mxu0 %v1791
      %1819 = vmatpush.msra.mxu0 %v1790
      %1820 = vmatpush.msra.mxu0 %v1789
      %1821 = vmatmul.f32.gmra.mxu0 %v1787
      %v1822 = vpop.f32.mrf.mxu0
      %v1823 = vadd.f32 0.0, %v1822
      %1824 = vmatmul.f32.gmra.mxu0 %v1788
      %v1825 = vpop.f32.mrf.mxu0
      %v1826 = vadd.f32 0.0, %v1825
      %1827 = vdwg.mxu0
      %v1828 = vld [vmem:[%s4] sm:$0x1]
      %v1829 = vld [vmem:[%s4 + $0x1] sm:$0x1]
      %v1830 = vld [vmem:[%s4 + $0x2] sm:$0x1]
      %vm1831 = vcmp.lt.s32.totalorder %v417, 136
      %vm1832 = vmand %vm418, %vm1831
      %1833 = vst.msk [vmem:[#allocation3] ss:$8 sm:$0x3] %vm1832, 0.0
      %1834 = vst.msk [vmem:[#allocation3] ss:$8 sm:$0x0] %vm1832, 0.0
      %s1835 = scalar_lea.vmem [#allocation3], 33
      %1836 = vst.msk [vmem:[%s1835] ss:$8 sm:$0x3] %vm1832, 0.0
      %1837 = vst.msk [vmem:[%s1835] ss:$8 sm:$0x0] %vm1832, 0.0
      %vm1838 = vcmask 64512
      %1839 = vst.msk [vmem:[#allocation3 + $0x8] sm:$0xff] %vm1838, 0.0
      %1840 = vst.msk [vmem:[#allocation3 + $0x18] sm:$0xff] %vm1838, 0.0
      %vm1841 = vcmask 58368
      %1842 = vst.msk [vmem:[#allocation3 + $0x28] sm:$0x3] %vm1841, 0.0
      %v1845 = vrot.slane %v1823, 7
      %v1846 = vrot.slane %v1826, 7
      %v1847 = vsel %vm437, %v1845, %v1846
      %1851 = vst [vmem:[#allocation3] sm:$0xfe] %v1845
      %1852 = vst [vmem:[#allocation3 + $0x10] sm:$0xff] %v1847
      %1853 = vst [vmem:[#allocation3 + $0x20] sm:$0x1] %v1846
      %v1854 = vld [vmem:[#allocation3] sm:$0xff]
      %v1855 = vld [vmem:[#allocation3 + $0x8] sm:$0xff]
      %v1856 = vld [vmem:[#allocation3 + $0x10] sm:$0xff]
      %v1857 = vld [vmem:[#allocation3 + $0x18] sm:$0xff]
      %v1858 = vld [vmem:[%s3] sm:$0xff]
      %v1859 = vld [vmem:[%s3 + $0x8] sm:$0xff]
      %v1860 = vld [vmem:[%s3 + $0x10] sm:$0xff]
      %v1861 = vld [vmem:[%s3 + $0x18] sm:$0xff]
      %v1862 = vld [vmem:[%s3 + $0x20] sm:$0xff]
      %v1863 = vld [vmem:[%s3 + $0x28] sm:$0xff]
      %v1864 = vld [vmem:[%s3 + $0x30] sm:$0xff]
      %v1865 = vld [vmem:[%s3 + $0x38] sm:$0xff]
      %v1866 = vld [vmem:[%s3 + $0x40] sm:$0xff]
      %v1867 = vld [vmem:[%s3 + $0x48] sm:$0xff]
      %v1868 = vld [vmem:[%s3 + $0x50] sm:$0xff]
      %v1869 = vld [vmem:[%s3 + $0x58] sm:$0xff]
      %v1870 = vld [vmem:[%s3 + $0x60] sm:$0xff]
      %v1871 = vld [vmem:[%s3 + $0x68] sm:$0xff]
      %v1872 = vld [vmem:[%s3 + $0x70] sm:$0xff]
      %v1873 = vld [vmem:[%s3 + $0x78] sm:$0xff]
      %v1874 = vld [vmem:[%s3 + $0x80] sm:$0xff]
      %v1875 = vld [vmem:[#allocation3] sm:$0xfe]
      %v1876 = vld [vmem:[#allocation3 + $0x8] sm:$0xfe]
      %v1877 = vld [vmem:[#allocation3 + $0x20] sm:$0x1]
      %v1878 = vld [vmem:[#allocation3 + $0x28] sm:$0x1]
      %s1879 = scalar_lea.vmem %s3, 136
      %v1880 = vld [vmem:[%s1879] sm:$0xff]
      %v1881 = vld [vmem:[%s1879 + $0x8] sm:$0xff]
      %v1882 = vld [vmem:[%s1879 + $0x10] sm:$0xff]
      %v1883 = vld [vmem:[%s1879 + $0x18] sm:$0xff]
      %v1884 = vld [vmem:[%s1879 + $0x20] sm:$0xff]
      %v1885 = vld [vmem:[%s1879 + $0x28] sm:$0xff]
      %v1886 = vld [vmem:[%s1879 + $0x30] sm:$0xff]
      %v1887 = vld [vmem:[%s1879 + $0x38] sm:$0xff]
      %v1888 = vld [vmem:[%s1879 + $0x40] sm:$0xff]
      %v1889 = vld [vmem:[%s1879 + $0x48] sm:$0xff]
      %v1890 = vld [vmem:[%s1879 + $0x50] sm:$0xff]
      %v1891 = vld [vmem:[%s1879 + $0x58] sm:$0xff]
      %v1892 = vld [vmem:[%s1879 + $0x60] sm:$0xff]
      %v1893 = vld [vmem:[%s1879 + $0x68] sm:$0xff]
      %v1894 = vld [vmem:[%s1879 + $0x70] sm:$0xff]
      %v1895 = vld [vmem:[%s1879 + $0x78] sm:$0xff]
      %v1896 = vld [vmem:[%s1879 + $0x80] sm:$0xff]
      %v1903 = vrot.slane %v1875, 1
      %v1904 = vrot.slane %v1856, 1
      %v1905 = vsel %vm512, %v1903, %v1904
      %v1906 = vrot.slane %v1876, 1
      %v1907 = vrot.slane %v1857, 1
      %v1908 = vsel %vm512, %v1906, %v1907
      %v1909 = vrot.slane %v1877, 1
      %v1910 = vsel %vm512, %v1904, %v1909
      %v1911 = vrot.slane %v1878, 1
      %v1912 = vsel %vm512, %v1907, %v1911
      %v1915 = vsel %vm1838, %v1908, 0
      %v1917 = vsel %vm1838, %v1912, 0
      %1919 = vmatpush.msra.mxu0 %v1895
      %1920 = vmatpush.msra.mxu0 %v1894
      %1921 = vmatpush.msra.mxu0 %v1893
      %1922 = vmatpush.msra.mxu0 %v1892
      %1923 = vmatpush.msra.mxu0 %v1891
      %1924 = vmatpush.msra.mxu0 %v1890
      %1925 = vmatpush.msra.mxu0 %v1889
      %1926 = vmatpush.msra.mxu0 %v1888
      %1927 = vmatpush.msra.mxu0 %v1887
      %1928 = vmatpush.msra.mxu0 %v1886
      %1929 = vmatpush.msra.mxu0 %v1885
      %1930 = vmatpush.msra.mxu0 %v1884
      %1931 = vmatpush.msra.mxu0 %v1883
      %1932 = vmatpush.msra.mxu0 %v1882
      %1933 = vmatpush.msra.mxu0 %v1881
      %1934 = vmatpush.msra.mxu0 %v1880
      %1935 = vmatmul.f32.gmra.mxu0 %v1905
      %v1936 = vpop.f32.mrf.mxu0
      %v1937 = vadd.f32 0.0, %v1936
      %1938 = vmatmul.f32.gmra.mxu0 %v1910
      %v1939 = vpop.f32.mrf.mxu0
      %v1940 = vadd.f32 0.0, %v1939
      %1941 = vdwg.mxu0
      %1942 = vmatpush.msra.mxu0 0.0
      %1943 = vmatpush.msra.mxu0 0.0
      %1944 = vmatpush.msra.mxu0 0.0
      %1945 = vmatpush.msra.mxu0 0.0
      %1946 = vmatpush.msra.mxu0 0.0
      %1947 = vmatpush.msra.mxu0 0.0
      %1948 = vmatpush.msra.mxu0 0.0
      %1949 = vmatpush.msra.mxu0 0.0
      %1950 = vmatpush.msra.mxu0 0.0
      %1951 = vmatpush.msra.mxu0 0.0
      %1952 = vmatpush.msra.mxu0 0.0
      %1953 = vmatpush.msra.mxu0 0.0
      %1954 = vmatpush.msra.mxu0 0.0
      %1955 = vmatpush.msra.mxu0 0.0
      %1956 = vmatpush.msra.mxu0 0.0
      %1957 = vmatpush.msra.mxu0 %v1896
      %1958 = vmatmul.f32.gmra.mxu0 %v1915
      %v1959 = vpop.f32.mrf.mxu0
      %v1960 = vadd.f32 %v1937, %v1959
      %1961 = vmatmul.f32.gmra.mxu0 %v1917
      %v1962 = vpop.f32.mrf.mxu0
      %v1963 = vadd.f32 %v1940, %v1962
      %1964 = vdwg.mxu0
      %v1966 = vsel %vm1838, %v1855, 0
      %v1968 = vsel %vm1838, %v1857, 0
      %1970 = vmatpush.msra.mxu0 %v1873
      %1971 = vmatpush.msra.mxu0 %v1872
      %1972 = vmatpush.msra.mxu0 %v1871
      %1973 = vmatpush.msra.mxu0 %v1870
      %1974 = vmatpush.msra.mxu0 %v1869
      %1975 = vmatpush.msra.mxu0 %v1868
      %1976 = vmatpush.msra.mxu0 %v1867
      %1977 = vmatpush.msra.mxu0 %v1866
      %1978 = vmatpush.msra.mxu0 %v1865
      %1979 = vmatpush.msra.mxu0 %v1864
      %1980 = vmatpush.msra.mxu0 %v1863
      %1981 = vmatpush.msra.mxu0 %v1862
      %1982 = vmatpush.msra.mxu0 %v1861
      %1983 = vmatpush.msra.mxu0 %v1860
      %1984 = vmatpush.msra.mxu0 %v1859
      %1985 = vmatpush.msra.mxu0 %v1858
      %1986 = vmatmul.f32.gmra.mxu0 %v1854
      %v1987 = vpop.f32.mrf.mxu0
      %v1988 = vadd.f32 %v1960, %v1987
      %1989 = vmatmul.f32.gmra.mxu0 %v1856
      %v1990 = vpop.f32.mrf.mxu0
      %v1991 = vadd.f32 %v1963, %v1990
      %1992 = vdwg.mxu0
      %1993 = vmatpush.msra.mxu0 0.0
      %1994 = vmatpush.msra.mxu0 0.0
      %1995 = vmatpush.msra.mxu0 0.0
      %1996 = vmatpush.msra.mxu0 0.0
      %1997 = vmatpush.msra.mxu0 0.0
      %1998 = vmatpush.msra.mxu0 0.0
      %1999 = vmatpush.msra.mxu0 0.0
      %2000 = vmatpush.msra.mxu0 0.0
      %2001 = vmatpush.msra.mxu0 0.0
      %2002 = vmatpush.msra.mxu0 0.0
      %2003 = vmatpush.msra.mxu0 0.0
      %2004 = vmatpush.msra.mxu0 0.0
      %2005 = vmatpush.msra.mxu0 0.0
      %2006 = vmatpush.msra.mxu0 0.0
      %2007 = vmatpush.msra.mxu0 0.0
      %2008 = vmatpush.msra.mxu0 %v1874
      %2009 = vmatmul.f32.gmra.mxu0 %v1966
      %v2010 = vpop.f32.mrf.mxu0
      %v2011 = vadd.f32 %v1988, %v2010
      %2012 = vmatmul.f32.gmra.mxu0 %v1968
      %v2013 = vpop.f32.mrf.mxu0
      %v2014 = vadd.f32 %v1991, %v2013
      %2015 = vdwg.mxu0
      %v2016 = vld [vmem:[#allocation3] sm:$0xfc]
      %v2017 = vld [vmem:[#allocation3 + $0x8] sm:$0xfc]
      %v2018 = vld [vmem:[#allocation3 + $0x20] sm:$0x3]
      %v2019 = vld [vmem:[#allocation3 + $0x28] sm:$0x3]
      %s2020 = scalar_lea.vmem %s3, 272
      %v2021 = vld [vmem:[%s2020] sm:$0xff]
      %v2022 = vld [vmem:[%s2020 + $0x8] sm:$0xff]
      %v2023 = vld [vmem:[%s2020 + $0x10] sm:$0xff]
      %v2024 = vld [vmem:[%s2020 + $0x18] sm:$0xff]
      %v2025 = vld [vmem:[%s2020 + $0x20] sm:$0xff]
      %v2026 = vld [vmem:[%s2020 + $0x28] sm:$0xff]
      %v2027 = vld [vmem:[%s2020 + $0x30] sm:$0xff]
      %v2028 = vld [vmem:[%s2020 + $0x38] sm:$0xff]
      %v2029 = vld [vmem:[%s2020 + $0x40] sm:$0xff]
      %v2030 = vld [vmem:[%s2020 + $0x48] sm:$0xff]
      %v2031 = vld [vmem:[%s2020 + $0x50] sm:$0xff]
      %v2032 = vld [vmem:[%s2020 + $0x58] sm:$0xff]
      %v2033 = vld [vmem:[%s2020 + $0x60] sm:$0xff]
      %v2034 = vld [vmem:[%s2020 + $0x68] sm:$0xff]
      %v2035 = vld [vmem:[%s2020 + $0x70] sm:$0xff]
      %v2036 = vld [vmem:[%s2020 + $0x78] sm:$0xff]
      %v2037 = vld [vmem:[%s2020 + $0x80] sm:$0xff]
      %v2042 = vrot.slane %v2016, 2
      %v2043 = vrot.slane %v1856, 2
      %v2044 = vsel %vm701, %v2042, %v2043
      %v2045 = vrot.slane %v2017, 2
      %v2046 = vrot.slane %v1857, 2
      %v2047 = vsel %vm701, %v2045, %v2046
      %v2048 = vrot.slane %v2018, 2
      %v2049 = vsel %vm701, %v2043, %v2048
      %v2050 = vrot.slane %v2019, 2
      %v2051 = vsel %vm701, %v2046, %v2050
      %v2054 = vsel %vm1838, %v2047, 0
      %v2056 = vsel %vm1838, %v2051, 0
      %2058 = vmatpush.msra.mxu0 %v2036
      %2059 = vmatpush.msra.mxu0 %v2035
      %2060 = vmatpush.msra.mxu0 %v2034
      %2061 = vmatpush.msra.mxu0 %v2033
      %2062 = vmatpush.msra.mxu0 %v2032
      %2063 = vmatpush.msra.mxu0 %v2031
      %2064 = vmatpush.msra.mxu0 %v2030
      %2065 = vmatpush.msra.mxu0 %v2029
      %2066 = vmatpush.msra.mxu0 %v2028
      %2067 = vmatpush.msra.mxu0 %v2027
      %2068 = vmatpush.msra.mxu0 %v2026
      %2069 = vmatpush.msra.mxu0 %v2025
      %2070 = vmatpush.msra.mxu0 %v2024
      %2071 = vmatpush.msra.mxu0 %v2023
      %2072 = vmatpush.msra.mxu0 %v2022
      %2073 = vmatpush.msra.mxu0 %v2021
      %2074 = vmatmul.f32.gmra.mxu0 %v2044
      %v2075 = vpop.f32.mrf.mxu0
      %v2076 = vadd.f32 0.0, %v2075
      %2077 = vmatmul.f32.gmra.mxu0 %v2049
      %v2078 = vpop.f32.mrf.mxu0
      %v2079 = vadd.f32 0.0, %v2078
      %2080 = vdwg.mxu0
      %2081 = vmatpush.msra.mxu0 0.0
      %2082 = vmatpush.msra.mxu0 0.0
      %2083 = vmatpush.msra.mxu0 0.0
      %2084 = vmatpush.msra.mxu0 0.0
      %2085 = vmatpush.msra.mxu0 0.0
      %2086 = vmatpush.msra.mxu0 0.0
      %2087 = vmatpush.msra.mxu0 0.0
      %2088 = vmatpush.msra.mxu0 0.0
      %2089 = vmatpush.msra.mxu0 0.0
      %2090 = vmatpush.msra.mxu0 0.0
      %2091 = vmatpush.msra.mxu0 0.0
      %2092 = vmatpush.msra.mxu0 0.0
      %2093 = vmatpush.msra.mxu0 0.0
      %2094 = vmatpush.msra.mxu0 0.0
      %2095 = vmatpush.msra.mxu0 0.0
      %2096 = vmatpush.msra.mxu0 %v2037
      %2097 = vmatmul.f32.gmra.mxu0 %v2054
      %v2098 = vpop.f32.mrf.mxu0
      %v2099 = vadd.f32 %v2076, %v2098
      %2100 = vmatmul.f32.gmra.mxu0 %v2056
      %v2101 = vpop.f32.mrf.mxu0
      %v2102 = vadd.f32 %v2079, %v2101
      %2103 = vdwg.mxu0
      %v2104 = vadd.f32 %v2011, %v2099
      %v2105 = vadd.f32 %v2014, %v2102
      %v2106 = vadd.f32 %v2104, %v2105
      %2107 = vadd.xlane.f32.xlu0 %v2106
      %v2108 = vpop.xlane.xlu0 %2107
      %v2109 = vrot.slane %v2108, 4
      %v2110 = vadd.f32 %v2108, %v2109
      %v2111 = vrot.slane %v2110, 2
      %v2112 = vadd.f32 %v2110, %v2111
      %v2113 = vrot.slane %v2112, 1
      %v2114 = vadd.f32 %v2112, %v2113
      %s2115 = vtos %v2114
      %s2116 = smul.f32 %s2115, 0.00048828125
      %v2117 = vmul.f32 %v2104, %v2104
      %v2118 = vmul.f32 %v2105, %v2105
      %v2119 = vadd.f32 %v2117, %v2118
      %2120 = vadd.xlane.f32.xlu0 %v2119
      %v2121 = vpop.xlane.xlu0 %2120
      %v2122 = vrot.slane %v2121, 4
      %v2123 = vadd.f32 %v2121, %v2122
      %v2124 = vrot.slane %v2123, 2
      %v2125 = vadd.f32 %v2123, %v2124
      %v2126 = vrot.slane %v2125, 1
      %v2127 = vadd.f32 %v2125, %v2126
      %s2128 = vtos %v2127
      %s2129 = smul.f32 %s2128, 0.00048828125
      %s2130 = smul.f32 %s2116, %s2116
      %s2131 = ssub.f32 %s2129, %s2130
      %s2132 = sadd.f32 %s2131, 1e-05
      %v2133 = vstv %s2132
      %v2134 = vrsqrt.pop %v2133
      %v2135 = vmul.f32 %v2134, %v2133
      %v2136 = vmul.f32 %v2135, %v2134
      %v2137 = vmul.f32 0.5, %v2136
      %v2138 = vsub.f32 1.5, %v2137
      %v2139 = vmul.f32 %v2134, %v2138
      %vm2140 = vweird.f32 %v2133
      %vm2141 = vweird.f32 %v2134
      %vm2142 = vmor %vm2140, %vm2141
      %v2143 = vsel %vm2142, %v2134, %v2139
      %s2144 = vtos %v2143
      %v2145 = vstv %s2144
      %v2146 = vmul.f32 %v2145, %v1828
      %v2147 = vstv %s2116
      %v2148 = vsub.f32 %v2104, %v2147
      %v2149 = vsub.f32 %v2105, %v2147
      %v2150 = vperm.slane %v2146, 0
      %v2151 = vmul.f32 %v2148, %v2150
      %v2152 = vmul.f32 %v2149, %v2150
      %v2153 = vperm.slane %v1829, 0
      %v2154 = vadd.f32 %v2151, %v2153
      %v2155 = vadd.f32 %v2152, %v2153
      %vm2156 = vcmp.ge.f32.partialorder %v2154, 0.0
      %vm2157 = vcmp.ge.f32.partialorder %v2155, 0.0
      %v2158 = vperm.slane %v1830, 0
      %v2159 = vmul.f32 %v2158, %v2154
      %v2160 = vmul.f32 %v2158, %v2155
      %v2161 = vsel %vm2156, %v2154, %v2159
      %v2162 = vsel %vm2157, %v2155, %v2160
      %v2165 = vrot.slane %v2161, 7
      %v2166 = vrot.slane %v2162, 7
      %v2167 = vsel %vm437, %v2165, %v2166
      %2171 = vst [vmem:[#allocation3] sm:$0xfe] %v2165
      %2172 = vst [vmem:[#allocation3 + $0x10] sm:$0xff] %v2167
      %2173 = vst [vmem:[#allocation3 + $0x20] sm:$0x1] %v2166
      %v2174 = vld [vmem:[#allocation3] sm:$0xff]
      %v2175 = vld [vmem:[#allocation3 + $0x8] sm:$0xff]
      %v2176 = vld [vmem:[#allocation3 + $0x10] sm:$0xff]
      %v2177 = vld [vmem:[#allocation3 + $0x18] sm:$0xff]
      %s2178 = scalar_lea.vmem %s3, 408
      %v2179 = vld [vmem:[%s2178] sm:$0xff]
      %v2180 = vld [vmem:[%s2178 + $0x8] sm:$0xff]
      %v2181 = vld [vmem:[%s2178 + $0x10] sm:$0xff]
      %v2182 = vld [vmem:[%s2178 + $0x18] sm:$0xff]
      %v2183 = vld [vmem:[%s2178 + $0x20] sm:$0xff]
      %v2184 = vld [vmem:[%s2178 + $0x28] sm:$0xff]
      %v2185 = vld [vmem:[%s2178 + $0x30] sm:$0xff]
      %v2186 = vld [vmem:[%s2178 + $0x38] sm:$0xff]
      %v2187 = vld [vmem:[%s2178 + $0x40] sm:$0xff]
      %v2188 = vld [vmem:[%s2178 + $0x48] sm:$0xff]
      %v2189 = vld [vmem:[%s2178 + $0x50] sm:$0xff]
      %v2190 = vld [vmem:[%s2178 + $0x58] sm:$0xff]
      %v2191 = vld [vmem:[%s2178 + $0x60] sm:$0xff]
      %v2192 = vld [vmem:[%s2178 + $0x68] sm:$0xff]
      %v2193 = vld [vmem:[%s2178 + $0x70] sm:$0xff]
      %v2194 = vld [vmem:[%s2178 + $0x78] sm:$0xff]
      %v2195 = vld [vmem:[%s2178 + $0x80] sm:$0xff]
      %v2196 = vld [vmem:[#allocation3] sm:$0xfe]
      %v2197 = vld [vmem:[#allocation3 + $0x8] sm:$0xfe]
      %v2198 = vld [vmem:[#allocation3 + $0x20] sm:$0x1]
      %v2199 = vld [vmem:[#allocation3 + $0x28] sm:$0x1]
      %s2200 = scalar_lea.vmem %s3, 544
      %v2201 = vld [vmem:[%s2200] sm:$0xff]
      %v2202 = vld [vmem:[%s2200 + $0x8] sm:$0xff]
      %v2203 = vld [vmem:[%s2200 + $0x10] sm:$0xff]
      %v2204 = vld [vmem:[%s2200 + $0x18] sm:$0xff]
      %v2205 = vld [vmem:[%s2200 + $0x20] sm:$0xff]
      %v2206 = vld [vmem:[%s2200 + $0x28] sm:$0xff]
      %v2207 = vld [vmem:[%s2200 + $0x30] sm:$0xff]
      %v2208 = vld [vmem:[%s2200 + $0x38] sm:$0xff]
      %v2209 = vld [vmem:[%s2200 + $0x40] sm:$0xff]
      %v2210 = vld [vmem:[%s2200 + $0x48] sm:$0xff]
      %v2211 = vld [vmem:[%s2200 + $0x50] sm:$0xff]
      %v2212 = vld [vmem:[%s2200 + $0x58] sm:$0xff]
      %v2213 = vld [vmem:[%s2200 + $0x60] sm:$0xff]
      %v2214 = vld [vmem:[%s2200 + $0x68] sm:$0xff]
      %v2215 = vld [vmem:[%s2200 + $0x70] sm:$0xff]
      %v2216 = vld [vmem:[%s2200 + $0x78] sm:$0xff]
      %v2217 = vld [vmem:[%s2200 + $0x80] sm:$0xff]
      %v2224 = vrot.slane %v2196, 1
      %v2225 = vrot.slane %v2176, 1
      %v2226 = vsel %vm512, %v2224, %v2225
      %v2227 = vrot.slane %v2197, 1
      %v2228 = vrot.slane %v2177, 1
      %v2229 = vsel %vm512, %v2227, %v2228
      %v2230 = vrot.slane %v2198, 1
      %v2231 = vsel %vm512, %v2225, %v2230
      %v2232 = vrot.slane %v2199, 1
      %v2233 = vsel %vm512, %v2228, %v2232
      %v2236 = vsel %vm1838, %v2229, 0
      %v2238 = vsel %vm1838, %v2233, 0
      %2240 = vmatpush.msra.mxu0 %v2216
      %2241 = vmatpush.msra.mxu0 %v2215
      %2242 = vmatpush.msra.mxu0 %v2214
      %2243 = vmatpush.msra.mxu0 %v2213
      %2244 = vmatpush.msra.mxu0 %v2212
      %2245 = vmatpush.msra.mxu0 %v2211
      %2246 = vmatpush.msra.mxu0 %v2210
      %2247 = vmatpush.msra.mxu0 %v2209
      %2248 = vmatpush.msra.mxu0 %v2208
      %2249 = vmatpush.msra.mxu0 %v2207
      %2250 = vmatpush.msra.mxu0 %v2206
      %2251 = vmatpush.msra.mxu0 %v2205
      %2252 = vmatpush.msra.mxu0 %v2204
      %2253 = vmatpush.msra.mxu0 %v2203
      %2254 = vmatpush.msra.mxu0 %v2202
      %2255 = vmatpush.msra.mxu0 %v2201
      %2256 = vmatmul.f32.gmra.mxu0 %v2226
      %v2257 = vpop.f32.mrf.mxu0
      %v2258 = vadd.f32 0.0, %v2257
      %2259 = vmatmul.f32.gmra.mxu0 %v2231
      %v2260 = vpop.f32.mrf.mxu0
      %v2261 = vadd.f32 0.0, %v2260
      %2262 = vdwg.mxu0
      %2263 = vmatpush.msra.mxu0 0.0
      %2264 = vmatpush.msra.mxu0 0.0
      %2265 = vmatpush.msra.mxu0 0.0
      %2266 = vmatpush.msra.mxu0 0.0
      %2267 = vmatpush.msra.mxu0 0.0
      %2268 = vmatpush.msra.mxu0 0.0
      %2269 = vmatpush.msra.mxu0 0.0
      %2270 = vmatpush.msra.mxu0 0.0
      %2271 = vmatpush.msra.mxu0 0.0
      %2272 = vmatpush.msra.mxu0 0.0
      %2273 = vmatpush.msra.mxu0 0.0
      %2274 = vmatpush.msra.mxu0 0.0
      %2275 = vmatpush.msra.mxu0 0.0
      %2276 = vmatpush.msra.mxu0 0.0
      %2277 = vmatpush.msra.mxu0 0.0
      %2278 = vmatpush.msra.mxu0 %v2217
      %2279 = vmatmul.f32.gmra.mxu0 %v2236
      %v2280 = vpop.f32.mrf.mxu0
      %v2281 = vadd.f32 %v2258, %v2280
      %2282 = vmatmul.f32.gmra.mxu0 %v2238
      %v2283 = vpop.f32.mrf.mxu0
      %v2284 = vadd.f32 %v2261, %v2283
      %2285 = vdwg.mxu0
      %v2287 = vsel %vm1838, %v2175, 0
      %v2289 = vsel %vm1838, %v2177, 0
      %2291 = vmatpush.msra.mxu0 %v2194
      %2292 = vmatpush.msra.mxu0 %v2193
      %2293 = vmatpush.msra.mxu0 %v2192
      %2294 = vmatpush.msra.mxu0 %v2191
      %2295 = vmatpush.msra.mxu0 %v2190
      %2296 = vmatpush.msra.mxu0 %v2189
      %2297 = vmatpush.msra.mxu0 %v2188
      %2298 = vmatpush.msra.mxu0 %v2187
      %2299 = vmatpush.msra.mxu0 %v2186
      %2300 = vmatpush.msra.mxu0 %v2185
      %2301 = vmatpush.msra.mxu0 %v2184
      %2302 = vmatpush.msra.mxu0 %v2183
      %2303 = vmatpush.msra.mxu0 %v2182
      %2304 = vmatpush.msra.mxu0 %v2181
      %2305 = vmatpush.msra.mxu0 %v2180
      %2306 = vmatpush.msra.mxu0 %v2179
      %2307 = vmatmul.f32.gmra.mxu0 %v2174
      %v2308 = vpop.f32.mrf.mxu0
      %v2309 = vadd.f32 %v2281, %v2308
      %2310 = vmatmul.f32.gmra.mxu0 %v2176
      %v2311 = vpop.f32.mrf.mxu0
      %v2312 = vadd.f32 %v2284, %v2311
      %2313 = vdwg.mxu0
      %2314 = vmatpush.msra.mxu0 0.0
      %2315 = vmatpush.msra.mxu0 0.0
      %2316 = vmatpush.msra.mxu0 0.0
      %2317 = vmatpush.msra.mxu0 0.0
      %2318 = vmatpush.msra.mxu0 0.0
      %2319 = vmatpush.msra.mxu0 0.0
      %2320 = vmatpush.msra.mxu0 0.0
      %2321 = vmatpush.msra.mxu0 0.0
      %2322 = vmatpush.msra.mxu0 0.0
      %2323 = vmatpush.msra.mxu0 0.0
      %2324 = vmatpush.msra.mxu0 0.0
      %2325 = vmatpush.msra.mxu0 0.0
      %2326 = vmatpush.msra.mxu0 0.0
      %2327 = vmatpush.msra.mxu0 0.0
      %2328 = vmatpush.msra.mxu0 0.0
      %2329 = vmatpush.msra.mxu0 %v2195
      %2330 = vmatmul.f32.gmra.mxu0 %v2287
      %v2331 = vpop.f32.mrf.mxu0
      %v2332 = vadd.f32 %v2309, %v2331
      %2333 = vmatmul.f32.gmra.mxu0 %v2289
      %v2334 = vpop.f32.mrf.mxu0
      %v2335 = vadd.f32 %v2312, %v2334
      %2336 = vdwg.mxu0
      %v2337 = vld [vmem:[#allocation3] sm:$0xfc]
      %v2338 = vld [vmem:[#allocation3 + $0x8] sm:$0xfc]
      %v2339 = vld [vmem:[#allocation3 + $0x20] sm:$0x3]
      %v2340 = vld [vmem:[#allocation3 + $0x28] sm:$0x3]
      %s2341 = scalar_lea.vmem %s3, 680
      %v2342 = vld [vmem:[%s2341] sm:$0xff]
      %v2343 = vld [vmem:[%s2341 + $0x8] sm:$0xff]
      %v2344 = vld [vmem:[%s2341 + $0x10] sm:$0xff]
      %v2345 = vld [vmem:[%s2341 + $0x18] sm:$0xff]
      %v2346 = vld [vmem:[%s2341 + $0x20] sm:$0xff]
      %v2347 = vld [vmem:[%s2341 + $0x28] sm:$0xff]
      %v2348 = vld [vmem:[%s2341 + $0x30] sm:$0xff]
      %v2349 = vld [vmem:[%s2341 + $0x38] sm:$0xff]
      %v2350 = vld [vmem:[%s2341 + $0x40] sm:$0xff]
      %v2351 = vld [vmem:[%s2341 + $0x48] sm:$0xff]
      %v2352 = vld [vmem:[%s2341 + $0x50] sm:$0xff]
      %v2353 = vld [vmem:[%s2341 + $0x58] sm:$0xff]
      %v2354 = vld [vmem:[%s2341 + $0x60] sm:$0xff]
      %v2355 = vld [vmem:[%s2341 + $0x68] sm:$0xff]
      %v2356 = vld [vmem:[%s2341 + $0x70] sm:$0xff]
      %v2357 = vld [vmem:[%s2341 + $0x78] sm:$0xff]
      %v2358 = vld [vmem:[%s2341 + $0x80] sm:$0xff]
      %v2363 = vrot.slane %v2337, 2
      %v2364 = vrot.slane %v2176, 2
      %v2365 = vsel %vm701, %v2363, %v2364
      %v2366 = vrot.slane %v2338, 2
      %v2367 = vrot.slane %v2177, 2
      %v2368 = vsel %vm701, %v2366, %v2367
      %v2369 = vrot.slane %v2339, 2
      %v2370 = vsel %vm701, %v2364, %v2369
      %v2371 = vrot.slane %v2340, 2
      %v2372 = vsel %vm701, %v2367, %v2371
      %v2375 = vsel %vm1838, %v2368, 0
      %v2377 = vsel %vm1838, %v2372, 0
      %2379 = vmatpush.msra.mxu0 %v2357
      %2380 = vmatpush.msra.mxu0 %v2356
      %2381 = vmatpush.msra.mxu0 %v2355
      %2382 = vmatpush.msra.mxu0 %v2354
      %2383 = vmatpush.msra.mxu0 %v2353
      %2384 = vmatpush.msra.mxu0 %v2352
      %2385 = vmatpush.msra.mxu0 %v2351
      %2386 = vmatpush.msra.mxu0 %v2350
      %2387 = vmatpush.msra.mxu0 %v2349
      %2388 = vmatpush.msra.mxu0 %v2348
      %2389 = vmatpush.msra.mxu0 %v2347
      %2390 = vmatpush.msra.mxu0 %v2346
      %2391 = vmatpush.msra.mxu0 %v2345
      %2392 = vmatpush.msra.mxu0 %v2344
      %2393 = vmatpush.msra.mxu0 %v2343
      %2394 = vmatpush.msra.mxu0 %v2342
      %2395 = vmatmul.f32.gmra.mxu0 %v2365
      %v2396 = vpop.f32.mrf.mxu0
      %v2397 = vadd.f32 0.0, %v2396
      %2398 = vmatmul.f32.gmra.mxu0 %v2370
      %v2399 = vpop.f32.mrf.mxu0
      %v2400 = vadd.f32 0.0, %v2399
      %2401 = vdwg.mxu0
      %2402 = vmatpush.msra.mxu0 0.0
      %2403 = vmatpush.msra.mxu0 0.0
      %2404 = vmatpush.msra.mxu0 0.0
      %2405 = vmatpush.msra.mxu0 0.0
      %2406 = vmatpush.msra.mxu0 0.0
      %2407 = vmatpush.msra.mxu0 0.0
      %2408 = vmatpush.msra.mxu0 0.0
      %2409 = vmatpush.msra.mxu0 0.0
      %2410 = vmatpush.msra.mxu0 0.0
      %2411 = vmatpush.msra.mxu0 0.0
      %2412 = vmatpush.msra.mxu0 0.0
      %2413 = vmatpush.msra.mxu0 0.0
      %2414 = vmatpush.msra.mxu0 0.0
      %2415 = vmatpush.msra.mxu0 0.0
      %2416 = vmatpush.msra.mxu0 0.0
      %2417 = vmatpush.msra.mxu0 %v2358
      %2418 = vmatmul.f32.gmra.mxu0 %v2375
      %v2419 = vpop.f32.mrf.mxu0
      %v2420 = vadd.f32 %v2397, %v2419
      %2421 = vmatmul.f32.gmra.mxu0 %v2377
      %v2422 = vpop.f32.mrf.mxu0
      %v2423 = vadd.f32 %v2400, %v2422
      %2424 = vdwg.mxu0
      %v2425 = vadd.f32 %v2332, %v2420
      %v2426 = vadd.f32 %v2335, %v2423
      %v2427 = vadd.f32 %v2425, %v2426
      %2428 = vadd.xlane.f32.xlu0 %v2427
      %v2429 = vpop.xlane.xlu0 %2428
      %v2430 = vrot.slane %v2429, 4
      %v2431 = vadd.f32 %v2429, %v2430
      %v2432 = vrot.slane %v2431, 2
      %v2433 = vadd.f32 %v2431, %v2432
      %v2434 = vrot.slane %v2433, 1
      %v2435 = vadd.f32 %v2433, %v2434
      %s2436 = vtos %v2435
      %s2437 = smul.f32 %s2436, 0.00048828125
      %v2438 = vmul.f32 %v2425, %v2425
      %v2439 = vmul.f32 %v2426, %v2426
      %v2440 = vadd.f32 %v2438, %v2439
      %2441 = vadd.xlane.f32.xlu0 %v2440
      %v2442 = vpop.xlane.xlu0 %2441
      %v2443 = vrot.slane %v2442, 4
      %v2444 = vadd.f32 %v2442, %v2443
      %v2445 = vrot.slane %v2444, 2
      %v2446 = vadd.f32 %v2444, %v2445
      %v2447 = vrot.slane %v2446, 1
      %v2448 = vadd.f32 %v2446, %v2447
      %s2449 = vtos %v2448
      %s2450 = smul.f32 %s2449, 0.00048828125
      %s2451 = smul.f32 %s2437, %s2437
      %s2452 = ssub.f32 %s2450, %s2451
      %s2453 = sadd.f32 %s2452, 1e-05
      %v2454 = vstv %s2453
      %v2455 = vrsqrt.pop %v2454
      %v2456 = vmul.f32 %v2455, %v2454
      %v2457 = vmul.f32 %v2456, %v2455
      %v2458 = vmul.f32 0.5, %v2457
      %v2459 = vsub.f32 1.5, %v2458
      %v2460 = vmul.f32 %v2455, %v2459
      %vm2461 = vweird.f32 %v2454
      %vm2462 = vweird.f32 %v2455
      %vm2463 = vmor %vm2461, %vm2462
      %v2464 = vsel %vm2463, %v2455, %v2460
      %s2465 = vtos %v2464
      %v2466 = vstv %s2465
      %v2467 = vmul.f32 %v2466, %v1828
      %v2468 = vstv %s2437
      %v2469 = vsub.f32 %v2425, %v2468
      %v2470 = vsub.f32 %v2426, %v2468
      %v2471 = vperm.slane %v2467, 0
      %v2472 = vmul.f32 %v2469, %v2471
      %v2473 = vmul.f32 %v2470, %v2471
      %v2474 = vadd.f32 %v2472, %v2153
      %v2475 = vadd.f32 %v2473, %v2153
      %vm2476 = vcmp.ge.f32.partialorder %v2474, 0.0
      %vm2477 = vcmp.ge.f32.partialorder %v2475, 0.0
      %v2478 = vmul.f32 %v2158, %v2474
      %v2479 = vmul.f32 %v2158, %v2475
      %v2480 = vsel %vm2476, %v2474, %v2478
      %v2481 = vsel %vm2477, %v2475, %v2479
      %v2484 = vrot.slane %v2480, 7
      %v2485 = vrot.slane %v2481, 7
      %v2486 = vsel %vm437, %v2484, %v2485
      %2490 = vst [vmem:[#allocation3] sm:$0xfe] %v2484
      %2491 = vst [vmem:[#allocation3 + $0x10] sm:$0xff] %v2486
      %2492 = vst [vmem:[#allocation3 + $0x20] sm:$0x1] %v2485
      %v2493 = vld [vmem:[#allocation3] sm:$0xff]
      %v2494 = vld [vmem:[#allocation3 + $0x8] sm:$0xff]
      %v2495 = vld [vmem:[#allocation3 + $0x10] sm:$0xff]
      %v2496 = vld [vmem:[#allocation3 + $0x18] sm:$0xff]
      %s2497 = scalar_lea.vmem %s3, 816
      %v2498 = vld [vmem:[%s2497] sm:$0xff]
      %v2499 = vld [vmem:[%s2497 + $0x8] sm:$0xff]
      %v2500 = vld [vmem:[%s2497 + $0x10] sm:$0xff]
      %v2501 = vld [vmem:[%s2497 + $0x18] sm:$0xff]
      %v2502 = vld [vmem:[%s2497 + $0x20] sm:$0xff]
      %v2503 = vld [vmem:[%s2497 + $0x28] sm:$0xff]
      %v2504 = vld [vmem:[%s2497 + $0x30] sm:$0xff]
      %v2505 = vld [vmem:[%s2497 + $0x38] sm:$0xff]
      %v2506 = vld [vmem:[%s2497 + $0x40] sm:$0xff]
      %v2507 = vld [vmem:[%s2497 + $0x48] sm:$0xff]
      %v2508 = vld [vmem:[%s2497 + $0x50] sm:$0xff]
      %v2509 = vld [vmem:[%s2497 + $0x58] sm:$0xff]
      %v2510 = vld [vmem:[%s2497 + $0x60] sm:$0xff]
      %v2511 = vld [vmem:[%s2497 + $0x68] sm:$0xff]
      %v2512 = vld [vmem:[%s2497 + $0x70] sm:$0xff]
      %v2513 = vld [vmem:[%s2497 + $0x78] sm:$0xff]
      %v2514 = vld [vmem:[%s2497 + $0x80] sm:$0xff]
      %v2515 = vld [vmem:[#allocation3] sm:$0xfe]
      %v2516 = vld [vmem:[#allocation3 + $0x8] sm:$0xfe]
      %v2517 = vld [vmem:[#allocation3 + $0x20] sm:$0x1]
      %v2518 = vld [vmem:[#allocation3 + $0x28] sm:$0x1]
      %s2519 = scalar_lea.vmem %s3, 952
      %v2520 = vld [vmem:[%s2519] sm:$0xff]
      %v2521 = vld [vmem:[%s2519 + $0x8] sm:$0xff]
      %v2522 = vld [vmem:[%s2519 + $0x10] sm:$0xff]
      %v2523 = vld [vmem:[%s2519 + $0x18] sm:$0xff]
      %v2524 = vld [vmem:[%s2519 + $0x20] sm:$0xff]
      %v2525 = vld [vmem:[%s2519 + $0x28] sm:$0xff]
      %v2526 = vld [vmem:[%s2519 + $0x30] sm:$0xff]
      %v2527 = vld [vmem:[%s2519 + $0x38] sm:$0xff]
      %v2528 = vld [vmem:[%s2519 + $0x40] sm:$0xff]
      %v2529 = vld [vmem:[%s2519 + $0x48] sm:$0xff]
      %v2530 = vld [vmem:[%s2519 + $0x50] sm:$0xff]
      %v2531 = vld [vmem:[%s2519 + $0x58] sm:$0xff]
      %v2532 = vld [vmem:[%s2519 + $0x60] sm:$0xff]
      %v2533 = vld [vmem:[%s2519 + $0x68] sm:$0xff]
      %v2534 = vld [vmem:[%s2519 + $0x70] sm:$0xff]
      %v2535 = vld [vmem:[%s2519 + $0x78] sm:$0xff]
      %v2536 = vld [vmem:[%s2519 + $0x80] sm:$0xff]
      %v2543 = vrot.slane %v2515, 1
      %v2544 = vrot.slane %v2495, 1
      %v2545 = vsel %vm512, %v2543, %v2544
      %v2546 = vrot.slane %v2516, 1
      %v2547 = vrot.slane %v2496, 1
      %v2548 = vsel %vm512, %v2546, %v2547
      %v2549 = vrot.slane %v2517, 1
      %v2550 = vsel %vm512, %v2544, %v2549
      %v2551 = vrot.slane %v2518, 1
      %v2552 = vsel %vm512, %v2547, %v2551
      %v2555 = vsel %vm1838, %v2548, 0
      %v2557 = vsel %vm1838, %v2552, 0
      %2559 = vmatpush.msra.mxu0 %v2535
      %2560 = vmatpush.msra.mxu0 %v2534
      %2561 = vmatpush.msra.mxu0 %v2533
      %2562 = vmatpush.msra.mxu0 %v2532
      %2563 = vmatpush.msra.mxu0 %v2531
      %2564 = vmatpush.msra.mxu0 %v2530
      %2565 = vmatpush.msra.mxu0 %v2529
      %2566 = vmatpush.msra.mxu0 %v2528
      %2567 = vmatpush.msra.mxu0 %v2527
      %2568 = vmatpush.msra.mxu0 %v2526
      %2569 = vmatpush.msra.mxu0 %v2525
      %2570 = vmatpush.msra.mxu0 %v2524
      %2571 = vmatpush.msra.mxu0 %v2523
      %2572 = vmatpush.msra.mxu0 %v2522
      %2573 = vmatpush.msra.mxu0 %v2521
      %2574 = vmatpush.msra.mxu0 %v2520
      %2575 = vmatmul.f32.gmra.mxu0 %v2545
      %v2576 = vpop.f32.mrf.mxu0
      %v2577 = vadd.f32 0.0, %v2576
      %2578 = vmatmul.f32.gmra.mxu0 %v2550
      %v2579 = vpop.f32.mrf.mxu0
      %v2580 = vadd.f32 0.0, %v2579
      %2581 = vdwg.mxu0
      %2582 = vmatpush.msra.mxu0 0.0
      %2583 = vmatpush.msra.mxu0 0.0
      %2584 = vmatpush.msra.mxu0 0.0
      %2585 = vmatpush.msra.mxu0 0.0
      %2586 = vmatpush.msra.mxu0 0.0
      %2587 = vmatpush.msra.mxu0 0.0
      %2588 = vmatpush.msra.mxu0 0.0
      %2589 = vmatpush.msra.mxu0 0.0
      %2590 = vmatpush.msra.mxu0 0.0
      %2591 = vmatpush.msra.mxu0 0.0
      %2592 = vmatpush.msra.mxu0 0.0
      %2593 = vmatpush.msra.mxu0 0.0
      %2594 = vmatpush.msra.mxu0 0.0
      %2595 = vmatpush.msra.mxu0 0.0
      %2596 = vmatpush.msra.mxu0 0.0
      %2597 = vmatpush.msra.mxu0 %v2536
      %2598 = vmatmul.f32.gmra.mxu0 %v2555
      %v2599 = vpop.f32.mrf.mxu0
      %v2600 = vadd.f32 %v2577, %v2599
      %2601 = vmatmul.f32.gmra.mxu0 %v2557
      %v2602 = vpop.f32.mrf.mxu0
      %v2603 = vadd.f32 %v2580, %v2602
      %2604 = vdwg.mxu0
      %v2606 = vsel %vm1838, %v2494, 0
      %v2608 = vsel %vm1838, %v2496, 0
      %2610 = vmatpush.msra.mxu0 %v2513
      %2611 = vmatpush.msra.mxu0 %v2512
      %2612 = vmatpush.msra.mxu0 %v2511
      %2613 = vmatpush.msra.mxu0 %v2510
      %2614 = vmatpush.msra.mxu0 %v2509
      %2615 = vmatpush.msra.mxu0 %v2508
      %2616 = vmatpush.msra.mxu0 %v2507
      %2617 = vmatpush.msra.mxu0 %v2506
      %2618 = vmatpush.msra.mxu0 %v2505
      %2619 = vmatpush.msra.mxu0 %v2504
      %2620 = vmatpush.msra.mxu0 %v2503
      %2621 = vmatpush.msra.mxu0 %v2502
      %2622 = vmatpush.msra.mxu0 %v2501
      %2623 = vmatpush.msra.mxu0 %v2500
      %2624 = vmatpush.msra.mxu0 %v2499
      %2625 = vmatpush.msra.mxu0 %v2498
      %2626 = vmatmul.f32.gmra.mxu0 %v2493
      %v2627 = vpop.f32.mrf.mxu0
      %v2628 = vadd.f32 %v2600, %v2627
      %2629 = vmatmul.f32.gmra.mxu0 %v2495
      %v2630 = vpop.f32.mrf.mxu0
      %v2631 = vadd.f32 %v2603, %v2630
      %2632 = vdwg.mxu0
      %2633 = vmatpush.msra.mxu0 0.0
      %2634 = vmatpush.msra.mxu0 0.0
      %2635 = vmatpush.msra.mxu0 0.0
      %2636 = vmatpush.msra.mxu0 0.0
      %2637 = vmatpush.msra.mxu0 0.0
      %2638 = vmatpush.msra.mxu0 0.0
      %2639 = vmatpush.msra.mxu0 0.0
      %2640 = vmatpush.msra.mxu0 0.0
      %2641 = vmatpush.msra.mxu0 0.0
      %2642 = vmatpush.msra.mxu0 0.0
      %2643 = vmatpush.msra.mxu0 0.0
      %2644 = vmatpush.msra.mxu0 0.0
      %2645 = vmatpush.msra.mxu0 0.0
      %2646 = vmatpush.msra.mxu0 0.0
      %2647 = vmatpush.msra.mxu0 0.0
      %2648 = vmatpush.msra.mxu0 %v2514
      %2649 = vmatmul.f32.gmra.mxu0 %v2606
      %v2650 = vpop.f32.mrf.mxu0
      %v2651 = vadd.f32 %v2628, %v2650
      %2652 = vmatmul.f32.gmra.mxu0 %v2608
      %v2653 = vpop.f32.mrf.mxu0
      %v2654 = vadd.f32 %v2631, %v2653
      %2655 = vdwg.mxu0
      %v2656 = vld [vmem:[#allocation3] sm:$0xfc]
      %v2657 = vld [vmem:[#allocation3 + $0x8] sm:$0xfc]
      %v2658 = vld [vmem:[#allocation3 + $0x20] sm:$0x3]
      %v2659 = vld [vmem:[#allocation3 + $0x28] sm:$0x3]
      %s2660 = scalar_lea.vmem %s3, 1088
      %v2661 = vld [vmem:[%s2660] sm:$0xff]
      %v2662 = vld [vmem:[%s2660 + $0x8] sm:$0xff]
      %v2663 = vld [vmem:[%s2660 + $0x10] sm:$0xff]
      %v2664 = vld [vmem:[%s2660 + $0x18] sm:$0xff]
      %v2665 = vld [vmem:[%s2660 + $0x20] sm:$0xff]
      %v2666 = vld [vmem:[%s2660 + $0x28] sm:$0xff]
      %v2667 = vld [vmem:[%s2660 + $0x30] sm:$0xff]
      %v2668 = vld [vmem:[%s2660 + $0x38] sm:$0xff]
      %v2669 = vld [vmem:[%s2660 + $0x40] sm:$0xff]
      %v2670 = vld [vmem:[%s2660 + $0x48] sm:$0xff]
      %v2671 = vld [vmem:[%s2660 + $0x50] sm:$0xff]
      %v2672 = vld [vmem:[%s2660 + $0x58] sm:$0xff]
      %v2673 = vld [vmem:[%s2660 + $0x60] sm:$0xff]
      %v2674 = vld [vmem:[%s2660 + $0x68] sm:$0xff]
      %v2675 = vld [vmem:[%s2660 + $0x70] sm:$0xff]
      %v2676 = vld [vmem:[%s2660 + $0x78] sm:$0xff]
      %v2677 = vld [vmem:[%s2660 + $0x80] sm:$0xff]
      %v2682 = vrot.slane %v2656, 2
      %v2683 = vrot.slane %v2495, 2
      %v2684 = vsel %vm701, %v2682, %v2683
      %v2685 = vrot.slane %v2657, 2
      %v2686 = vrot.slane %v2496, 2
      %v2687 = vsel %vm701, %v2685, %v2686
      %v2688 = vrot.slane %v2658, 2
      %v2689 = vsel %vm701, %v2683, %v2688
      %v2690 = vrot.slane %v2659, 2
      %v2691 = vsel %vm701, %v2686, %v2690
      %v2694 = vsel %vm1838, %v2687, 0
      %v2696 = vsel %vm1838, %v2691, 0
      %2698 = vmatpush.msra.mxu0 %v2676
      %2699 = vmatpush.msra.mxu0 %v2675
      %2700 = vmatpush.msra.mxu0 %v2674
      %2701 = vmatpush.msra.mxu0 %v2673
      %2702 = vmatpush.msra.mxu0 %v2672
      %2703 = vmatpush.msra.mxu0 %v2671
      %2704 = vmatpush.msra.mxu0 %v2670
      %2705 = vmatpush.msra.mxu0 %v2669
      %2706 = vmatpush.msra.mxu0 %v2668
      %2707 = vmatpush.msra.mxu0 %v2667
      %2708 = vmatpush.msra.mxu0 %v2666
      %2709 = vmatpush.msra.mxu0 %v2665
      %2710 = vmatpush.msra.mxu0 %v2664
      %2711 = vmatpush.msra.mxu0 %v2663
      %2712 = vmatpush.msra.mxu0 %v2662
      %2713 = vmatpush.msra.mxu0 %v2661
      %2714 = vmatmul.f32.gmra.mxu0 %v2684
      %v2715 = vpop.f32.mrf.mxu0
      %v2716 = vadd.f32 0.0, %v2715
      %2717 = vmatmul.f32.gmra.mxu0 %v2689
      %v2718 = vpop.f32.mrf.mxu0
      %v2719 = vadd.f32 0.0, %v2718
      %2720 = vdwg.mxu0
      %2721 = vmatpush.msra.mxu0 0.0
      %2722 = vmatpush.msra.mxu0 0.0
      %2723 = vmatpush.msra.mxu0 0.0
      %2724 = vmatpush.msra.mxu0 0.0
      %2725 = vmatpush.msra.mxu0 0.0
      %2726 = vmatpush.msra.mxu0 0.0
      %2727 = vmatpush.msra.mxu0 0.0
      %2728 = vmatpush.msra.mxu0 0.0
      %2729 = vmatpush.msra.mxu0 0.0
      %2730 = vmatpush.msra.mxu0 0.0
      %2731 = vmatpush.msra.mxu0 0.0
      %2732 = vmatpush.msra.mxu0 0.0
      %2733 = vmatpush.msra.mxu0 0.0
      %2734 = vmatpush.msra.mxu0 0.0
      %2735 = vmatpush.msra.mxu0 0.0
      %2736 = vmatpush.msra.mxu0 %v2677
      %2737 = vmatmul.f32.gmra.mxu0 %v2694
      %v2738 = vpop.f32.mrf.mxu0
      %v2739 = vadd.f32 %v2716, %v2738
      %2740 = vmatmul.f32.gmra.mxu0 %v2696
      %v2741 = vpop.f32.mrf.mxu0
      %v2742 = vadd.f32 %v2719, %v2741
      %2743 = vdwg.mxu0
      %v2744 = vadd.f32 %v2651, %v2739
      %v2745 = vadd.f32 %v2654, %v2742
      %v2746 = vadd.f32 %v2744, %v2745
      %2747 = vadd.xlane.f32.xlu0 %v2746
      %v2748 = vpop.xlane.xlu0 %2747
      %v2749 = vrot.slane %v2748, 4
      %v2750 = vadd.f32 %v2748, %v2749
      %v2751 = vrot.slane %v2750, 2
      %v2752 = vadd.f32 %v2750, %v2751
      %v2753 = vrot.slane %v2752, 1
      %v2754 = vadd.f32 %v2752, %v2753
      %s2755 = vtos %v2754
      %s2756 = smul.f32 %s2755, 0.00048828125
      %v2757 = vmul.f32 %v2744, %v2744
      %v2758 = vmul.f32 %v2745, %v2745
      %v2759 = vadd.f32 %v2757, %v2758
      %2760 = vadd.xlane.f32.xlu0 %v2759
      %v2761 = vpop.xlane.xlu0 %2760
      %v2762 = vrot.slane %v2761, 4
      %v2763 = vadd.f32 %v2761, %v2762
      %v2764 = vrot.slane %v2763, 2
      %v2765 = vadd.f32 %v2763, %v2764
      %v2766 = vrot.slane %v2765, 1
      %v2767 = vadd.f32 %v2765, %v2766
      %s2768 = vtos %v2767
      %s2769 = smul.f32 %s2768, 0.00048828125
      %s2770 = smul.f32 %s2756, %s2756
      %s2771 = ssub.f32 %s2769, %s2770
      %s2772 = sadd.f32 %s2771, 1e-05
      %v2773 = vstv %s2772
      %v2774 = vrsqrt.pop %v2773
      %v2775 = vmul.f32 %v2774, %v2773
      %v2776 = vmul.f32 %v2775, %v2774
      %v2777 = vmul.f32 0.5, %v2776
      %v2778 = vsub.f32 1.5, %v2777
      %v2779 = vmul.f32 %v2774, %v2778
      %vm2780 = vweird.f32 %v2773
      %vm2781 = vweird.f32 %v2774
      %vm2782 = vmor %vm2780, %vm2781
      %v2783 = vsel %vm2782, %v2774, %v2779
      %s2784 = vtos %v2783
      %v2785 = vstv %s2784
      %v2786 = vmul.f32 %v2785, %v1828
      %v2787 = vstv %s2756
      %v2788 = vsub.f32 %v2744, %v2787
      %v2789 = vsub.f32 %v2745, %v2787
      %v2790 = vperm.slane %v2786, 0
      %v2791 = vmul.f32 %v2788, %v2790
      %v2792 = vmul.f32 %v2789, %v2790
      %v2793 = vadd.f32 %v2791, %v2153
      %v2794 = vadd.f32 %v2792, %v2153
      %v2795 = vadd.f32 %v2793, %v1823
      %v2796 = vadd.f32 %v2794, %v1826
      %vm2797 = vcmp.ge.f32.partialorder %v2795, 0.0
      %vm2798 = vcmp.ge.f32.partialorder %v2796, 0.0
      %v2799 = vmul.f32 %v2158, %v2795
      %v2800 = vmul.f32 %v2158, %v2796
      %v2801 = vsel %vm2797, %v2795, %v2799
      %v2802 = vsel %vm2798, %v2796, %v2800
      %2803 = vst [vmem:[%s405] sm:$0xff] %v2801
      %2804 = vst [vmem:[%s405 + $0x8] sm:$0xff] %v2802
      %2805 = vst [vmem:[#allocation6] sm:$0x1] -inf
      %2806 = vst [vmem:[#allocation6 + $0x11] sm:$0x1] -inf
      %2807 = vst [vmem:[#allocation6 + $0x1] sm:$0xff] %v2801
      %2808 = vst [vmem:[#allocation6 + $0x9] sm:$0xff] %v2802
      %v2809 = vld [vmem:[#allocation6] ss:$2 sm:$0xff]
      %s2810 = scalar_lea.vmem [#allocation6], 1
      %v2811 = vld [vmem:[%s2810] ss:$2 sm:$0xff]
      %v2812 = vmax.f32 %v2809, %v2811
      %s2813 = scalar_lea.vmem [#allocation6], 2
      %v2814 = vld [vmem:[%s2813] ss:$2 sm:$0xff]
      %v2815 = vmax.f32 %v2812, %v2814
      %vm2816 = vcmp.ge.s32.totalorder %v1770, 8
      %2817 = vrot.lane.b32.xlu0 %v2815, 8
      %v2818 = vpop.permute.xlu0 %2817
      %v2819 = vsel %vm2816, %v2818, -inf
      %vm2820 = vcmp.lt.s32.totalorder %v1770, 120
      %2821 = vrot.lane.b32.xlu0 %v2815, 120
      %v2822 = vpop.permute.xlu0 %2821
      %v2823 = vsel %vm2820, %v2822, -inf
      %v2824 = vmax.f32 %v2819, %v2815
      %v2825 = vmax.f32 %v2824, %v2823
      %v2826 = vld [vmem:[%s8] sm:$0xff]
      %v2827 = vld [vmem:[%s8 + $0x8] sm:$0xff]
      %v2828 = vld [vmem:[%s8 + $0x10] sm:$0xff]
      %v2829 = vld [vmem:[%s8 + $0x18] sm:$0xff]
      %v2830 = vld [vmem:[%s8 + $0x20] sm:$0xff]
      %v2831 = vld [vmem:[%s8 + $0x28] sm:$0xff]
      %v2832 = vld [vmem:[%s8 + $0x30] sm:$0xff]
      %v2833 = vld [vmem:[%s8 + $0x38] sm:$0xff]
      %v2834 = vld [vmem:[%s8 + $0x40] sm:$0xff]
      %v2835 = vld [vmem:[%s8 + $0x48] sm:$0xff]
      %v2836 = vld [vmem:[%s8 + $0x50] sm:$0xff]
      %v2837 = vld [vmem:[%s8 + $0x58] sm:$0xff]
      %v2838 = vld [vmem:[%s8 + $0x60] sm:$0xff]
      %v2839 = vld [vmem:[%s8 + $0x68] sm:$0xff]
      %v2840 = vld [vmem:[%s8 + $0x70] sm:$0xff]
      %v2841 = vld [vmem:[%s8 + $0x78] sm:$0xff]
      %2842 = vmatpush.msra.mxu0 %v2841
      %2843 = vmatpush.msra.mxu0 %v2840
      %2844 = vmatpush.msra.mxu0 %v2839
      %2845 = vmatpush.msra.mxu0 %v2838
      %2846 = vmatpush.msra.mxu0 %v2837
      %2847 = vmatpush.msra.mxu0 %v2836
      %2848 = vmatpush.msra.mxu0 %v2835
      %2849 = vmatpush.msra.mxu0 %v2834
      %2850 = vmatpush.msra.mxu0 %v2833
      %2851 = vmatpush.msra.mxu0 %v2832
      %2852 = vmatpush.msra.mxu0 %v2831
      %2853 = vmatpush.msra.mxu0 %v2830
      %2854 = vmatpush.msra.mxu0 %v2829
      %2855 = vmatpush.msra.mxu0 %v2828
      %2856 = vmatpush.msra.mxu0 %v2827
      %2857 = vmatpush.msra.mxu0 %v2826
      %2858 = vmatmul.f32.gmra.mxu0 %v2825
      %v2859 = vpop.f32.mrf.mxu0
      %v2860 = vadd.f32 0.0, %v2859
      %2861 = vdwg.mxu0
      %v2862 = vld [vmem:[%s6] sm:$0x1]
      %v2863 = vld [vmem:[%s6 + $0x1] sm:$0x1]
      %v2864 = vld [vmem:[%s6 + $0x2] sm:$0x1]
      %vm2865 = vcmp.lt.s32.totalorder %v417, 144
      %vm2866 = vmand %vm418, %vm2865
      %2867 = vst.msk [vmem:[#allocation4] ss:$8 sm:$0x3] %vm2866, 0.0
      %2868 = vst.msk [vmem:[#allocation4] ss:$8 sm:$0x0] %vm2866, 0.0
      %s2869 = scalar_lea.vmem [#allocation4], 17
      %2870 = vst.msk [vmem:[%s2869] ss:$8 sm:$0x3] %vm2866, 0.0
      %2871 = vst.msk [vmem:[%s2869] ss:$8 sm:$0x0] %vm2866, 0.0
      %vm2872 = vcmask 130048
      %2873 = vst.msk [vmem:[#allocation4 + $0x8] sm:$0xff] %vm2872, 0.0
      %vm2874 = vcmask 123904
      %2875 = vst.msk [vmem:[#allocation4 + $0x18] sm:$0x3] %vm2874, 0.0
      %v2877 = vrot.slane %v2860, 7
      %2879 = vst [vmem:[#allocation4] sm:$0xfe] %v2877
      %2880 = vst [vmem:[#allocation4 + $0x10] sm:$0x1] %v2877
      %v2881 = vld [vmem:[#allocation4] sm:$0xff]
      %v2882 = vld [vmem:[#allocation4 + $0x8] sm:$0xff]
      %v2883 = vld [vmem:[%s5] sm:$0xff]
      %v2884 = vld [vmem:[%s5 + $0x8] sm:$0xff]
      %v2885 = vld [vmem:[%s5 + $0x10] sm:$0xff]
      %v2886 = vld [vmem:[%s5 + $0x18] sm:$0xff]
      %v2887 = vld [vmem:[%s5 + $0x20] sm:$0xff]
      %v2888 = vld [vmem:[%s5 + $0x28] sm:$0xff]
      %v2889 = vld [vmem:[%s5 + $0x30] sm:$0xff]
      %v2890 = vld [vmem:[%s5 + $0x38] sm:$0xff]
      %v2891 = vld [vmem:[%s5 + $0x40] sm:$0xff]
      %v2892 = vld [vmem:[%s5 + $0x48] sm:$0xff]
      %v2893 = vld [vmem:[%s5 + $0x50] sm:$0xff]
      %v2894 = vld [vmem:[%s5 + $0x58] sm:$0xff]
      %v2895 = vld [vmem:[%s5 + $0x60] sm:$0xff]
      %v2896 = vld [vmem:[%s5 + $0x68] sm:$0xff]
      %v2897 = vld [vmem:[%s5 + $0x70] sm:$0xff]
      %v2898 = vld [vmem:[%s5 + $0x78] sm:$0xff]
      %v2899 = vld [vmem:[%s5 + $0x80] sm:$0xff]
      %v2900 = vld [vmem:[%s5 + $0x88] sm:$0xff]
      %v2901 = vld [vmem:[#allocation4] sm:$0xfe]
      %v2902 = vld [vmem:[#allocation4 + $0x8] sm:$0xfe]
      %v2903 = vld [vmem:[#allocation4 + $0x10] sm:$0x1]
      %v2904 = vld [vmem:[#allocation4 + $0x18] sm:$0x1]
      %s2905 = scalar_lea.vmem %s5, 144
      %v2906 = vld [vmem:[%s2905] sm:$0xff]
      %v2907 = vld [vmem:[%s2905 + $0x8] sm:$0xff]
      %v2908 = vld [vmem:[%s2905 + $0x10] sm:$0xff]
      %v2909 = vld [vmem:[%s2905 + $0x18] sm:$0xff]
      %v2910 = vld [vmem:[%s2905 + $0x20] sm:$0xff]
      %v2911 = vld [vmem:[%s2905 + $0x28] sm:$0xff]
      %v2912 = vld [vmem:[%s2905 + $0x30] sm:$0xff]
      %v2913 = vld [vmem:[%s2905 + $0x38] sm:$0xff]
      %v2914 = vld [vmem:[%s2905 + $0x40] sm:$0xff]
      %v2915 = vld [vmem:[%s2905 + $0x48] sm:$0xff]
      %v2916 = vld [vmem:[%s2905 + $0x50] sm:$0xff]
      %v2917 = vld [vmem:[%s2905 + $0x58] sm:$0xff]
      %v2918 = vld [vmem:[%s2905 + $0x60] sm:$0xff]
      %v2919 = vld [vmem:[%s2905 + $0x68] sm:$0xff]
      %v2920 = vld [vmem:[%s2905 + $0x70] sm:$0xff]
      %v2921 = vld [vmem:[%s2905 + $0x78] sm:$0xff]
      %v2922 = vld [vmem:[%s2905 + $0x80] sm:$0xff]
      %v2923 = vld [vmem:[%s2905 + $0x88] sm:$0xff]
      %v2928 = vrot.slane %v2901, 1
      %v2929 = vrot.slane %v2903, 1
      %v2930 = vsel %vm512, %v2928, %v2929
      %v2931 = vrot.slane %v2902, 1
      %v2932 = vrot.slane %v2904, 1
      %v2933 = vsel %vm512, %v2931, %v2932
      %v2935 = vsel %vm2872, %v2933, 0
      %2937 = vmatpush.msra.mxu0 %v2921
      %2938 = vmatpush.msra.mxu0 %v2920
      %2939 = vmatpush.msra.mxu0 %v2919
      %2940 = vmatpush.msra.mxu0 %v2918
      %2941 = vmatpush.msra.mxu0 %v2917
      %2942 = vmatpush.msra.mxu0 %v2916
      %2943 = vmatpush.msra.mxu0 %v2915
      %2944 = vmatpush.msra.mxu0 %v2914
      %2945 = vmatpush.msra.mxu0 %v2913
      %2946 = vmatpush.msra.mxu0 %v2912
      %2947 = vmatpush.msra.mxu0 %v2911
      %2948 = vmatpush.msra.mxu0 %v2910
      %2949 = vmatpush.msra.mxu0 %v2909
      %2950 = vmatpush.msra.mxu0 %v2908
      %2951 = vmatpush.msra.mxu0 %v2907
      %2952 = vmatpush.msra.mxu0 %v2906
      %2953 = vmatmul.f32.gmra.mxu0 %v2930
      %v2954 = vpop.f32.mrf.mxu0
      %v2955 = vadd.f32 0.0, %v2954
      %2956 = vdwg.mxu0
      %2957 = vmatpush.msra.mxu0 0.0
      %2958 = vmatpush.msra.mxu0 0.0
      %2959 = vmatpush.msra.mxu0 0.0
      %2960 = vmatpush.msra.mxu0 0.0
      %2961 = vmatpush.msra.mxu0 0.0
      %2962 = vmatpush.msra.mxu0 0.0
      %2963 = vmatpush.msra.mxu0 0.0
      %2964 = vmatpush.msra.mxu0 0.0
      %2965 = vmatpush.msra.mxu0 0.0
      %2966 = vmatpush.msra.mxu0 0.0
      %2967 = vmatpush.msra.mxu0 0.0
      %2968 = vmatpush.msra.mxu0 0.0
      %2969 = vmatpush.msra.mxu0 0.0
      %2970 = vmatpush.msra.mxu0 0.0
      %2971 = vmatpush.msra.mxu0 %v2923
      %2972 = vmatpush.msra.mxu0 %v2922
      %2973 = vmatmul.f32.gmra.mxu0 %v2935
      %v2974 = vpop.f32.mrf.mxu0
      %v2975 = vadd.f32 %v2955, %v2974
      %2976 = vdwg.mxu0
      %v2978 = vsel %vm2872, %v2882, 0
      %2980 = vmatpush.msra.mxu0 %v2898
      %2981 = vmatpush.msra.mxu0 %v2897
      %2982 = vmatpush.msra.mxu0 %v2896
      %2983 = vmatpush.msra.mxu0 %v2895
      %2984 = vmatpush.msra.mxu0 %v2894
      %2985 = vmatpush.msra.mxu0 %v2893
      %2986 = vmatpush.msra.mxu0 %v2892
      %2987 = vmatpush.msra.mxu0 %v2891
      %2988 = vmatpush.msra.mxu0 %v2890
      %2989 = vmatpush.msra.mxu0 %v2889
      %2990 = vmatpush.msra.mxu0 %v2888
      %2991 = vmatpush.msra.mxu0 %v2887
      %2992 = vmatpush.msra.mxu0 %v2886
      %2993 = vmatpush.msra.mxu0 %v2885
      %2994 = vmatpush.msra.mxu0 %v2884
      %2995 = vmatpush.msra.mxu0 %v2883
      %2996 = vmatmul.f32.gmra.mxu0 %v2881
      %v2997 = vpop.f32.mrf.mxu0
      %v2998 = vadd.f32 %v2975, %v2997
      %2999 = vdwg.mxu0
      %3000 = vmatpush.msra.mxu0 0.0
      %3001 = vmatpush.msra.mxu0 0.0
      %3002 = vmatpush.msra.mxu0 0.0
      %3003 = vmatpush.msra.mxu0 0.0
      %3004 = vmatpush.msra.mxu0 0.0
      %3005 = vmatpush.msra.mxu0 0.0
      %3006 = vmatpush.msra.mxu0 0.0
      %3007 = vmatpush.msra.mxu0 0.0
      %3008 = vmatpush.msra.mxu0 0.0
      %3009 = vmatpush.msra.mxu0 0.0
      %3010 = vmatpush.msra.mxu0 0.0
      %3011 = vmatpush.msra.mxu0 0.0
      %3012 = vmatpush.msra.mxu0 0.0
      %3013 = vmatpush.msra.mxu0 0.0
      %3014 = vmatpush.msra.mxu0 %v2900
      %3015 = vmatpush.msra.mxu0 %v2899
      %3016 = vmatmul.f32.gmra.mxu0 %v2978
      %v3017 = vpop.f32.mrf.mxu0
      %v3018 = vadd.f32 %v2998, %v3017
      %3019 = vdwg.mxu0
      %v3020 = vld [vmem:[#allocation4] sm:$0xfc]
      %v3021 = vld [vmem:[#allocation4 + $0x8] sm:$0xfc]
      %v3022 = vld [vmem:[#allocation4 + $0x10] sm:$0x3]
      %v3023 = vld [vmem:[#allocation4 + $0x18] sm:$0x3]
      %s3024 = scalar_lea.vmem %s5, 288
      %v3025 = vld [vmem:[%s3024] sm:$0xff]
      %v3026 = vld [vmem:[%s3024 + $0x8] sm:$0xff]
      %v3027 = vld [vmem:[%s3024 + $0x10] sm:$0xff]
      %v3028 = vld [vmem:[%s3024 + $0x18] sm:$0xff]
      %v3029 = vld [vmem:[%s3024 + $0x20] sm:$0xff]
      %v3030 = vld [vmem:[%s3024 + $0x28] sm:$0xff]
      %v3031 = vld [vmem:[%s3024 + $0x30] sm:$0xff]
      %v3032 = vld [vmem:[%s3024 + $0x38] sm:$0xff]
      %v3033 = vld [vmem:[%s3024 + $0x40] sm:$0xff]
      %v3034 = vld [vmem:[%s3024 + $0x48] sm:$0xff]
      %v3035 = vld [vmem:[%s3024 + $0x50] sm:$0xff]
      %v3036 = vld [vmem:[%s3024 + $0x58] sm:$0xff]
      %v3037 = vld [vmem:[%s3024 + $0x60] sm:$0xff]
      %v3038 = vld [vmem:[%s3024 + $0x68] sm:$0xff]
      %v3039 = vld [vmem:[%s3024 + $0x70] sm:$0xff]
      %v3040 = vld [vmem:[%s3024 + $0x78] sm:$0xff]
      %v3041 = vld [vmem:[%s3024 + $0x80] sm:$0xff]
      %v3042 = vld [vmem:[%s3024 + $0x88] sm:$0xff]
      %v3047 = vrot.slane %v3020, 2
      %v3048 = vrot.slane %v3022, 2
      %v3049 = vsel %vm701, %v3047, %v3048
      %v3050 = vrot.slane %v3021, 2
      %v3051 = vrot.slane %v3023, 2
      %v3052 = vsel %vm701, %v3050, %v3051
      %v3054 = vsel %vm2872, %v3052, 0
      %3056 = vmatpush.msra.mxu0 %v3040
      %3057 = vmatpush.msra.mxu0 %v3039
      %3058 = vmatpush.msra.mxu0 %v3038
      %3059 = vmatpush.msra.mxu0 %v3037
      %3060 = vmatpush.msra.mxu0 %v3036
      %3061 = vmatpush.msra.mxu0 %v3035
      %3062 = vmatpush.msra.mxu0 %v3034
      %3063 = vmatpush.msra.mxu0 %v3033
      %3064 = vmatpush.msra.mxu0 %v3032
      %3065 = vmatpush.msra.mxu0 %v3031
      %3066 = vmatpush.msra.mxu0 %v3030
      %3067 = vmatpush.msra.mxu0 %v3029
      %3068 = vmatpush.msra.mxu0 %v3028
      %3069 = vmatpush.msra.mxu0 %v3027
      %3070 = vmatpush.msra.mxu0 %v3026
      %3071 = vmatpush.msra.mxu0 %v3025
      %3072 = vmatmul.f32.gmra.mxu0 %v3049
      %v3073 = vpop.f32.mrf.mxu0
      %v3074 = vadd.f32 0.0, %v3073
      %3075 = vdwg.mxu0
      %3076 = vmatpush.msra.mxu0 0.0
      %3077 = vmatpush.msra.mxu0 0.0
      %3078 = vmatpush.msra.mxu0 0.0
      %3079 = vmatpush.msra.mxu0 0.0
      %3080 = vmatpush.msra.mxu0 0.0
      %3081 = vmatpush.msra.mxu0 0.0
      %3082 = vmatpush.msra.mxu0 0.0
      %3083 = vmatpush.msra.mxu0 0.0
      %3084 = vmatpush.msra.mxu0 0.0
      %3085 = vmatpush.msra.mxu0 0.0
      %3086 = vmatpush.msra.mxu0 0.0
      %3087 = vmatpush.msra.mxu0 0.0
      %3088 = vmatpush.msra.mxu0 0.0
      %3089 = vmatpush.msra.mxu0 0.0
      %3090 = vmatpush.msra.mxu0 %v3042
      %3091 = vmatpush.msra.mxu0 %v3041
      %3092 = vmatmul.f32.gmra.mxu0 %v3054
      %v3093 = vpop.f32.mrf.mxu0
      %v3094 = vadd.f32 %v3074, %v3093
      %3095 = vdwg.mxu0
      %v3096 = vadd.f32 %v3018, %v3094
      %3097 = vadd.xlane.f32.xlu0 %v3096
      %v3098 = vpop.xlane.xlu0 %3097
      %v3099 = vrot.slane %v3098, 4
      %v3100 = vadd.f32 %v3098, %v3099
      %v3101 = vrot.slane %v3100, 2
      %v3102 = vadd.f32 %v3100, %v3101
      %v3103 = vrot.slane %v3102, 1
      %v3104 = vadd.f32 %v3102, %v3103
      %s3105 = vtos %v3104
      %s3106 = smul.f32 %s3105, 0.0009765625
      %v3107 = vmul.f32 %v3096, %v3096
      %3108 = vadd.xlane.f32.xlu0 %v3107
      %v3109 = vpop.xlane.xlu0 %3108
      %v3110 = vrot.slane %v3109, 4
      %v3111 = vadd.f32 %v3109, %v3110
      %v3112 = vrot.slane %v3111, 2
      %v3113 = vadd.f32 %v3111, %v3112
      %v3114 = vrot.slane %v3113, 1
      %v3115 = vadd.f32 %v3113, %v3114
      %s3116 = vtos %v3115
      %s3117 = smul.f32 %s3116, 0.0009765625
      %s3118 = smul.f32 %s3106, %s3106
      %s3119 = ssub.f32 %s3117, %s3118
      %s3120 = sadd.f32 %s3119, 1e-05
      %v3121 = vstv %s3120
      %v3122 = vrsqrt.pop %v3121
      %v3123 = vmul.f32 %v3122, %v3121
      %v3124 = vmul.f32 %v3123, %v3122
      %v3125 = vmul.f32 0.5, %v3124
      %v3126 = vsub.f32 1.5, %v3125
      %v3127 = vmul.f32 %v3122, %v3126
      %vm3128 = vweird.f32 %v3121
      %vm3129 = vweird.f32 %v3122
      %vm3130 = vmor %vm3128, %vm3129
      %v3131 = vsel %vm3130, %v3122, %v3127
      %s3132 = vtos %v3131
      %v3133 = vstv %s3132
      %v3134 = vmul.f32 %v3133, %v2862
      %v3135 = vstv %s3106
      %v3136 = vsub.f32 %v3096, %v3135
      %v3137 = vperm.slane %v3134, 0
      %v3138 = vmul.f32 %v3136, %v3137
      %v3139 = vperm.slane %v2863, 0
      %v3140 = vadd.f32 %v3138, %v3139
      %vm3141 = vcmp.ge.f32.partialorder %v3140, 0.0
      %v3142 = vperm.slane %v2864, 0
      %v3143 = vmul.f32 %v3142, %v3140
      %v3144 = vsel %vm3141, %v3140, %v3143
      %v3146 = vrot.slane %v3144, 7
      %3148 = vst [vmem:[#allocation4] sm:$0xfe] %v3146
      %3149 = vst [vmem:[#allocation4 + $0x10] sm:$0x1] %v3146
      %v3150 = vld [vmem:[#allocation4] sm:$0xff]
      %v3151 = vld [vmem:[#allocation4 + $0x8] sm:$0xff]
      %s3152 = scalar_lea.vmem %s5, 432
      %v3153 = vld [vmem:[%s3152] sm:$0xff]
      %v3154 = vld [vmem:[%s3152 + $0x8] sm:$0xff]
      %v3155 = vld [vmem:[%s3152 + $0x10] sm:$0xff]
      %v3156 = vld [vmem:[%s3152 + $0x18] sm:$0xff]
      %v3157 = vld [vmem:[%s3152 + $0x20] sm:$0xff]
      %v3158 = vld [vmem:[%s3152 + $0x28] sm:$0xff]
      %v3159 = vld [vmem:[%s3152 + $0x30] sm:$0xff]
      %v3160 = vld [vmem:[%s3152 + $0x38] sm:$0xff]
      %v3161 = vld [vmem:[%s3152 + $0x40] sm:$0xff]
      %v3162 = vld [vmem:[%s3152 + $0x48] sm:$0xff]
      %v3163 = vld [vmem:[%s3152 + $0x50] sm:$0xff]
      %v3164 = vld [vmem:[%s3152 + $0x58] sm:$0xff]
      %v3165 = vld [vmem:[%s3152 + $0x60] sm:$0xff]
      %v3166 = vld [vmem:[%s3152 + $0x68] sm:$0xff]
      %v3167 = vld [vmem:[%s3152 + $0x70] sm:$0xff]
      %v3168 = vld [vmem:[%s3152 + $0x78] sm:$0xff]
      %v3169 = vld [vmem:[%s3152 + $0x80] sm:$0xff]
      %v3170 = vld [vmem:[%s3152 + $0x88] sm:$0xff]
      %v3171 = vld [vmem:[#allocation4] sm:$0xfe]
      %v3172 = vld [vmem:[#allocation4 + $0x8] sm:$0xfe]
      %v3173 = vld [vmem:[#allocation4 + $0x10] sm:$0x1]
      %v3174 = vld [vmem:[#allocation4 + $0x18] sm:$0x1]
      %s3175 = scalar_lea.vmem %s5, 576
      %v3176 = vld [vmem:[%s3175] sm:$0xff]
      %v3177 = vld [vmem:[%s3175 + $0x8] sm:$0xff]
      %v3178 = vld [vmem:[%s3175 + $0x10] sm:$0xff]
      %v3179 = vld [vmem:[%s3175 + $0x18] sm:$0xff]
      %v3180 = vld [vmem:[%s3175 + $0x20] sm:$0xff]
      %v3181 = vld [vmem:[%s3175 + $0x28] sm:$0xff]
      %v3182 = vld [vmem:[%s3175 + $0x30] sm:$0xff]
      %v3183 = vld [vmem:[%s3175 + $0x38] sm:$0xff]
      %v3184 = vld [vmem:[%s3175 + $0x40] sm:$0xff]
      %v3185 = vld [vmem:[%s3175 + $0x48] sm:$0xff]
      %v3186 = vld [vmem:[%s3175 + $0x50] sm:$0xff]
      %v3187 = vld [vmem:[%s3175 + $0x58] sm:$0xff]
      %v3188 = vld [vmem:[%s3175 + $0x60] sm:$0xff]
      %v3189 = vld [vmem:[%s3175 + $0x68] sm:$0xff]
      %v3190 = vld [vmem:[%s3175 + $0x70] sm:$0xff]
      %v3191 = vld [vmem:[%s3175 + $0x78] sm:$0xff]
      %v3192 = vld [vmem:[%s3175 + $0x80] sm:$0xff]
      %v3193 = vld [vmem:[%s3175 + $0x88] sm:$0xff]
      %v3198 = vrot.slane %v3171, 1
      %v3199 = vrot.slane %v3173, 1
      %v3200 = vsel %vm512, %v3198, %v3199
      %v3201 = vrot.slane %v3172, 1
      %v3202 = vrot.slane %v3174, 1
      %v3203 = vsel %vm512, %v3201, %v3202
      %v3205 = vsel %vm2872, %v3203, 0
      %3207 = vmatpush.msra.mxu0 %v3191
      %3208 = vmatpush.msra.mxu0 %v3190
      %3209 = vmatpush.msra.mxu0 %v3189
      %3210 = vmatpush.msra.mxu0 %v3188
      %3211 = vmatpush.msra.mxu0 %v3187
      %3212 = vmatpush.msra.mxu0 %v3186
      %3213 = vmatpush.msra.mxu0 %v3185
      %3214 = vmatpush.msra.mxu0 %v3184
      %3215 = vmatpush.msra.mxu0 %v3183
      %3216 = vmatpush.msra.mxu0 %v3182
      %3217 = vmatpush.msra.mxu0 %v3181
      %3218 = vmatpush.msra.mxu0 %v3180
      %3219 = vmatpush.msra.mxu0 %v3179
      %3220 = vmatpush.msra.mxu0 %v3178
      %3221 = vmatpush.msra.mxu0 %v3177
      %3222 = vmatpush.msra.mxu0 %v3176
      %3223 = vmatmul.f32.gmra.mxu0 %v3200
      %v3224 = vpop.f32.mrf.mxu0
      %v3225 = vadd.f32 0.0, %v3224
      %3226 = vdwg.mxu0
      %3227 = vmatpush.msra.mxu0 0.0
      %3228 = vmatpush.msra.mxu0 0.0
      %3229 = vmatpush.msra.mxu0 0.0
      %3230 = vmatpush.msra.mxu0 0.0
      %3231 = vmatpush.msra.mxu0 0.0
      %3232 = vmatpush.msra.mxu0 0.0
      %3233 = vmatpush.msra.mxu0 0.0
      %3234 = vmatpush.msra.mxu0 0.0
      %3235 = vmatpush.msra.mxu0 0.0
      %3236 = vmatpush.msra.mxu0 0.0
      %3237 = vmatpush.msra.mxu0 0.0
      %3238 = vmatpush.msra.mxu0 0.0
      %3239 = vmatpush.msra.mxu0 0.0
      %3240 = vmatpush.msra.mxu0 0.0
      %3241 = vmatpush.msra.mxu0 %v3193
      %3242 = vmatpush.msra.mxu0 %v3192
      %3243 = vmatmul.f32.gmra.mxu0 %v3205
      %v3244 = vpop.f32.mrf.mxu0
      %v3245 = vadd.f32 %v3225, %v3244
      %3246 = vdwg.mxu0
      %v3248 = vsel %vm2872, %v3151, 0
      %3250 = vmatpush.msra.mxu0 %v3168
      %3251 = vmatpush.msra.mxu0 %v3167
      %3252 = vmatpush.msra.mxu0 %v3166
      %3253 = vmatpush.msra.mxu0 %v3165
      %3254 = vmatpush.msra.mxu0 %v3164
      %3255 = vmatpush.msra.mxu0 %v3163
      %3256 = vmatpush.msra.mxu0 %v3162
      %3257 = vmatpush.msra.mxu0 %v3161
      %3258 = vmatpush.msra.mxu0 %v3160
      %3259 = vmatpush.msra.mxu0 %v3159
      %3260 = vmatpush.msra.mxu0 %v3158
      %3261 = vmatpush.msra.mxu0 %v3157
      %3262 = vmatpush.msra.mxu0 %v3156
      %3263 = vmatpush.msra.mxu0 %v3155
      %3264 = vmatpush.msra.mxu0 %v3154
      %3265 = vmatpush.msra.mxu0 %v3153
      %3266 = vmatmul.f32.gmra.mxu0 %v3150
      %v3267 = vpop.f32.mrf.mxu0
      %v3268 = vadd.f32 %v3245, %v3267
      %3269 = vdwg.mxu0
      %3270 = vmatpush.msra.mxu0 0.0
      %3271 = vmatpush.msra.mxu0 0.0
      %3272 = vmatpush.msra.mxu0 0.0
      %3273 = vmatpush.msra.mxu0 0.0
      %3274 = vmatpush.msra.mxu0 0.0
      %3275 = vmatpush.msra.mxu0 0.0
      %3276 = vmatpush.msra.mxu0 0.0
      %3277 = vmatpush.msra.mxu0 0.0
      %3278 = vmatpush.msra.mxu0 0.0
      %3279 = vmatpush.msra.mxu0 0.0
      %3280 = vmatpush.msra.mxu0 0.0
      %3281 = vmatpush.msra.mxu0 0.0
      %3282 = vmatpush.msra.mxu0 0.0
      %3283 = vmatpush.msra.mxu0 0.0
      %3284 = vmatpush.msra.mxu0 %v3170
      %3285 = vmatpush.msra.mxu0 %v3169
      %3286 = vmatmul.f32.gmra.mxu0 %v3248
      %v3287 = vpop.f32.mrf.mxu0
      %v3288 = vadd.f32 %v3268, %v3287
      %3289 = vdwg.mxu0
      %v3290 = vld [vmem:[#allocation4] sm:$0xfc]
      %v3291 = vld [vmem:[#allocation4 + $0x8] sm:$0xfc]
      %v3292 = vld [vmem:[#allocation4 + $0x10] sm:$0x3]
      %v3293 = vld [vmem:[#allocation4 + $0x18] sm:$0x3]
      %s3294 = scalar_lea.vmem %s5, 720
      %v3295 = vld [vmem:[%s3294] sm:$0xff]
      %v3296 = vld [vmem:[%s3294 + $0x8] sm:$0xff]
      %v3297 = vld [vmem:[%s3294 + $0x10] sm:$0xff]
      %v3298 = vld [vmem:[%s3294 + $0x18] sm:$0xff]
      %v3299 = vld [vmem:[%s3294 + $0x20] sm:$0xff]
      %v3300 = vld [vmem:[%s3294 + $0x28] sm:$0xff]
      %v3301 = vld [vmem:[%s3294 + $0x30] sm:$0xff]
      %v3302 = vld [vmem:[%s3294 + $0x38] sm:$0xff]
      %v3303 = vld [vmem:[%s3294 + $0x40] sm:$0xff]
      %v3304 = vld [vmem:[%s3294 + $0x48] sm:$0xff]
      %v3305 = vld [vmem:[%s3294 + $0x50] sm:$0xff]
      %v3306 = vld [vmem:[%s3294 + $0x58] sm:$0xff]
      %v3307 = vld [vmem:[%s3294 + $0x60] sm:$0xff]
      %v3308 = vld [vmem:[%s3294 + $0x68] sm:$0xff]
      %v3309 = vld [vmem:[%s3294 + $0x70] sm:$0xff]
      %v3310 = vld [vmem:[%s3294 + $0x78] sm:$0xff]
      %v3311 = vld [vmem:[%s3294 + $0x80] sm:$0xff]
      %v3312 = vld [vmem:[%s3294 + $0x88] sm:$0xff]
      %v3317 = vrot.slane %v3290, 2
      %v3318 = vrot.slane %v3292, 2
      %v3319 = vsel %vm701, %v3317, %v3318
      %v3320 = vrot.slane %v3291, 2
      %v3321 = vrot.slane %v3293, 2
      %v3322 = vsel %vm701, %v3320, %v3321
      %v3324 = vsel %vm2872, %v3322, 0
      %3326 = vmatpush.msra.mxu0 %v3310
      %3327 = vmatpush.msra.mxu0 %v3309
      %3328 = vmatpush.msra.mxu0 %v3308
      %3329 = vmatpush.msra.mxu0 %v3307
      %3330 = vmatpush.msra.mxu0 %v3306
      %3331 = vmatpush.msra.mxu0 %v3305
      %3332 = vmatpush.msra.mxu0 %v3304
      %3333 = vmatpush.msra.mxu0 %v3303
      %3334 = vmatpush.msra.mxu0 %v3302
      %3335 = vmatpush.msra.mxu0 %v3301
      %3336 = vmatpush.msra.mxu0 %v3300
      %3337 = vmatpush.msra.mxu0 %v3299
      %3338 = vmatpush.msra.mxu0 %v3298
      %3339 = vmatpush.msra.mxu0 %v3297
      %3340 = vmatpush.msra.mxu0 %v3296
      %3341 = vmatpush.msra.mxu0 %v3295
      %3342 = vmatmul.f32.gmra.mxu0 %v3319
      %v3343 = vpop.f32.mrf.mxu0
      %v3344 = vadd.f32 0.0, %v3343
      %3345 = vdwg.mxu0
      %3346 = vmatpush.msra.mxu0 0.0
      %3347 = vmatpush.msra.mxu0 0.0
      %3348 = vmatpush.msra.mxu0 0.0
      %3349 = vmatpush.msra.mxu0 0.0
      %3350 = vmatpush.msra.mxu0 0.0
      %3351 = vmatpush.msra.mxu0 0.0
      %3352 = vmatpush.msra.mxu0 0.0
      %3353 = vmatpush.msra.mxu0 0.0
      %3354 = vmatpush.msra.mxu0 0.0
      %3355 = vmatpush.msra.mxu0 0.0
      %3356 = vmatpush.msra.mxu0 0.0
      %3357 = vmatpush.msra.mxu0 0.0
      %3358 = vmatpush.msra.mxu0 0.0
      %3359 = vmatpush.msra.mxu0 0.0
      %3360 = vmatpush.msra.mxu0 %v3312
      %3361 = vmatpush.msra.mxu0 %v3311
      %3362 = vmatmul.f32.gmra.mxu0 %v3324
      %v3363 = vpop.f32.mrf.mxu0
      %v3364 = vadd.f32 %v3344, %v3363
      %3365 = vdwg.mxu0
      %v3366 = vadd.f32 %v3288, %v3364
      %3367 = vadd.xlane.f32.xlu0 %v3366
      %v3368 = vpop.xlane.xlu0 %3367
      %v3369 = vrot.slane %v3368, 4
      %v3370 = vadd.f32 %v3368, %v3369
      %v3371 = vrot.slane %v3370, 2
      %v3372 = vadd.f32 %v3370, %v3371
      %v3373 = vrot.slane %v3372, 1
      %v3374 = vadd.f32 %v3372, %v3373
      %s3375 = vtos %v3374
      %s3376 = smul.f32 %s3375, 0.0009765625
      %v3377 = vmul.f32 %v3366, %v3366
      %3378 = vadd.xlane.f32.xlu0 %v3377
      %v3379 = vpop.xlane.xlu0 %3378
      %v3380 = vrot.slane %v3379, 4
      %v3381 = vadd.f32 %v3379, %v3380
      %v3382 = vrot.slane %v3381, 2
      %v3383 = vadd.f32 %v3381, %v3382
      %v3384 = vrot.slane %v3383, 1
      %v3385 = vadd.f32 %v3383, %v3384
      %s3386 = vtos %v3385
      %s3387 = smul.f32 %s3386, 0.0009765625
      %s3388 = smul.f32 %s3376, %s3376
      %s3389 = ssub.f32 %s3387, %s3388
      %s3390 = sadd.f32 %s3389, 1e-05
      %v3391 = vstv %s3390
      %v3392 = vrsqrt.pop %v3391
      %v3393 = vmul.f32 %v3392, %v3391
      %v3394 = vmul.f32 %v3393, %v3392
      %v3395 = vmul.f32 0.5, %v3394
      %v3396 = vsub.f32 1.5, %v3395
      %v3397 = vmul.f32 %v3392, %v3396
      %vm3398 = vweird.f32 %v3391
      %vm3399 = vweird.f32 %v3392
      %vm3400 = vmor %vm3398, %vm3399
      %v3401 = vsel %vm3400, %v3392, %v3397
      %s3402 = vtos %v3401
      %v3403 = vstv %s3402
      %v3404 = vmul.f32 %v3403, %v2862
      %v3405 = vstv %s3376
      %v3406 = vsub.f32 %v3366, %v3405
      %v3407 = vperm.slane %v3404, 0
      %v3408 = vmul.f32 %v3406, %v3407
      %v3409 = vadd.f32 %v3408, %v3139
      %vm3410 = vcmp.ge.f32.partialorder %v3409, 0.0
      %v3411 = vmul.f32 %v3142, %v3409
      %v3412 = vsel %vm3410, %v3409, %v3411
      %v3414 = vrot.slane %v3412, 7
      %3416 = vst [vmem:[#allocation4] sm:$0xfe] %v3414
      %3417 = vst [vmem:[#allocation4 + $0x10] sm:$0x1] %v3414
      %v3418 = vld [vmem:[#allocation4] sm:$0xff]
      %v3419 = vld [vmem:[#allocation4 + $0x8] sm:$0xff]
      %s3420 = scalar_lea.vmem %s5, 864
      %v3421 = vld [vmem:[%s3420] sm:$0xff]
      %v3422 = vld [vmem:[%s3420 + $0x8] sm:$0xff]
      %v3423 = vld [vmem:[%s3420 + $0x10] sm:$0xff]
      %v3424 = vld [vmem:[%s3420 + $0x18] sm:$0xff]
      %v3425 = vld [vmem:[%s3420 + $0x20] sm:$0xff]
      %v3426 = vld [vmem:[%s3420 + $0x28] sm:$0xff]
      %v3427 = vld [vmem:[%s3420 + $0x30] sm:$0xff]
      %v3428 = vld [vmem:[%s3420 + $0x38] sm:$0xff]
      %v3429 = vld [vmem:[%s3420 + $0x40] sm:$0xff]
      %v3430 = vld [vmem:[%s3420 + $0x48] sm:$0xff]
      %v3431 = vld [vmem:[%s3420 + $0x50] sm:$0xff]
      %v3432 = vld [vmem:[%s3420 + $0x58] sm:$0xff]
      %v3433 = vld [vmem:[%s3420 + $0x60] sm:$0xff]
      %v3434 = vld [vmem:[%s3420 + $0x68] sm:$0xff]
      %v3435 = vld [vmem:[%s3420 + $0x70] sm:$0xff]
      %v3436 = vld [vmem:[%s3420 + $0x78] sm:$0xff]
      %v3437 = vld [vmem:[%s3420 + $0x80] sm:$0xff]
      %v3438 = vld [vmem:[%s3420 + $0x88] sm:$0xff]
      %v3439 = vld [vmem:[#allocation4] sm:$0xfe]
      %v3440 = vld [vmem:[#allocation4 + $0x8] sm:$0xfe]
      %v3441 = vld [vmem:[#allocation4 + $0x10] sm:$0x1]
      %v3442 = vld [vmem:[#allocation4 + $0x18] sm:$0x1]
      %s3443 = scalar_lea.vmem %s5, 1008
      %v3444 = vld [vmem:[%s3443] sm:$0xff]
      %v3445 = vld [vmem:[%s3443 + $0x8] sm:$0xff]
      %v3446 = vld [vmem:[%s3443 + $0x10] sm:$0xff]
      %v3447 = vld [vmem:[%s3443 + $0x18] sm:$0xff]
      %v3448 = vld [vmem:[%s3443 + $0x20] sm:$0xff]
      %v3449 = vld [vmem:[%s3443 + $0x28] sm:$0xff]
      %v3450 = vld [vmem:[%s3443 + $0x30] sm:$0xff]
      %v3451 = vld [vmem:[%s3443 + $0x38] sm:$0xff]
      %v3452 = vld [vmem:[%s3443 + $0x40] sm:$0xff]
      %v3453 = vld [vmem:[%s3443 + $0x48] sm:$0xff]
      %v3454 = vld [vmem:[%s3443 + $0x50] sm:$0xff]
      %v3455 = vld [vmem:[%s3443 + $0x58] sm:$0xff]
      %v3456 = vld [vmem:[%s3443 + $0x60] sm:$0xff]
      %v3457 = vld [vmem:[%s3443 + $0x68] sm:$0xff]
      %v3458 = vld [vmem:[%s3443 + $0x70] sm:$0xff]
      %v3459 = vld [vmem:[%s3443 + $0x78] sm:$0xff]
      %v3460 = vld [vmem:[%s3443 + $0x80] sm:$0xff]
      %v3461 = vld [vmem:[%s3443 + $0x88] sm:$0xff]
      %v3466 = vrot.slane %v3439, 1
      %v3467 = vrot.slane %v3441, 1
      %v3468 = vsel %vm512, %v3466, %v3467
      %v3469 = vrot.slane %v3440, 1
      %v3470 = vrot.slane %v3442, 1
      %v3471 = vsel %vm512, %v3469, %v3470
      %v3473 = vsel %vm2872, %v3471, 0
      %3475 = vmatpush.msra.mxu0 %v3459
      %3476 = vmatpush.msra.mxu0 %v3458
      %3477 = vmatpush.msra.mxu0 %v3457
      %3478 = vmatpush.msra.mxu0 %v3456
      %3479 = vmatpush.msra.mxu0 %v3455
      %3480 = vmatpush.msra.mxu0 %v3454
      %3481 = vmatpush.msra.mxu0 %v3453
      %3482 = vmatpush.msra.mxu0 %v3452
      %3483 = vmatpush.msra.mxu0 %v3451
      %3484 = vmatpush.msra.mxu0 %v3450
      %3485 = vmatpush.msra.mxu0 %v3449
      %3486 = vmatpush.msra.mxu0 %v3448
      %3487 = vmatpush.msra.mxu0 %v3447
      %3488 = vmatpush.msra.mxu0 %v3446
      %3489 = vmatpush.msra.mxu0 %v3445
      %3490 = vmatpush.msra.mxu0 %v3444
      %3491 = vmatmul.f32.gmra.mxu0 %v3468
      %v3492 = vpop.f32.mrf.mxu0
      %v3493 = vadd.f32 0.0, %v3492
      %3494 = vdwg.mxu0
      %3495 = vmatpush.msra.mxu0 0.0
      %3496 = vmatpush.msra.mxu0 0.0
      %3497 = vmatpush.msra.mxu0 0.0
      %3498 = vmatpush.msra.mxu0 0.0
      %3499 = vmatpush.msra.mxu0 0.0
      %3500 = vmatpush.msra.mxu0 0.0
      %3501 = vmatpush.msra.mxu0 0.0
      %3502 = vmatpush.msra.mxu0 0.0
      %3503 = vmatpush.msra.mxu0 0.0
      %3504 = vmatpush.msra.mxu0 0.0
      %3505 = vmatpush.msra.mxu0 0.0
      %3506 = vmatpush.msra.mxu0 0.0
      %3507 = vmatpush.msra.mxu0 0.0
      %3508 = vmatpush.msra.mxu0 0.0
      %3509 = vmatpush.msra.mxu0 %v3461
      %3510 = vmatpush.msra.mxu0 %v3460
      %3511 = vmatmul.f32.gmra.mxu0 %v3473
      %v3512 = vpop.f32.mrf.mxu0
      %v3513 = vadd.f32 %v3493, %v3512
      %3514 = vdwg.mxu0
      %v3516 = vsel %vm2872, %v3419, 0
      %3518 = vmatpush.msra.mxu0 %v3436
      %3519 = vmatpush.msra.mxu0 %v3435
      %3520 = vmatpush.msra.mxu0 %v3434
      %3521 = vmatpush.msra.mxu0 %v3433
      %3522 = vmatpush.msra.mxu0 %v3432
      %3523 = vmatpush.msra.mxu0 %v3431
      %3524 = vmatpush.msra.mxu0 %v3430
      %3525 = vmatpush.msra.mxu0 %v3429
      %3526 = vmatpush.msra.mxu0 %v3428
      %3527 = vmatpush.msra.mxu0 %v3427
      %3528 = vmatpush.msra.mxu0 %v3426
      %3529 = vmatpush.msra.mxu0 %v3425
      %3530 = vmatpush.msra.mxu0 %v3424
      %3531 = vmatpush.msra.mxu0 %v3423
      %3532 = vmatpush.msra.mxu0 %v3422
      %3533 = vmatpush.msra.mxu0 %v3421
      %3534 = vmatmul.f32.gmra.mxu0 %v3418
      %v3535 = vpop.f32.mrf.mxu0
      %v3536 = vadd.f32 %v3513, %v3535
      %3537 = vdwg.mxu0
      %3538 = vmatpush.msra.mxu0 0.0
      %3539 = vmatpush.msra.mxu0 0.0
      %3540 = vmatpush.msra.mxu0 0.0
      %3541 = vmatpush.msra.mxu0 0.0
      %3542 = vmatpush.msra.mxu0 0.0
      %3543 = vmatpush.msra.mxu0 0.0
      %3544 = vmatpush.msra.mxu0 0.0
      %3545 = vmatpush.msra.mxu0 0.0
      %3546 = vmatpush.msra.mxu0 0.0
      %3547 = vmatpush.msra.mxu0 0.0
      %3548 = vmatpush.msra.mxu0 0.0
      %3549 = vmatpush.msra.mxu0 0.0
      %3550 = vmatpush.msra.mxu0 0.0
      %3551 = vmatpush.msra.mxu0 0.0
      %3552 = vmatpush.msra.mxu0 %v3438
      %3553 = vmatpush.msra.mxu0 %v3437
      %3554 = vmatmul.f32.gmra.mxu0 %v3516
      %v3555 = vpop.f32.mrf.mxu0
      %v3556 = vadd.f32 %v3536, %v3555
      %3557 = vdwg.mxu0
      %v3558 = vld [vmem:[#allocation4] sm:$0xfc]
      %v3559 = vld [vmem:[#allocation4 + $0x8] sm:$0xfc]
      %v3560 = vld [vmem:[#allocation4 + $0x10] sm:$0x3]
      %v3561 = vld [vmem:[#allocation4 + $0x18] sm:$0x3]
      %s3562 = scalar_lea.vmem %s5, 1152
      %v3563 = vld [vmem:[%s3562] sm:$0xff]
      %v3564 = vld [vmem:[%s3562 + $0x8] sm:$0xff]
      %v3565 = vld [vmem:[%s3562 + $0x10] sm:$0xff]
      %v3566 = vld [vmem:[%s3562 + $0x18] sm:$0xff]
      %v3567 = vld [vmem:[%s3562 + $0x20] sm:$0xff]
      %v3568 = vld [vmem:[%s3562 + $0x28] sm:$0xff]
      %v3569 = vld [vmem:[%s3562 + $0x30] sm:$0xff]
      %v3570 = vld [vmem:[%s3562 + $0x38] sm:$0xff]
      %v3571 = vld [vmem:[%s3562 + $0x40] sm:$0xff]
      %v3572 = vld [vmem:[%s3562 + $0x48] sm:$0xff]
      %v3573 = vld [vmem:[%s3562 + $0x50] sm:$0xff]
      %v3574 = vld [vmem:[%s3562 + $0x58] sm:$0xff]
      %v3575 = vld [vmem:[%s3562 + $0x60] sm:$0xff]
      %v3576 = vld [vmem:[%s3562 + $0x68] sm:$0xff]
      %v3577 = vld [vmem:[%s3562 + $0x70] sm:$0xff]
      %v3578 = vld [vmem:[%s3562 + $0x78] sm:$0xff]
      %v3579 = vld [vmem:[%s3562 + $0x80] sm:$0xff]
      %v3580 = vld [vmem:[%s3562 + $0x88] sm:$0xff]
      %v3585 = vrot.slane %v3558, 2
      %v3586 = vrot.slane %v3560, 2
      %v3587 = vsel %vm701, %v3585, %v3586
      %v3588 = vrot.slane %v3559, 2
      %v3589 = vrot.slane %v3561, 2
      %v3590 = vsel %vm701, %v3588, %v3589
      %v3592 = vsel %vm2872, %v3590, 0
      %3594 = vmatpush.msra.mxu0 %v3578
      %3595 = vmatpush.msra.mxu0 %v3577
      %3596 = vmatpush.msra.mxu0 %v3576
      %3597 = vmatpush.msra.mxu0 %v3575
      %3598 = vmatpush.msra.mxu0 %v3574
      %3599 = vmatpush.msra.mxu0 %v3573
      %3600 = vmatpush.msra.mxu0 %v3572
      %3601 = vmatpush.msra.mxu0 %v3571
      %3602 = vmatpush.msra.mxu0 %v3570
      %3603 = vmatpush.msra.mxu0 %v3569
      %3604 = vmatpush.msra.mxu0 %v3568
      %3605 = vmatpush.msra.mxu0 %v3567
      %3606 = vmatpush.msra.mxu0 %v3566
      %3607 = vmatpush.msra.mxu0 %v3565
      %3608 = vmatpush.msra.mxu0 %v3564
      %3609 = vmatpush.msra.mxu0 %v3563
      %3610 = vmatmul.f32.gmra.mxu0 %v3587
      %v3611 = vpop.f32.mrf.mxu0
      %v3612 = vadd.f32 0.0, %v3611
      %3613 = vdwg.mxu0
      %3614 = vmatpush.msra.mxu0 0.0
      %3615 = vmatpush.msra.mxu0 0.0
      %3616 = vmatpush.msra.mxu0 0.0
      %3617 = vmatpush.msra.mxu0 0.0
      %3618 = vmatpush.msra.mxu0 0.0
      %3619 = vmatpush.msra.mxu0 0.0
      %3620 = vmatpush.msra.mxu0 0.0
      %3621 = vmatpush.msra.mxu0 0.0
      %3622 = vmatpush.msra.mxu0 0.0
      %3623 = vmatpush.msra.mxu0 0.0
      %3624 = vmatpush.msra.mxu0 0.0
      %3625 = vmatpush.msra.mxu0 0.0
      %3626 = vmatpush.msra.mxu0 0.0
      %3627 = vmatpush.msra.mxu0 0.0
      %3628 = vmatpush.msra.mxu0 %v3580
      %3629 = vmatpush.msra.mxu0 %v3579
      %3630 = vmatmul.f32.gmra.mxu0 %v3592
      %v3631 = vpop.f32.mrf.mxu0
      %v3632 = vadd.f32 %v3612, %v3631
      %3633 = vdwg.mxu0
      %v3634 = vadd.f32 %v3556, %v3632
      %3635 = vadd.xlane.f32.xlu0 %v3634
      %v3636 = vpop.xlane.xlu0 %3635
      %v3637 = vrot.slane %v3636, 4
      %v3638 = vadd.f32 %v3636, %v3637
      %v3639 = vrot.slane %v3638, 2
      %v3640 = vadd.f32 %v3638, %v3639
      %v3641 = vrot.slane %v3640, 1
      %v3642 = vadd.f32 %v3640, %v3641
      %s3643 = vtos %v3642
      %s3644 = smul.f32 %s3643, 0.0009765625
      %v3645 = vmul.f32 %v3634, %v3634
      %3646 = vadd.xlane.f32.xlu0 %v3645
      %v3647 = vpop.xlane.xlu0 %3646
      %v3648 = vrot.slane %v3647, 4
      %v3649 = vadd.f32 %v3647, %v3648
      %v3650 = vrot.slane %v3649, 2
      %v3651 = vadd.f32 %v3649, %v3650
      %v3652 = vrot.slane %v3651, 1
      %v3653 = vadd.f32 %v3651, %v3652
      %s3654 = vtos %v3653
      %s3655 = smul.f32 %s3654, 0.0009765625
      %s3656 = smul.f32 %s3644, %s3644
      %s3657 = ssub.f32 %s3655, %s3656
      %s3658 = sadd.f32 %s3657, 1e-05
      %v3659 = vstv %s3658
      %v3660 = vrsqrt.pop %v3659
      %v3661 = vmul.f32 %v3660, %v3659
      %v3662 = vmul.f32 %v3661, %v3660
      %v3663 = vmul.f32 0.5, %v3662
      %v3664 = vsub.f32 1.5, %v3663
      %v3665 = vmul.f32 %v3660, %v3664
      %vm3666 = vweird.f32 %v3659
      %vm3667 = vweird.f32 %v3660
      %vm3668 = vmor %vm3666, %vm3667
      %v3669 = vsel %vm3668, %v3660, %v3665
      %s3670 = vtos %v3669
      %v3671 = vstv %s3670
      %v3672 = vmul.f32 %v3671, %v2862
      %v3673 = vstv %s3644
      %v3674 = vsub.f32 %v3634, %v3673
      %v3675 = vperm.slane %v3672, 0
      %v3676 = vmul.f32 %v3674, %v3675
      %v3677 = vadd.f32 %v3676, %v3139
      %v3678 = vadd.f32 %v3677, %v2860
      %vm3679 = vcmp.ge.f32.partialorder %v3678, 0.0
      %v3680 = vmul.f32 %v3142, %v3678
      %v3681 = vsel %vm3679, %v3678, %v3680
      %3682 = vst [vmem:[%s409] sm:$0xff] %v3681
      %p3683 = scmp.lt.s32.totalorder %s23, 1
      %s3684 = scalar_select %p3683, %s23, 1
      %s3685 = smul.addr %s3684, 4
      %s3686 = smul.addr %s3685, 8
      %s3687 = scalar_lea.vmem %s9, %s3686
      %p3688 = scmp.lt.s32.totalorder %s23, 1
      %s3689 = scalar_select %p3688, %s23, 1
      %s3690 = smul.addr %s3689, 2
      %s3691 = smul.addr %s3690, 8
      %s3692 = scalar_lea.vmem %s10, %s3691
      %p3693 = scmp.lt.s32.totalorder %s23, 1
      %s3694 = scalar_select %p3693, %s23, 1
      %s3695 = smul.addr %s3694, 8
      %s3696 = scalar_lea.vmem %s11, %s3695
      // Predicated region
      $region57: #{encoder_forward.1} parent=55 // pred_check
        %p3697 = pneg %p235
      $region58: #{encoder_forward.1} parent=55 // pred_check_branch
        %3699 = sbr.rel (%p3697) target = $region60
      $region59: #{encoder_forward.1} parent=55 // pred_region
        _
      $region60: #{encoder_forward.1} parent=55 // pred_fallthru
        _
      // Predicated region
      $region61: #{encoder_forward.1} parent=55 // pred_check
        %p3700 = pneg %p261
      $region62: #{encoder_forward.1} parent=55 // pred_check_branch
        %3702 = sbr.rel (%p3700) target = $region64
      $region63: #{encoder_forward.1} parent=55 // pred_region
        _
      $region64: #{encoder_forward.1} parent=55 // pred_fallthru
        _
      // Predicated region
      $region65: #{encoder_forward.1} parent=55 // pred_check
        %p3703 = pneg %p287
      $region66: #{encoder_forward.1} parent=55 // pred_check_branch
        %3705 = sbr.rel (%p3703) target = $region68
      $region67: #{encoder_forward.1} parent=55 // pred_region
        _
      $region68: #{encoder_forward.1} parent=55 // pred_fallthru
        _
    $region56: #{encoder_forward.1} parent=5 // pred_fallthru
      _
    %p3706 = scmp.le.s32.totalorder 2, %s18
    // Predicated region
    $region69: #{encoder_forward.1} parent=5 // pred_check
      %p3707 = pneg %p3706
    $region70: #{encoder_forward.1} parent=5 // pred_check_branch
      %3709 = sbr.rel (%p3707) target = $region72
    $region71: #{encoder_forward.1} parent=5 // pred_region
      %s3710 = ssub.s32 %s18, 2
      // Predicated region
      $region73: #{encoder_forward.1} parent=71 // pred_check
        %p3711 = pneg %p241
      $region74: #{encoder_forward.1} parent=71 // pred_check_branch
        %3713 = sbr.rel (%p3711) target = $region76
      $region75: #{encoder_forward.1} parent=71 // pred_region
        %p3714 = scmp.lt.s32.totalorder %s24, 1
        %s3715 = scalar_select %p3714, %s24, 1
        %s3716 = smul.addr %s3715, 4
        %s3717 = smul.addr %s3716, 8
        %s3718 = scalar_lea.vmem %s9, %s3717
      $region76: #{encoder_forward.1} parent=71 // pred_fallthru
        _
      // Predicated region
      $region77: #{encoder_forward.1} parent=71 // pred_check
        %p3719 = pneg %p267
      $region78: #{encoder_forward.1} parent=71 // pred_check_branch
        %3721 = sbr.rel (%p3719) target = $region80
      $region79: #{encoder_forward.1} parent=71 // pred_region
        %p3722 = scmp.lt.s32.totalorder %s24, 1
        %s3723 = scalar_select %p3722, %s24, 1
        %s3724 = smul.addr %s3723, 2
        %s3725 = smul.addr %s3724, 8
        %s3726 = scalar_lea.vmem %s10, %s3725
      $region80: #{encoder_forward.1} parent=71 // pred_fallthru
        _
      // Predicated region
      $region81: #{encoder_forward.1} parent=71 // pred_check
        %p3727 = pneg %p293
      $region82: #{encoder_forward.1} parent=71 // pred_check_branch
        %3729 = sbr.rel (%p3727) target = $region84
      $region83: #{encoder_forward.1} parent=71 // pred_region
        %p3730 = scmp.lt.s32.totalorder %s24, 1
        %s3731 = scalar_select %p3730, %s24, 1
        %s3732 = smul.addr %s3731, 8
        %s3733 = scalar_lea.vmem %s11, %s3732
      $region84: #{encoder_forward.1} parent=71 // pred_fallthru
        _
    $region72: #{encoder_forward.1} parent=5 // pred_fallthru
      _
  $region6: #{encoder_forward.1} parent=0 // loop_footer
    %s22 = sadd.s32 1, %s18
  $region7: #{encoder_forward.1} parent=0 // loop_footer_branch
    %17 = sbr.rel target = $region3
  $region8: #{encoder_forward.1} parent=0 // loop_exit
    _

</llo_original>
